<compile_context>
chip_gen: v7x
topology: tpu7x:2x2x1
jax: 0.10.0
libtpu: 0.0.40
codegen_flags: <defaults>
</compile_context>

<pallas_src>
import jax
import jax.numpy as jnp
from jax import lax
from jax.experimental import pallas as pl
from jax.experimental.pallas import tpu as pltpu

# Mirrors lst_structure = [
#   {"input_size": D_IN, "output_size": H, "act": "nn.ReLU()"},
#   {"input_size": H,    "output_size": K, "act": "nn.ReLU()"},
# ]
D_IN, H, K = 32, 16, 4

# ---- packed-parameter buffer layout (single HBM operand) --------------------
#   rows [0:H)      cols [0:D_IN) : w0   (H, D_IN)      nn.Linear (out, in)
#   rows [H:H+K)    cols [0:H)    : w1   (K, H)
#   rows [H+K:H+2K) cols [0:K)    : I_K  (eye used for the on-MXU transpose)
#   rows [0:H)      col  B0_COL   : b0   (H,)  stored as a column -> (H, 1)
#   rows [0:K)      col  B1_COL   : b1   (K,)  stored as a column -> (K, 1)
P_ROWS = 24            # >= H + 2K, multiple of 8 (sublane tile)
P_COLS = 128           # lane-aligned; >= D_IN + 2
B0_COL = D_IN
B1_COL = D_IN + 1

_NT = (((1,), (1,)), ((), ()))          # contract the LAST dim of both (A @ B^T)
_HI = lax.Precision.HIGHEST             # keep kernel/reference numerics aligned


def pack_params(w0, b0, w1, b1):
    """One-time packing of nn.Linear parameters into a single f32 operand."""
    assert w0.shape == (H, D_IN) and w1.shape == (K, H)
    p = jnp.zeros((P_ROWS, P_COLS), jnp.float32)
    p = p.at[0:H, 0:D_IN].set(w0.astype(jnp.float32))
    p = p.at[H:H + K, 0:H].set(w1.astype(jnp.float32))
    p = p.at[H + K:H + 2 * K, 0:K].set(jnp.eye(K, dtype=jnp.float32))
    p = p.at[0:H, B0_COL].set(b0.reshape(H).astype(jnp.float32))
    p = p.at[0:K, B1_COL].set(b1.reshape(K).astype(jnp.float32))
    return p


def gate_ensemble_kernel(x_ref, base_ref, p_ref, out_ref):
    # Static carve-outs from the packed parameter buffer (tiny masked loads).
    w0 = p_ref[0:H, 0:D_IN]                       # (H, D_IN)
    w1 = p_ref[H:H + K, 0:H]                      # (K, H)
    eye = p_ref[H + K:H + 2 * K, 0:K]             # (K, K)
    b0 = p_ref[0:H, B0_COL:B0_COL + 1]            # (H, 1) column -> lane broadcast
    b1 = p_ref[0:K, B1_COL:B1_COL + 1]            # (K, 1)

    x = x_ref[...]                                # (LB, D_IN)  row-major, as stored in HBM
    base = base_ref[...]                          # (LB, K)

    # Layer 0: NT contraction puts the batch on the LANE axis with no transpose:
    #   hT[i, b] = sum_d w0[i, d] * x[b, d]        -> (H, LB)
    hT = lax.dot_general(w0, x, _NT, precision=_HI,
                         preferred_element_type=jnp.float32)
    hT = jnp.maximum(hT + b0, 0.0)                # lane-dense bias + ReLU

    # Layer 1: standard NN matmul               -> (K, LB)
    gT = jnp.dot(w1, hT, precision=_HI, preferred_element_type=jnp.float32)
    gT = jnp.maximum(gT + b1, 0.0)

    # Transpose base (LB, K) -> (K, LB) on the idle MXU via the packed identity
    # (same NT pattern as layer 0; avoids any wrapper/XLU transpose).
    baseT = lax.dot_general(eye, base, _NT, precision=_HI,
                            preferred_element_type=jnp.float32)

    # Gate and reduce over the ensemble axis (sublane axis here): (1, LB),
    # stored as a lane-dense row.
    out_ref[...] = jnp.sum(gT * baseT, axis=0, keepdims=True)


def gate_ensemble_forward(x, base, packed_params):
    """x: (B, D_IN) row-major, base: (B, K) row-major, packed_params from
    pack_params().  Returns (B,) exactly like the PyTorch module."""
    B = x.shape[0]
    assert x.shape == (B, D_IN) and base.shape == (B, K)
    assert packed_params.shape == (P_ROWS, P_COLS)

    # Batch-block (lane-block) size: 512 is a multiple of 256 (v6e/v7x MXU
    # tile) and 128 (v5e) -> lane-dense stores + megacore sharding on v7x.
    # Fallback: a single full-extent block (always legal for any B).
    lb = 512 if (B % 512 == 0) else B
    grid = (B // lb,)

    out = pl.pallas_call(
        gate_ensemble_kernel,
        out_shape=jax.ShapeDtypeStruct((1, B), jnp.float32),
        grid=grid,
        in_specs=[
            pl.BlockSpec((lb, D_IN), lambda i: (i, 0)),          # x block
            pl.BlockSpec((lb, K), lambda i: (i, 0)),             # base block
            pl.BlockSpec((P_ROWS, P_COLS), lambda i: (0, 0)),    # params, resident
        ],
        out_specs=pl.BlockSpec((1, lb), lambda i: (0, i)),
        compiler_params=pltpu.CompilerParams(
            dimension_semantics=("parallel",)),                  # v7x: 2 TCs
    )(x.astype(jnp.float32), base.astype(jnp.float32), packed_params)

    # .view(-1) equivalent (metadata-only squeeze): (1, B) -> (B,)
    return out.reshape(-1)


def _xavier_uniform(key, fan_out, fan_in):
    # nn.Linear weight layout: (out_features, in_features)
    limit = (6.0 / (fan_in + fan_out)) ** 0.5
    return jax.random.uniform(key, (fan_out, fan_in), jnp.float32, -limit, limit)


if __name__ == "__main__":
    # B = 1024: large enough that the call is no longer pure dispatch/DMA
    # latency (review item #1), multiple of 256 for MXU/lane alignment.
    B = 1024
    key = jax.random.PRNGKey(0)
    kx, kb, kw0, kb0, kw1, kb1 = jax.random.split(key, 6)

    x = jax.random.normal(kx, (B, D_IN), jnp.float32)
    base = jax.random.normal(kb, (B, K), jnp.float32)

    # nn.Linear-shaped parameters: weight (out, in), bias (out,)
    w0 = _xavier_uniform(kw0, H, D_IN)
    b0 = 0.01 * jax.random.normal(kb0, (H,), jnp.float32)
    w1 = _xavier_uniform(kw1, K, H)
    b1 = 0.01 * jax.random.normal(kb1, (K,), jnp.float32)

    params = pack_params(w0, b0, w1, b1)          # packed once, reused per call

    y = gate_ensemble_forward(x, base, params)
    y = jax.block_until_ready(y)

    # Pure-JAX reference of the PyTorch forward (row-major layout).
    h_ref = jnp.maximum(jnp.dot(x, w0.T, precision=_HI) + b0, 0.0)
    g_ref = jnp.maximum(jnp.dot(h_ref, w1.T, precision=_HI) + b1, 0.0)
    y_ref = jnp.sum(g_ref * base, axis=1)

    assert y.shape == (B,)
    assert jnp.allclose(y, y_ref, atol=1e-4, rtol=1e-4), \
        float(jnp.max(jnp.abs(y - y_ref)))

    print("KERNEL_OK")
</pallas_src>

<mosaic_0001>
module attributes {stable_mosaic.version = 11 : i64} {
  func.func @gate_ensemble_kernel(%arg0: i32, %arg1: memref<512x32xf32, #tpu.memory_space<vmem>>, %arg2: memref<512x4xf32, #tpu.memory_space<vmem>>, %arg3: memref<24x128xf32, #tpu.memory_space<vmem>>, %arg4: memref<1x512xf32, #tpu.memory_space<vmem>>) attributes {dimension_semantics = [#tpu.dimension_semantics<parallel>], iteration_bounds = array<i64: 2>, scalar_prefetch = 0 : i64, scratch_operands = 0 : i64, tpu.core_type = #tpu.core_type<tc>, window_params = [{transform_indices = @transform_0, window_bounds = array<i64: 512, 32>}, {transform_indices = @transform_1, window_bounds = array<i64: 512, 4>}, {pipeline_mode = #tpu.pipeline_mode<synchronous>, transform_indices = @transform_2, window_bounds = array<i64: 24, 128>}, {transform_indices = @transform_3, window_bounds = array<i64: 1, 512>}]} {
    %c0 = arith.constant 0 : index
    %c0_0 = arith.constant 0 : index
    %0 = vector.load %arg3[%c0, %c0_0] : memref<24x128xf32, #tpu.memory_space<vmem>>, vector<16x32xf32>
    %c16 = arith.constant 16 : index
    %c0_1 = arith.constant 0 : index
    %1 = vector.load %arg3[%c16, %c0_1] : memref<24x128xf32, #tpu.memory_space<vmem>>, vector<4x16xf32>
    %c20 = arith.constant 20 : index
    %c0_2 = arith.constant 0 : index
    %2 = vector.load %arg3[%c20, %c0_2] : memref<24x128xf32, #tpu.memory_space<vmem>>, vector<4x4xf32>
    %c0_3 = arith.constant 0 : index
    %c32 = arith.constant 32 : index
    %3 = vector.load %arg3[%c0_3, %c32] : memref<24x128xf32, #tpu.memory_space<vmem>>, vector<16x1xf32>
    %c0_4 = arith.constant 0 : index
    %c33 = arith.constant 33 : index
    %4 = vector.load %arg3[%c0_4, %c33] : memref<24x128xf32, #tpu.memory_space<vmem>>, vector<4x1xf32>
    %c0_5 = arith.constant 0 : index
    %c0_6 = arith.constant 0 : index
    %5 = vector.load %arg1[%c0_5, %c0_6] : memref<512x32xf32, #tpu.memory_space<vmem>>, vector<512x32xf32>
    %c0_7 = arith.constant 0 : index
    %c0_8 = arith.constant 0 : index
    %6 = vector.load %arg2[%c0_7, %c0_8] : memref<512x4xf32, #tpu.memory_space<vmem>>, vector<512x4xf32>
    %cst = arith.constant dense<0.000000e+00> : vector<16x512xf32>
    %7 = tpu.matmul %0, %5, %cst {dimension_numbers = #tpu.dot_dimension_numbers<[1], [1], [0], [0], [0, 0, 1, 0], [], []>, precision = #tpu.contract_precision<fp32>} : vector<16x32xf32>, vector<512x32xf32>, vector<16x512xf32> -> vector<16x512xf32>
    %8 = vector.broadcast %3 : vector<16x1xf32> to vector<16x512xf32>
    %9 = arith.addf %7, %8 : vector<16x512xf32>
    %cst_9 = arith.constant 0.000000e+00 : f32
    %10 = vector.broadcast %cst_9 : f32 to vector<16x512xf32>
    %11 = arith.maximumf %9, %10 : vector<16x512xf32>
    %cst_10 = arith.constant dense<0.000000e+00> : vector<4x512xf32>
    %12 = tpu.matmul %1, %11, %cst_10 {dimension_numbers = #tpu.dot_dimension_numbers<[1], [0], [0], [1], [0, 0, 1, 1], [], []>, precision = #tpu.contract_precision<fp32>} : vector<4x16xf32>, vector<16x512xf32>, vector<4x512xf32> -> vector<4x512xf32>
    %13 = vector.broadcast %4 : vector<4x1xf32> to vector<4x512xf32>
    %14 = arith.addf %12, %13 : vector<4x512xf32>
    %cst_11 = arith.constant 0.000000e+00 : f32
    %15 = vector.broadcast %cst_11 : f32 to vector<4x512xf32>
    %16 = arith.maximumf %14, %15 : vector<4x512xf32>
    %cst_12 = arith.constant dense<0.000000e+00> : vector<4x512xf32>
    %17 = tpu.matmul %2, %6, %cst_12 {dimension_numbers = #tpu.dot_dimension_numbers<[1], [1], [0], [0], [0, 0, 1, 0], [], []>, precision = #tpu.contract_precision<fp32>} : vector<4x4xf32>, vector<512x4xf32>, vector<4x512xf32> -> vector<4x512xf32>
    %18 = arith.mulf %16, %17 : vector<4x512xf32>
    %cst_13 = arith.constant dense<0.000000e+00> : vector<512xf32>
    %19 = vector.multi_reduction <add>, %18, %cst_13 [0] : vector<4x512xf32> to vector<512xf32>
    %20 = vector.shape_cast %19 : vector<512xf32> to vector<1x512xf32>
    %c0_14 = arith.constant 0 : index
    %c0_15 = arith.constant 0 : index
    %21 = vector.load %arg4[%c0_14, %c0_15] : memref<1x512xf32, #tpu.memory_space<vmem>>, vector<1x512xf32>
    tpu.vector_store %arg4[%c0_14, %c0_15], %20 {strides = array<i32>} : memref<1x512xf32, #tpu.memory_space<vmem>>, vector<1x512xf32>,
    return
  }
  func.func @transform_0(%arg0: i32) -> (i32, i32) {
    %c0_i32 = arith.constant 0 : i32
    %c0_i32_0 = arith.constant 0 : i32
    return %arg0, %c0_i32 : i32, i32
  }
  func.func @transform_1(%arg0: i32) -> (i32, i32) {
    %c0_i32 = arith.constant 0 : i32
    %c0_i32_0 = arith.constant 0 : i32
    return %arg0, %c0_i32 : i32, i32
  }
  func.func @transform_2(%arg0: i32) -> (i32, i32) {
    %c0_i32 = arith.constant 0 : i32
    %c0_i32_0 = arith.constant 0 : i32
    %c0_i32_1 = arith.constant 0 : i32
    return %c0_i32, %c0_i32_0 : i32, i32
  }
  func.func @transform_3(%arg0: i32) -> (i32, i32) {
    %c0_i32 = arith.constant 0 : i32
    %c0_i32_0 = arith.constant 0 : i32
    return %c0_i32, %arg0 : i32, i32
  }
}

</mosaic_0001>

<llo_original>
// kernel: tpu_custom_call.1
$region0: #{tpu_custom_call.1}
  #allocation0 [shape = 'u32[]', space=smem, size = 0x4, offset = 0x4, fixed_abs, tag = 'smem constant byte address 0x4 - core index']
  #allocation1 [shape = 'u32[144,128]{1,0:T(1,128)}', space=vmem, size = 0x12000, scoped, tag = 'internal scratch']
  %s0 = inlined_call_operand.vmem [shape: f32[1024,32], index: 0, kind: input, shape index: {}]
  %s1 = inlined_call_operand.vmem [shape: f32[1024,4], index: 1, kind: input, shape index: {}]
  %s2 = inlined_call_operand.vmem [shape: f32[24,128], index: 2, kind: input, shape index: {}]
  %s3 = inlined_call_operand.hbm [shape: f32[1,1024], index: 3, kind: output, shape index: {}]
  %s4 = sld [smem:[#allocation0]]
  $region45: #{tpu_custom_call.1} parent=0
    _
  %s6 = ssub.s32 1, %s4
  %s7 = scalar_select 0, %s6, %s4
  $region1: #{tpu_custom_call.1} parent=0
    #allocation2 [shape = 'u8[4096]{0}', space=vmem, size = 0x1000, scoped, tag = 'output window, operand 0']
    #allocation3 [shape = 's32[2]{0}', space=sflag, size = 0x8, scoped, tag = 'scoped memory for tpu_custom_call.1']
    %8 = vsyncpa [#allocation3], 0
    %s9 = scalar_lea.sflag [#allocation3], 1
    %10 = vsyncpa %s9, 0
    loop: start=0, step=1, limit=4
    $region2: #{tpu_custom_call.1} parent=1 // loop_pre_header
      _
    $region3: #{tpu_custom_call.1} parent=1 // loop_header
      %s12 = sphi 0, %s16
      %p13 = scmp.ge.s32.totalorder %s12, 4
      %s22 = sphi 0, %s24
      %s25 = sphi 0, %s22
      %s26 = sphi 0, %s25
      %s42 = sphi 0, %s26
      %s48 = sphi 0, %s50
      %s51 = sphi 0, %s48
      %s52 = sphi 0, %s51
      %s68 = sphi 0, %s52
      %s72 = sphi 0, %s72
      %s74 = sphi 0, %s72
      %s75 = sphi 0, %s74
      %s89 = sphi 0, %s75
      %s95 = sphi 0, %s97
      %s98 = sphi 0, %s95
      %s99 = sphi 0, %s98
      %s115 = sphi 0, %s99
    $region4: #{tpu_custom_call.1} parent=1 // loop_header_branch
      %15 = sbr.rel (%p13) target = $region8
    $region5: #{tpu_custom_call.1} parent=1 // loop_body
      %s17 = ssub.s32 %s12, 1
      %s18 = ssub.s32 %s12, 2
      %s19 = sadd.s32 %s12, 1
      %s20 = ssub.s32 %s12, %s19
      %p21 = scmp.eq.s32.totalorder %s20, 0
      %s23 = sadd.s32 %s22, 1
      %s24 = scalar_select %p21, %s22, %s23
      %p27 = pneg %p21
      %p28 = scmp.eq.s32.totalorder %s12, 1
      %p29 = por %p27, %p28
      %p30 = scmp.ne.s32.totalorder %s22, %s25
      %p31 = scmp.eq.s32.totalorder %s12, 0
      %p32 = por %p30, %p31
      %p33 = scmp.ne.s32.totalorder %s22, %s25
      %p34 = scmp.eq.s32.totalorder %s17, 1
      %p35 = por %p33, %p34
      %p36 = scmp.ne.s32.totalorder %s25, %s26
      %p37 = scmp.eq.s32.totalorder %s17, 0
      %p38 = por %p36, %p37
      %p39 = scmp.ne.s32.totalorder %s25, %s26
      %p40 = scmp.eq.s32.totalorder %s18, 1
      %p41 = por %p39, %p40
      %p43 = scmp.ne.s32.totalorder %s26, %s42
      %p44 = scmp.eq.s32.totalorder %s18, 0
      %p45 = por %p43, %p44
      %s46 = ssub.s32 %s12, %s19
      %p47 = scmp.eq.s32.totalorder %s46, 0
      %s49 = sadd.s32 %s48, 1
      %s50 = scalar_select %p47, %s48, %s49
      %p53 = pneg %p47
      %p54 = scmp.eq.s32.totalorder %s12, 1
      %p55 = por %p53, %p54
      %p56 = scmp.ne.s32.totalorder %s48, %s51
      %p57 = scmp.eq.s32.totalorder %s12, 0
      %p58 = por %p56, %p57
      %p59 = scmp.ne.s32.totalorder %s48, %s51
      %p60 = scmp.eq.s32.totalorder %s17, 1
      %p61 = por %p59, %p60
      %p62 = scmp.ne.s32.totalorder %s51, %s52
      %p63 = scmp.eq.s32.totalorder %s17, 0
      %p64 = por %p62, %p63
      %p65 = scmp.ne.s32.totalorder %s51, %s52
      %p66 = scmp.eq.s32.totalorder %s18, 1
      %p67 = por %p65, %p66
      %p69 = scmp.ne.s32.totalorder %s52, %s68
      %p70 = scmp.eq.s32.totalorder %s18, 0
      %p71 = por %p69, %p70
      %s73 = sadd.s32 %s72, 1
      %p76 = scmp.eq.s32.totalorder %s12, 1
      %p77 = scmp.ne.s32.totalorder %s72, %s74
      %p78 = scmp.eq.s32.totalorder %s12, 0
      %p79 = por %p77, %p78
      %p80 = scmp.ne.s32.totalorder %s72, %s74
      %p81 = scmp.eq.s32.totalorder %s17, 1
      %p82 = por %p80, %p81
      %p83 = scmp.ne.s32.totalorder %s74, %s75
      %p84 = scmp.eq.s32.totalorder %s17, 0
      %p85 = por %p83, %p84
      %p86 = scmp.ne.s32.totalorder %s74, %s75
      %p87 = scmp.eq.s32.totalorder %s18, 1
      %p88 = por %p86, %p87
      %p90 = scmp.ne.s32.totalorder %s75, %s89
      %p91 = scmp.eq.s32.totalorder %s18, 0
      %p92 = por %p90, %p91
      %s93 = ssub.s32 %s12, %s19
      %p94 = scmp.eq.s32.totalorder %s93, 0
      %s96 = sadd.s32 %s95, 1
      %s97 = scalar_select %p94, %s95, %s96
      %p100 = pneg %p94
      %p101 = scmp.eq.s32.totalorder %s12, 1
      %p102 = por %p100, %p101
      %p103 = scmp.ne.s32.totalorder %s95, %s98
      %p104 = scmp.eq.s32.totalorder %s12, 0
      %p105 = por %p103, %p104
      %p106 = scmp.ne.s32.totalorder %s95, %s98
      %p107 = scmp.eq.s32.totalorder %s17, 1
      %p108 = por %p106, %p107
      %p109 = scmp.ne.s32.totalorder %s98, %s99
      %p110 = scmp.eq.s32.totalorder %s17, 0
      %p111 = por %p109, %p110
      %p112 = scmp.ne.s32.totalorder %s98, %s99
      %p113 = scmp.eq.s32.totalorder %s18, 1
      %p114 = por %p112, %p113
      %p116 = scmp.ne.s32.totalorder %s99, %s115
      %p117 = scmp.eq.s32.totalorder %s18, 0
      %p118 = por %p116, %p117
      %p119 = scmp.le.s32.totalorder 1, %s12
      %p120 = scmp.lt.s32.totalorder %s12, 3
      %p121 = pnand %p119, %p120
      %p122 = pneg %p121
      // Predicated region
      $region9: #{tpu_custom_call.1} parent=5 // pred_check
        _
      $region10: #{tpu_custom_call.1} parent=5 // pred_check_branch
        %124 = sbr.rel (%p121) target = $region12
      $region11: #{tpu_custom_call.1} parent=5 // pred_region
        %s125 = ssub.s32 %s12, 1
        // Predicated region
        $region13: #{tpu_custom_call.1} parent=11 // pred_check
          %p126 = pneg %p85
        $region14: #{tpu_custom_call.1} parent=11 // pred_check_branch
          %128 = sbr.rel (%p126) target = $region16
        $region15: #{tpu_custom_call.1} parent=11 // pred_region
          _
        $region16: #{tpu_custom_call.1} parent=11 // pred_fallthru
          _
      $region12: #{tpu_custom_call.1} parent=5 // pred_fallthru
        _
      %p129 = scmp.lt.s32.totalorder %s12, 2
      // Predicated region
      $region17: #{tpu_custom_call.1} parent=5 // pred_check
        %p130 = pneg %p129
      $region18: #{tpu_custom_call.1} parent=5 // pred_check_branch
        %132 = sbr.rel (%p130) target = $region20
      $region19: #{tpu_custom_call.1} parent=5 // pred_region
        // Predicated region
        $region21: #{tpu_custom_call.1} parent=19 // pred_check
          %p133 = pneg %p32
        $region22: #{tpu_custom_call.1} parent=19 // pred_check_branch
          %135 = sbr.rel (%p133) target = $region24
        $region23: #{tpu_custom_call.1} parent=19 // pred_region
          %s136 = smul.u32 64, %s12
          %p137 = scmp.lt.s32.totalorder %s136, 127
          %s138 = scalar_select %p137, %s136, 127
          %s139 = smul.addr %s138, 8
          %s140 = scalar_lea.vmem %s0, %s139
          %s141 = smul.u32 64, %s12
        $region24: #{tpu_custom_call.1} parent=19 // pred_fallthru
          _
        // Predicated region
        $region25: #{tpu_custom_call.1} parent=19 // pred_check
          %p142 = pneg %p58
        $region26: #{tpu_custom_call.1} parent=19 // pred_check_branch
          %144 = sbr.rel (%p142) target = $region28
        $region27: #{tpu_custom_call.1} parent=19 // pred_region
          %s145 = smul.u32 64, %s12
          %p146 = scmp.lt.s32.totalorder %s145, 127
          %s147 = scalar_select %p146, %s145, 127
          %s148 = smul.addr %s147, 8
          %s149 = scalar_lea.vmem %s1, %s148
          %s150 = smul.u32 64, %s12
        $region28: #{tpu_custom_call.1} parent=19 // pred_fallthru
          _
      $region20: #{tpu_custom_call.1} parent=5 // pred_fallthru
        _
      %p151 = scmp.le.s32.totalorder 1, %s12
      %p152 = scmp.lt.s32.totalorder %s12, 3
      %p153 = pnand %p151, %p152
      %p154 = pneg %p153
      // Predicated region
      $region29: #{tpu_custom_call.1} parent=5 // pred_check
        _
      $region30: #{tpu_custom_call.1} parent=5 // pred_check_branch
        %156 = sbr.rel (%p153) target = $region32
      $region31: #{tpu_custom_call.1} parent=5 // pred_region
        %s157 = ssub.s32 %s12, 1
        %s158 = smul.u32 64, %s17
        %p159 = scmp.lt.s32.totalorder %s158, 127
        %s160 = scalar_select %p159, %s158, 127
        %s161 = smul.addr %s160, 8
        %s162 = scalar_lea.vmem %s0, %s161
        %p163 = pneg %p38
        %p164 = pneg %p35
        %s165 = smul.u32 64, %s17
        %p166 = scmp.lt.s32.totalorder %s165, 127
        %s167 = scalar_select %p166, %s165, 127
        %s168 = smul.addr %s167, 8
        %s169 = scalar_lea.vmem %s1, %s168
        %p170 = pneg %p64
        %p171 = pneg %p61
        %p172 = pneg %p85
        %p173 = pneg %p82
        %p174 = pneg %p111
        %p175 = pneg %p108
        %s176 = sand.u32 %s98, 1
        %s177 = scalar_lea.sflag [#allocation3], %s176
        %s178 = sand.u32 %s98, 1
        %s179 = smul.addr %s178, 4
        %s180 = scalar_lea.vmem [#allocation2], %s179
        %s181 = smul.u32 64, %s17
        %p182 = scmp.lt.s32.totalorder %s181, 127
        %s183 = scalar_select %p182, %s181, 127
        %s184 = smul.addr %s183, 8
        %s185 = scalar_lea.vmem %s0, %s184
        %s186 = smul.u32 64, %s17
        %s187 = smul.u32 64, %s17
        %p188 = scmp.lt.s32.totalorder %s187, 127
        %s189 = scalar_select %p188, %s187, 127
        %s190 = smul.addr %s189, 8
        %s191 = scalar_lea.vmem %s1, %s190
        %s192 = smul.u32 64, %s17
        %s193 = smul.u32 4, %s17
        %v194 = vld [vmem:[%s2] sm:$0xff]
        %v195 = vld [vmem:[%s2 + $0x8] sm:$0xff]
        %v196 = vld [vmem:[%s2 + $0x10] sm:$0xf]
        %v197 = vld [vmem:[%s2 + $0x14] sm:$0xf]
        %v198 = vld [vmem:[%s2] sm:$0xf]
        %v199 = vld [vmem:[%s185] sm:$0xff]
        %v200 = vld [vmem:[%s185 + $0x8] sm:$0xff]
        %v201 = vld [vmem:[%s185 + $0x10] sm:$0xff]
        %v202 = vld [vmem:[%s185 + $0x18] sm:$0xff]
        %v203 = vld [vmem:[%s185 + $0x20] sm:$0xff]
        %v204 = vld [vmem:[%s185 + $0x28] sm:$0xff]
        %v205 = vld [vmem:[%s185 + $0x30] sm:$0xff]
        %v206 = vld [vmem:[%s185 + $0x38] sm:$0xff]
        %v207 = vld [vmem:[%s185 + $0x40] sm:$0xff]
        %v208 = vld [vmem:[%s185 + $0x48] sm:$0xff]
        %v209 = vld [vmem:[%s185 + $0x50] sm:$0xff]
        %v210 = vld [vmem:[%s185 + $0x58] sm:$0xff]
        %v211 = vld [vmem:[%s185 + $0x60] sm:$0xff]
        %v212 = vld [vmem:[%s185 + $0x68] sm:$0xff]
        %v213 = vld [vmem:[%s185 + $0x70] sm:$0xff]
        %v214 = vld [vmem:[%s185 + $0x78] sm:$0xff]
        %v215 = vld [vmem:[%s185 + $0x80] sm:$0xff]
        %v216 = vld [vmem:[%s185 + $0x88] sm:$0xff]
        %v217 = vld [vmem:[%s185 + $0x90] sm:$0xff]
        %v218 = vld [vmem:[%s185 + $0x98] sm:$0xff]
        %v219 = vld [vmem:[%s185 + $0xa0] sm:$0xff]
        %v220 = vld [vmem:[%s185 + $0xa8] sm:$0xff]
        %v221 = vld [vmem:[%s185 + $0xb0] sm:$0xff]
        %v222 = vld [vmem:[%s185 + $0xb8] sm:$0xff]
        %v223 = vld [vmem:[%s185 + $0xc0] sm:$0xff]
        %v224 = vld [vmem:[%s185 + $0xc8] sm:$0xff]
        %v225 = vld [vmem:[%s185 + $0xd0] sm:$0xff]
        %v226 = vld [vmem:[%s185 + $0xd8] sm:$0xff]
        %v227 = vld [vmem:[%s185 + $0xe0] sm:$0xff]
        %v228 = vld [vmem:[%s185 + $0xe8] sm:$0xff]
        %v229 = vld [vmem:[%s185 + $0xf0] sm:$0xff]
        %v230 = vld [vmem:[%s185 + $0xf8] sm:$0xff]
        %v231 = vld [vmem:[%s185 + $0x100] sm:$0xff]
        %v232 = vld [vmem:[%s185 + $0x108] sm:$0xff]
        %v233 = vld [vmem:[%s185 + $0x110] sm:$0xff]
        %v234 = vld [vmem:[%s185 + $0x118] sm:$0xff]
        %v235 = vld [vmem:[%s185 + $0x120] sm:$0xff]
        %v236 = vld [vmem:[%s185 + $0x128] sm:$0xff]
        %v237 = vld [vmem:[%s185 + $0x130] sm:$0xff]
        %v238 = vld [vmem:[%s185 + $0x138] sm:$0xff]
        %v239 = vld [vmem:[%s185 + $0x140] sm:$0xff]
        %v240 = vld [vmem:[%s185 + $0x148] sm:$0xff]
        %v241 = vld [vmem:[%s185 + $0x150] sm:$0xff]
        %v242 = vld [vmem:[%s185 + $0x158] sm:$0xff]
        %v243 = vld [vmem:[%s185 + $0x160] sm:$0xff]
        %v244 = vld [vmem:[%s185 + $0x168] sm:$0xff]
        %v245 = vld [vmem:[%s185 + $0x170] sm:$0xff]
        %v246 = vld [vmem:[%s185 + $0x178] sm:$0xff]
        %v247 = vld [vmem:[%s185 + $0x180] sm:$0xff]
        %v248 = vld [vmem:[%s185 + $0x188] sm:$0xff]
        %v249 = vld [vmem:[%s185 + $0x190] sm:$0xff]
        %v250 = vld [vmem:[%s185 + $0x198] sm:$0xff]
        %v251 = vld [vmem:[%s185 + $0x1a0] sm:$0xff]
        %v252 = vld [vmem:[%s185 + $0x1a8] sm:$0xff]
        %v253 = vld [vmem:[%s185 + $0x1b0] sm:$0xff]
        %v254 = vld [vmem:[%s185 + $0x1b8] sm:$0xff]
        %v255 = vld [vmem:[%s185 + $0x1c0] sm:$0xff]
        %v256 = vld [vmem:[%s185 + $0x1c8] sm:$0xff]
        %v257 = vld [vmem:[%s185 + $0x1d0] sm:$0xff]
        %v258 = vld [vmem:[%s185 + $0x1d8] sm:$0xff]
        %v259 = vld [vmem:[%s185 + $0x1e0] sm:$0xff]
        %v260 = vld [vmem:[%s185 + $0x1e8] sm:$0xff]
        %v261 = vld [vmem:[%s185 + $0x1f0] sm:$0xff]
        %v262 = vld [vmem:[%s185 + $0x1f8] sm:$0xff]
        %v263 = vld [vmem:[%s191] sm:$0xff]
        %v264 = vld [vmem:[%s191 + $0x8] sm:$0xff]
        %v265 = vld [vmem:[%s191 + $0x10] sm:$0xff]
        %v266 = vld [vmem:[%s191 + $0x18] sm:$0xff]
        %v267 = vld [vmem:[%s191 + $0x20] sm:$0xff]
        %v268 = vld [vmem:[%s191 + $0x28] sm:$0xff]
        %v269 = vld [vmem:[%s191 + $0x30] sm:$0xff]
        %v270 = vld [vmem:[%s191 + $0x38] sm:$0xff]
        %v271 = vld [vmem:[%s191 + $0x40] sm:$0xff]
        %v272 = vld [vmem:[%s191 + $0x48] sm:$0xff]
        %v273 = vld [vmem:[%s191 + $0x50] sm:$0xff]
        %v274 = vld [vmem:[%s191 + $0x58] sm:$0xff]
        %v275 = vld [vmem:[%s191 + $0x60] sm:$0xff]
        %v276 = vld [vmem:[%s191 + $0x68] sm:$0xff]
        %v277 = vld [vmem:[%s191 + $0x70] sm:$0xff]
        %v278 = vld [vmem:[%s191 + $0x78] sm:$0xff]
        %v279 = vld [vmem:[%s191 + $0x80] sm:$0xff]
        %v280 = vld [vmem:[%s191 + $0x88] sm:$0xff]
        %v281 = vld [vmem:[%s191 + $0x90] sm:$0xff]
        %v282 = vld [vmem:[%s191 + $0x98] sm:$0xff]
        %v283 = vld [vmem:[%s191 + $0xa0] sm:$0xff]
        %v284 = vld [vmem:[%s191 + $0xa8] sm:$0xff]
        %v285 = vld [vmem:[%s191 + $0xb0] sm:$0xff]
        %v286 = vld [vmem:[%s191 + $0xb8] sm:$0xff]
        %v287 = vld [vmem:[%s191 + $0xc0] sm:$0xff]
        %v288 = vld [vmem:[%s191 + $0xc8] sm:$0xff]
        %v289 = vld [vmem:[%s191 + $0xd0] sm:$0xff]
        %v290 = vld [vmem:[%s191 + $0xd8] sm:$0xff]
        %v291 = vld [vmem:[%s191 + $0xe0] sm:$0xff]
        %v292 = vld [vmem:[%s191 + $0xe8] sm:$0xff]
        %v293 = vld [vmem:[%s191 + $0xf0] sm:$0xff]
        %v294 = vld [vmem:[%s191 + $0xf8] sm:$0xff]
        %v295 = vld [vmem:[%s191 + $0x100] sm:$0xff]
        %v296 = vld [vmem:[%s191 + $0x108] sm:$0xff]
        %v297 = vld [vmem:[%s191 + $0x110] sm:$0xff]
        %v298 = vld [vmem:[%s191 + $0x118] sm:$0xff]
        %v299 = vld [vmem:[%s191 + $0x120] sm:$0xff]
        %v300 = vld [vmem:[%s191 + $0x128] sm:$0xff]
        %v301 = vld [vmem:[%s191 + $0x130] sm:$0xff]
        %v302 = vld [vmem:[%s191 + $0x138] sm:$0xff]
        %v303 = vld [vmem:[%s191 + $0x140] sm:$0xff]
        %v304 = vld [vmem:[%s191 + $0x148] sm:$0xff]
        %v305 = vld [vmem:[%s191 + $0x150] sm:$0xff]
        %v306 = vld [vmem:[%s191 + $0x158] sm:$0xff]
        %v307 = vld [vmem:[%s191 + $0x160] sm:$0xff]
        %v308 = vld [vmem:[%s191 + $0x168] sm:$0xff]
        %v309 = vld [vmem:[%s191 + $0x170] sm:$0xff]
        %v310 = vld [vmem:[%s191 + $0x178] sm:$0xff]
        %v311 = vld [vmem:[%s191 + $0x180] sm:$0xff]
        %v312 = vld [vmem:[%s191 + $0x188] sm:$0xff]
        %v313 = vld [vmem:[%s191 + $0x190] sm:$0xff]
        %v314 = vld [vmem:[%s191 + $0x198] sm:$0xff]
        %v315 = vld [vmem:[%s191 + $0x1a0] sm:$0xff]
        %v316 = vld [vmem:[%s191 + $0x1a8] sm:$0xff]
        %v317 = vld [vmem:[%s191 + $0x1b0] sm:$0xff]
        %v318 = vld [vmem:[%s191 + $0x1b8] sm:$0xff]
        %v319 = vld [vmem:[%s191 + $0x1c0] sm:$0xff]
        %v320 = vld [vmem:[%s191 + $0x1c8] sm:$0xff]
        %v321 = vld [vmem:[%s191 + $0x1d0] sm:$0xff]
        %v322 = vld [vmem:[%s191 + $0x1d8] sm:$0xff]
        %v323 = vld [vmem:[%s191 + $0x1e0] sm:$0xff]
        %v324 = vld [vmem:[%s191 + $0x1e8] sm:$0xff]
        %v325 = vld [vmem:[%s191 + $0x1f0] sm:$0xff]
        %v326 = vld [vmem:[%s191 + $0x1f8] sm:$0xff]
        %328 = vset.pattern.permute.xlu0 32
        %329 = vperm.xlu0 %328, %v194
        %v330 = vpop.permute.xlu0 %329
        %333 = vset.pattern.permute.xlu0 32
        %334 = vperm.xlu0 %333, %v195
        %v335 = vpop.permute.xlu0 %334
        %vm337 = vcmask 261120
        %v338 = vsel %vm337, %v194, 0
        %v340 = vsel %vm337, %v195, 0
        %v343 = vsel %vm337, %v199, 0
        %v346 = vsel %vm337, %v200, 0
        %v349 = vsel %vm337, %v201, 0
        %v352 = vsel %vm337, %v202, 0
        %v355 = vsel %vm337, %v203, 0
        %v358 = vsel %vm337, %v204, 0
        %v361 = vsel %vm337, %v205, 0
        %v364 = vsel %vm337, %v206, 0
        %v367 = vsel %vm337, %v207, 0
        %v370 = vsel %vm337, %v208, 0
        %v373 = vsel %vm337, %v209, 0
        %v376 = vsel %vm337, %v210, 0
        %v379 = vsel %vm337, %v211, 0
        %v382 = vsel %vm337, %v212, 0
        %v385 = vsel %vm337, %v213, 0
        %v388 = vsel %vm337, %v214, 0
        %v391 = vsel %vm337, %v215, 0
        %v394 = vsel %vm337, %v216, 0
        %v397 = vsel %vm337, %v217, 0
        %v400 = vsel %vm337, %v218, 0
        %v403 = vsel %vm337, %v219, 0
        %v406 = vsel %vm337, %v220, 0
        %v409 = vsel %vm337, %v221, 0
        %v412 = vsel %vm337, %v222, 0
        %v415 = vsel %vm337, %v223, 0
        %v418 = vsel %vm337, %v224, 0
        %v421 = vsel %vm337, %v225, 0
        %v424 = vsel %vm337, %v226, 0
        %v427 = vsel %vm337, %v227, 0
        %v430 = vsel %vm337, %v228, 0
        %v433 = vsel %vm337, %v229, 0
        %v436 = vsel %vm337, %v230, 0
        %v439 = vsel %vm337, %v231, 0
        %v442 = vsel %vm337, %v232, 0
        %v445 = vsel %vm337, %v233, 0
        %v448 = vsel %vm337, %v234, 0
        %v451 = vsel %vm337, %v235, 0
        %v454 = vsel %vm337, %v236, 0
        %v457 = vsel %vm337, %v237, 0
        %v460 = vsel %vm337, %v238, 0
        %v463 = vsel %vm337, %v239, 0
        %v466 = vsel %vm337, %v240, 0
        %v469 = vsel %vm337, %v241, 0
        %v472 = vsel %vm337, %v242, 0
        %v475 = vsel %vm337, %v243, 0
        %v478 = vsel %vm337, %v244, 0
        %v481 = vsel %vm337, %v245, 0
        %v484 = vsel %vm337, %v246, 0
        %v487 = vsel %vm337, %v247, 0
        %v490 = vsel %vm337, %v248, 0
        %v493 = vsel %vm337, %v249, 0
        %v496 = vsel %vm337, %v250, 0
        %v499 = vsel %vm337, %v251, 0
        %v502 = vsel %vm337, %v252, 0
        %v505 = vsel %vm337, %v253, 0
        %v508 = vsel %vm337, %v254, 0
        %v511 = vsel %vm337, %v255, 0
        %v514 = vsel %vm337, %v256, 0
        %v517 = vsel %vm337, %v257, 0
        %v520 = vsel %vm337, %v258, 0
        %v523 = vsel %vm337, %v259, 0
        %v526 = vsel %vm337, %v260, 0
        %v529 = vsel %vm337, %v261, 0
        %v532 = vsel %vm337, %v262, 0
        %534 = vmatprep.subr.mxu0 0.0
        %v535 = vand.u32 %v343, 4294901760
        %536 = vmatpush1.xpose.msra.mxu0 %v535
        %537 = vmatprep.subr.mxu0 0.0
        %v538 = vand.u32 %v346, 4294901760
        %539 = vmatpush1.xpose.msra.mxu0 %v538
        %540 = vmatprep.subr.mxu0 0.0
        %v541 = vand.u32 %v349, 4294901760
        %542 = vmatpush1.xpose.msra.mxu0 %v541
        %543 = vmatprep.subr.mxu0 0.0
        %v544 = vand.u32 %v352, 4294901760
        %545 = vmatpush1.xpose.msra.mxu0 %v544
        %546 = vmatprep.subr.mxu0 0.0
        %v547 = vand.u32 %v355, 4294901760
        %548 = vmatpush1.xpose.msra.mxu0 %v547
        %549 = vmatprep.subr.mxu0 0.0
        %v550 = vand.u32 %v358, 4294901760
        %551 = vmatpush1.xpose.msra.mxu0 %v550
        %552 = vmatprep.subr.mxu0 0.0
        %v553 = vand.u32 %v361, 4294901760
        %554 = vmatpush1.xpose.msra.mxu0 %v553
        %555 = vmatprep.subr.mxu0 0.0
        %v556 = vand.u32 %v364, 4294901760
        %557 = vmatpush1.xpose.msra.mxu0 %v556
        %558 = vmatprep.subr.mxu0 0.0
        %v559 = vand.u32 %v367, 4294901760
        %560 = vmatpush1.xpose.msra.mxu0 %v559
        %561 = vmatprep.subr.mxu0 0.0
        %v562 = vand.u32 %v370, 4294901760
        %563 = vmatpush1.xpose.msra.mxu0 %v562
        %564 = vmatprep.subr.mxu0 0.0
        %v565 = vand.u32 %v373, 4294901760
        %566 = vmatpush1.xpose.msra.mxu0 %v565
        %567 = vmatprep.subr.mxu0 0.0
        %v568 = vand.u32 %v376, 4294901760
        %569 = vmatpush1.xpose.msra.mxu0 %v568
        %570 = vmatprep.subr.mxu0 0.0
        %v571 = vand.u32 %v379, 4294901760
        %572 = vmatpush1.xpose.msra.mxu0 %v571
        %573 = vmatprep.subr.mxu0 0.0
        %v574 = vand.u32 %v382, 4294901760
        %575 = vmatpush1.xpose.msra.mxu0 %v574
        %576 = vmatprep.subr.mxu0 0.0
        %v577 = vand.u32 %v385, 4294901760
        %578 = vmatpush1.xpose.msra.mxu0 %v577
        %579 = vmatprep.subr.mxu0 0.0
        %v580 = vand.u32 %v388, 4294901760
        %581 = vmatpush1.xpose.msra.mxu0 %v580
        %582 = vmatprep.subr.mxu0 0.0
        %v583 = vand.u32 %v391, 4294901760
        %584 = vmatpush1.xpose.msra.mxu0 %v583
        %585 = vmatprep.subr.mxu0 0.0
        %v586 = vand.u32 %v394, 4294901760
        %587 = vmatpush1.xpose.msra.mxu0 %v586
        %588 = vmatprep.subr.mxu0 0.0
        %v589 = vand.u32 %v397, 4294901760
        %590 = vmatpush1.xpose.msra.mxu0 %v589
        %591 = vmatprep.subr.mxu0 0.0
        %v592 = vand.u32 %v400, 4294901760
        %593 = vmatpush1.xpose.msra.mxu0 %v592
        %594 = vmatprep.subr.mxu0 0.0
        %v595 = vand.u32 %v403, 4294901760
        %596 = vmatpush1.xpose.msra.mxu0 %v595
        %597 = vmatprep.subr.mxu0 0.0
        %v598 = vand.u32 %v406, 4294901760
        %599 = vmatpush1.xpose.msra.mxu0 %v598
        %600 = vmatprep.subr.mxu0 0.0
        %v601 = vand.u32 %v409, 4294901760
        %602 = vmatpush1.xpose.msra.mxu0 %v601
        %603 = vmatprep.subr.mxu0 0.0
        %v604 = vand.u32 %v412, 4294901760
        %605 = vmatpush1.xpose.msra.mxu0 %v604
        %606 = vmatprep.subr.mxu0 0.0
        %v607 = vand.u32 %v415, 4294901760
        %608 = vmatpush1.xpose.msra.mxu0 %v607
        %609 = vmatprep.subr.mxu0 0.0
        %v610 = vand.u32 %v418, 4294901760
        %611 = vmatpush1.xpose.msra.mxu0 %v610
        %612 = vmatprep.subr.mxu0 0.0
        %v613 = vand.u32 %v421, 4294901760
        %614 = vmatpush1.xpose.msra.mxu0 %v613
        %615 = vmatprep.subr.mxu0 0.0
        %v616 = vand.u32 %v424, 4294901760
        %617 = vmatpush1.xpose.msra.mxu0 %v616
        %618 = vmatprep.subr.mxu0 0.0
        %v619 = vand.u32 %v427, 4294901760
        %620 = vmatpush1.xpose.msra.mxu0 %v619
        %621 = vmatprep.subr.mxu0 0.0
        %v622 = vand.u32 %v430, 4294901760
        %623 = vmatpush1.xpose.msra.mxu0 %v622
        %624 = vmatprep.subr.mxu0 0.0
        %v625 = vand.u32 %v433, 4294901760
        %626 = vmatpush1.xpose.msra.mxu0 %v625
        %627 = vmatprep.subr.mxu0 0.0
        %v628 = vand.u32 %v436, 4294901760
        %629 = vmatpush1.xpose.msra.mxu0 %v628
        %630 = vmatprep.mubr.f32.mxu0 0.0
        %v631 = vand.u32 %v338, 4294901760
        %v632 = vsub.f32 %v338, %v631
        %v633 = vand.u32 %v632, 4294901760
        %v634 = vsub.f32 %v632, %v633
        %v635 = vand.u32 %v634, 4294901760
        %636 = vmatmul.mubr.f32.gmra.mrb[0].mxu0 %v635
        %v637 = vpop.f32.mrb[0].mxu0
        %v638 = vadd.f32 %v330, %v637
        %v639 = vpop.f32.mrb[0].mxu0
        %v640 = vadd.f32 %v330, %v639
        %641 = vmatprep.mubr.f32.mxu0 0.0
        %v642 = vand.u32 %v340, 4294901760
        %v643 = vsub.f32 %v340, %v642
        %v644 = vand.u32 %v643, 4294901760
        %v645 = vsub.f32 %v643, %v644
        %v646 = vand.u32 %v645, 4294901760
        %647 = vmatmul.mubr.f32.gmra.mrb[0].mxu0 %v646
        %v648 = vpop.f32.mrb[0].mxu0
        %v649 = vadd.f32 %v335, %v648
        %v650 = vpop.f32.mrb[0].mxu0
        %v651 = vadd.f32 %v335, %v650
        %652 = vdwg.mxu0
        %653 = vmatprep.subr.mxu0 0.0
        %v654 = vand.u32 %v343, 4294901760
        %v655 = vsub.f32 %v343, %v654
        %v656 = vand.u32 %v655, 4294901760
        %v657 = vsub.f32 %v655, %v656
        %v658 = vand.u32 %v657, 4294901760
        %659 = vmatpush1.xpose.msra.mxu0 %v658
        %660 = vmatprep.subr.mxu0 0.0
        %v661 = vand.u32 %v346, 4294901760
        %v662 = vsub.f32 %v346, %v661
        %v663 = vand.u32 %v662, 4294901760
        %v664 = vsub.f32 %v662, %v663
        %v665 = vand.u32 %v664, 4294901760
        %666 = vmatpush1.xpose.msra.mxu0 %v665
        %667 = vmatprep.subr.mxu0 0.0
        %v668 = vand.u32 %v349, 4294901760
        %v669 = vsub.f32 %v349, %v668
        %v670 = vand.u32 %v669, 4294901760
        %v671 = vsub.f32 %v669, %v670
        %v672 = vand.u32 %v671, 4294901760
        %673 = vmatpush1.xpose.msra.mxu0 %v672
        %674 = vmatprep.subr.mxu0 0.0
        %v675 = vand.u32 %v352, 4294901760
        %v676 = vsub.f32 %v352, %v675
        %v677 = vand.u32 %v676, 4294901760
        %v678 = vsub.f32 %v676, %v677
        %v679 = vand.u32 %v678, 4294901760
        %680 = vmatpush1.xpose.msra.mxu0 %v679
        %681 = vmatprep.subr.mxu0 0.0
        %v682 = vand.u32 %v355, 4294901760
        %v683 = vsub.f32 %v355, %v682
        %v684 = vand.u32 %v683, 4294901760
        %v685 = vsub.f32 %v683, %v684
        %v686 = vand.u32 %v685, 4294901760
        %687 = vmatpush1.xpose.msra.mxu0 %v686
        %688 = vmatprep.subr.mxu0 0.0
        %v689 = vand.u32 %v358, 4294901760
        %v690 = vsub.f32 %v358, %v689
        %v691 = vand.u32 %v690, 4294901760
        %v692 = vsub.f32 %v690, %v691
        %v693 = vand.u32 %v692, 4294901760
        %694 = vmatpush1.xpose.msra.mxu0 %v693
        %695 = vmatprep.subr.mxu0 0.0
        %v696 = vand.u32 %v361, 4294901760
        %v697 = vsub.f32 %v361, %v696
        %v698 = vand.u32 %v697, 4294901760
        %v699 = vsub.f32 %v697, %v698
        %v700 = vand.u32 %v699, 4294901760
        %701 = vmatpush1.xpose.msra.mxu0 %v700
        %702 = vmatprep.subr.mxu0 0.0
        %v703 = vand.u32 %v364, 4294901760
        %v704 = vsub.f32 %v364, %v703
        %v705 = vand.u32 %v704, 4294901760
        %v706 = vsub.f32 %v704, %v705
        %v707 = vand.u32 %v706, 4294901760
        %708 = vmatpush1.xpose.msra.mxu0 %v707
        %709 = vmatprep.subr.mxu0 0.0
        %v710 = vand.u32 %v367, 4294901760
        %v711 = vsub.f32 %v367, %v710
        %v712 = vand.u32 %v711, 4294901760
        %v713 = vsub.f32 %v711, %v712
        %v714 = vand.u32 %v713, 4294901760
        %715 = vmatpush1.xpose.msra.mxu0 %v714
        %716 = vmatprep.subr.mxu0 0.0
        %v717 = vand.u32 %v370, 4294901760
        %v718 = vsub.f32 %v370, %v717
        %v719 = vand.u32 %v718, 4294901760
        %v720 = vsub.f32 %v718, %v719
        %v721 = vand.u32 %v720, 4294901760
        %722 = vmatpush1.xpose.msra.mxu0 %v721
        %723 = vmatprep.subr.mxu0 0.0
        %v724 = vand.u32 %v373, 4294901760
        %v725 = vsub.f32 %v373, %v724
        %v726 = vand.u32 %v725, 4294901760
        %v727 = vsub.f32 %v725, %v726
        %v728 = vand.u32 %v727, 4294901760
        %729 = vmatpush1.xpose.msra.mxu0 %v728
        %730 = vmatprep.subr.mxu0 0.0
        %v731 = vand.u32 %v376, 4294901760
        %v732 = vsub.f32 %v376, %v731
        %v733 = vand.u32 %v732, 4294901760
        %v734 = vsub.f32 %v732, %v733
        %v735 = vand.u32 %v734, 4294901760
        %736 = vmatpush1.xpose.msra.mxu0 %v735
        %737 = vmatprep.subr.mxu0 0.0
        %v738 = vand.u32 %v379, 4294901760
        %v739 = vsub.f32 %v379, %v738
        %v740 = vand.u32 %v739, 4294901760
        %v741 = vsub.f32 %v739, %v740
        %v742 = vand.u32 %v741, 4294901760
        %743 = vmatpush1.xpose.msra.mxu0 %v742
        %744 = vmatprep.subr.mxu0 0.0
        %v745 = vand.u32 %v382, 4294901760
        %v746 = vsub.f32 %v382, %v745
        %v747 = vand.u32 %v746, 4294901760
        %v748 = vsub.f32 %v746, %v747
        %v749 = vand.u32 %v748, 4294901760
        %750 = vmatpush1.xpose.msra.mxu0 %v749
        %751 = vmatprep.subr.mxu0 0.0
        %v752 = vand.u32 %v385, 4294901760
        %v753 = vsub.f32 %v385, %v752
        %v754 = vand.u32 %v753, 4294901760
        %v755 = vsub.f32 %v753, %v754
        %v756 = vand.u32 %v755, 4294901760
        %757 = vmatpush1.xpose.msra.mxu0 %v756
        %758 = vmatprep.subr.mxu0 0.0
        %v759 = vand.u32 %v388, 4294901760
        %v760 = vsub.f32 %v388, %v759
        %v761 = vand.u32 %v760, 4294901760
        %v762 = vsub.f32 %v760, %v761
        %v763 = vand.u32 %v762, 4294901760
        %764 = vmatpush1.xpose.msra.mxu0 %v763
        %765 = vmatprep.subr.mxu0 0.0
        %v766 = vand.u32 %v391, 4294901760
        %v767 = vsub.f32 %v391, %v766
        %v768 = vand.u32 %v767, 4294901760
        %v769 = vsub.f32 %v767, %v768
        %v770 = vand.u32 %v769, 4294901760
        %771 = vmatpush1.xpose.msra.mxu0 %v770
        %772 = vmatprep.subr.mxu0 0.0
        %v773 = vand.u32 %v394, 4294901760
        %v774 = vsub.f32 %v394, %v773
        %v775 = vand.u32 %v774, 4294901760
        %v776 = vsub.f32 %v774, %v775
        %v777 = vand.u32 %v776, 4294901760
        %778 = vmatpush1.xpose.msra.mxu0 %v777
        %779 = vmatprep.subr.mxu0 0.0
        %v780 = vand.u32 %v397, 4294901760
        %v781 = vsub.f32 %v397, %v780
        %v782 = vand.u32 %v781, 4294901760
        %v783 = vsub.f32 %v781, %v782
        %v784 = vand.u32 %v783, 4294901760
        %785 = vmatpush1.xpose.msra.mxu0 %v784
        %786 = vmatprep.subr.mxu0 0.0
        %v787 = vand.u32 %v400, 4294901760
        %v788 = vsub.f32 %v400, %v787
        %v789 = vand.u32 %v788, 4294901760
        %v790 = vsub.f32 %v788, %v789
        %v791 = vand.u32 %v790, 4294901760
        %792 = vmatpush1.xpose.msra.mxu0 %v791
        %793 = vmatprep.subr.mxu0 0.0
        %v794 = vand.u32 %v403, 4294901760
        %v795 = vsub.f32 %v403, %v794
        %v796 = vand.u32 %v795, 4294901760
        %v797 = vsub.f32 %v795, %v796
        %v798 = vand.u32 %v797, 4294901760
        %799 = vmatpush1.xpose.msra.mxu0 %v798
        %800 = vmatprep.subr.mxu0 0.0
        %v801 = vand.u32 %v406, 4294901760
        %v802 = vsub.f32 %v406, %v801
        %v803 = vand.u32 %v802, 4294901760
        %v804 = vsub.f32 %v802, %v803
        %v805 = vand.u32 %v804, 4294901760
        %806 = vmatpush1.xpose.msra.mxu0 %v805
        %807 = vmatprep.subr.mxu0 0.0
        %v808 = vand.u32 %v409, 4294901760
        %v809 = vsub.f32 %v409, %v808
        %v810 = vand.u32 %v809, 4294901760
        %v811 = vsub.f32 %v809, %v810
        %v812 = vand.u32 %v811, 4294901760
        %813 = vmatpush1.xpose.msra.mxu0 %v812
        %814 = vmatprep.subr.mxu0 0.0
        %v815 = vand.u32 %v412, 4294901760
        %v816 = vsub.f32 %v412, %v815
        %v817 = vand.u32 %v816, 4294901760
        %v818 = vsub.f32 %v816, %v817
        %v819 = vand.u32 %v818, 4294901760
        %820 = vmatpush1.xpose.msra.mxu0 %v819
        %821 = vmatprep.subr.mxu0 0.0
        %v822 = vand.u32 %v415, 4294901760
        %v823 = vsub.f32 %v415, %v822
        %v824 = vand.u32 %v823, 4294901760
        %v825 = vsub.f32 %v823, %v824
        %v826 = vand.u32 %v825, 4294901760
        %827 = vmatpush1.xpose.msra.mxu0 %v826
        %828 = vmatprep.subr.mxu0 0.0
        %v829 = vand.u32 %v418, 4294901760
        %v830 = vsub.f32 %v418, %v829
        %v831 = vand.u32 %v830, 4294901760
        %v832 = vsub.f32 %v830, %v831
        %v833 = vand.u32 %v832, 4294901760
        %834 = vmatpush1.xpose.msra.mxu0 %v833
        %835 = vmatprep.subr.mxu0 0.0
        %v836 = vand.u32 %v421, 4294901760
        %v837 = vsub.f32 %v421, %v836
        %v838 = vand.u32 %v837, 4294901760
        %v839 = vsub.f32 %v837, %v838
        %v840 = vand.u32 %v839, 4294901760
        %841 = vmatpush1.xpose.msra.mxu0 %v840
        %842 = vmatprep.subr.mxu0 0.0
        %v843 = vand.u32 %v424, 4294901760
        %v844 = vsub.f32 %v424, %v843
        %v845 = vand.u32 %v844, 4294901760
        %v846 = vsub.f32 %v844, %v845
        %v847 = vand.u32 %v846, 4294901760
        %848 = vmatpush1.xpose.msra.mxu0 %v847
        %849 = vmatprep.subr.mxu0 0.0
        %v850 = vand.u32 %v427, 4294901760
        %v851 = vsub.f32 %v427, %v850
        %v852 = vand.u32 %v851, 4294901760
        %v853 = vsub.f32 %v851, %v852
        %v854 = vand.u32 %v853, 4294901760
        %855 = vmatpush1.xpose.msra.mxu0 %v854
        %856 = vmatprep.subr.mxu0 0.0
        %v857 = vand.u32 %v430, 4294901760
        %v858 = vsub.f32 %v430, %v857
        %v859 = vand.u32 %v858, 4294901760
        %v860 = vsub.f32 %v858, %v859
        %v861 = vand.u32 %v860, 4294901760
        %862 = vmatpush1.xpose.msra.mxu0 %v861
        %863 = vmatprep.subr.mxu0 0.0
        %v864 = vand.u32 %v433, 4294901760
        %v865 = vsub.f32 %v433, %v864
        %v866 = vand.u32 %v865, 4294901760
        %v867 = vsub.f32 %v865, %v866
        %v868 = vand.u32 %v867, 4294901760
        %869 = vmatpush1.xpose.msra.mxu0 %v868
        %870 = vmatprep.subr.mxu0 0.0
        %v871 = vand.u32 %v436, 4294901760
        %v872 = vsub.f32 %v436, %v871
        %v873 = vand.u32 %v872, 4294901760
        %v874 = vsub.f32 %v872, %v873
        %v875 = vand.u32 %v874, 4294901760
        %876 = vmatpush1.xpose.msra.mxu0 %v875
        %877 = vmatprep.mubr.f32.mxu0 0.0
        %v878 = vand.u32 %v338, 4294901760
        %879 = vmatmul.mubr.f32.gmra.mrb[0].mxu0 %v878
        %v880 = vpop.f32.mrb[0].mxu0
        %v881 = vadd.f32 %v638, %v880
        %v882 = vpop.f32.mrb[0].mxu0
        %v883 = vadd.f32 %v640, %v882
        %884 = vmatprep.mubr.f32.mxu0 0.0
        %v885 = vand.u32 %v340, 4294901760
        %886 = vmatmul.mubr.f32.gmra.mrb[0].mxu0 %v885
        %v887 = vpop.f32.mrb[0].mxu0
        %v888 = vadd.f32 %v649, %v887
        %v889 = vpop.f32.mrb[0].mxu0
        %v890 = vadd.f32 %v651, %v889
        %891 = vdwg.mxu0
        %892 = vmatprep.subr.mxu0 0.0
        %v893 = vand.u32 %v343, 4294901760
        %v894 = vsub.f32 %v343, %v893
        %895 = vmatpush1.xpose.msra.mxu0 %v894
        %896 = vmatprep.subr.mxu0 0.0
        %v897 = vand.u32 %v346, 4294901760
        %v898 = vsub.f32 %v346, %v897
        %899 = vmatpush1.xpose.msra.mxu0 %v898
        %900 = vmatprep.subr.mxu0 0.0
        %v901 = vand.u32 %v349, 4294901760
        %v902 = vsub.f32 %v349, %v901
        %903 = vmatpush1.xpose.msra.mxu0 %v902
        %904 = vmatprep.subr.mxu0 0.0
        %v905 = vand.u32 %v352, 4294901760
        %v906 = vsub.f32 %v352, %v905
        %907 = vmatpush1.xpose.msra.mxu0 %v906
        %908 = vmatprep.subr.mxu0 0.0
        %v909 = vand.u32 %v355, 4294901760
        %v910 = vsub.f32 %v355, %v909
        %911 = vmatpush1.xpose.msra.mxu0 %v910
        %912 = vmatprep.subr.mxu0 0.0
        %v913 = vand.u32 %v358, 4294901760
        %v914 = vsub.f32 %v358, %v913
        %915 = vmatpush1.xpose.msra.mxu0 %v914
        %916 = vmatprep.subr.mxu0 0.0
        %v917 = vand.u32 %v361, 4294901760
        %v918 = vsub.f32 %v361, %v917
        %919 = vmatpush1.xpose.msra.mxu0 %v918
        %920 = vmatprep.subr.mxu0 0.0
        %v921 = vand.u32 %v364, 4294901760
        %v922 = vsub.f32 %v364, %v921
        %923 = vmatpush1.xpose.msra.mxu0 %v922
        %924 = vmatprep.subr.mxu0 0.0
        %v925 = vand.u32 %v367, 4294901760
        %v926 = vsub.f32 %v367, %v925
        %927 = vmatpush1.xpose.msra.mxu0 %v926
        %928 = vmatprep.subr.mxu0 0.0
        %v929 = vand.u32 %v370, 4294901760
        %v930 = vsub.f32 %v370, %v929
        %931 = vmatpush1.xpose.msra.mxu0 %v930
        %932 = vmatprep.subr.mxu0 0.0
        %v933 = vand.u32 %v373, 4294901760
        %v934 = vsub.f32 %v373, %v933
        %935 = vmatpush1.xpose.msra.mxu0 %v934
        %936 = vmatprep.subr.mxu0 0.0
        %v937 = vand.u32 %v376, 4294901760
        %v938 = vsub.f32 %v376, %v937
        %939 = vmatpush1.xpose.msra.mxu0 %v938
        %940 = vmatprep.subr.mxu0 0.0
        %v941 = vand.u32 %v379, 4294901760
        %v942 = vsub.f32 %v379, %v941
        %943 = vmatpush1.xpose.msra.mxu0 %v942
        %944 = vmatprep.subr.mxu0 0.0
        %v945 = vand.u32 %v382, 4294901760
        %v946 = vsub.f32 %v382, %v945
        %947 = vmatpush1.xpose.msra.mxu0 %v946
        %948 = vmatprep.subr.mxu0 0.0
        %v949 = vand.u32 %v385, 4294901760
        %v950 = vsub.f32 %v385, %v949
        %951 = vmatpush1.xpose.msra.mxu0 %v950
        %952 = vmatprep.subr.mxu0 0.0
        %v953 = vand.u32 %v388, 4294901760
        %v954 = vsub.f32 %v388, %v953
        %955 = vmatpush1.xpose.msra.mxu0 %v954
        %956 = vmatprep.subr.mxu0 0.0
        %v957 = vand.u32 %v391, 4294901760
        %v958 = vsub.f32 %v391, %v957
        %959 = vmatpush1.xpose.msra.mxu0 %v958
        %960 = vmatprep.subr.mxu0 0.0
        %v961 = vand.u32 %v394, 4294901760
        %v962 = vsub.f32 %v394, %v961
        %963 = vmatpush1.xpose.msra.mxu0 %v962
        %964 = vmatprep.subr.mxu0 0.0
        %v965 = vand.u32 %v397, 4294901760
        %v966 = vsub.f32 %v397, %v965
        %967 = vmatpush1.xpose.msra.mxu0 %v966
        %968 = vmatprep.subr.mxu0 0.0
        %v969 = vand.u32 %v400, 4294901760
        %v970 = vsub.f32 %v400, %v969
        %971 = vmatpush1.xpose.msra.mxu0 %v970
        %972 = vmatprep.subr.mxu0 0.0
        %v973 = vand.u32 %v403, 4294901760
        %v974 = vsub.f32 %v403, %v973
        %975 = vmatpush1.xpose.msra.mxu0 %v974
        %976 = vmatprep.subr.mxu0 0.0
        %v977 = vand.u32 %v406, 4294901760
        %v978 = vsub.f32 %v406, %v977
        %979 = vmatpush1.xpose.msra.mxu0 %v978
        %980 = vmatprep.subr.mxu0 0.0
        %v981 = vand.u32 %v409, 4294901760
        %v982 = vsub.f32 %v409, %v981
        %983 = vmatpush1.xpose.msra.mxu0 %v982
        %984 = vmatprep.subr.mxu0 0.0
        %v985 = vand.u32 %v412, 4294901760
        %v986 = vsub.f32 %v412, %v985
        %987 = vmatpush1.xpose.msra.mxu0 %v986
        %988 = vmatprep.subr.mxu0 0.0
        %v989 = vand.u32 %v415, 4294901760
        %v990 = vsub.f32 %v415, %v989
        %991 = vmatpush1.xpose.msra.mxu0 %v990
        %992 = vmatprep.subr.mxu0 0.0
        %v993 = vand.u32 %v418, 4294901760
        %v994 = vsub.f32 %v418, %v993
        %995 = vmatpush1.xpose.msra.mxu0 %v994
        %996 = vmatprep.subr.mxu0 0.0
        %v997 = vand.u32 %v421, 4294901760
        %v998 = vsub.f32 %v421, %v997
        %999 = vmatpush1.xpose.msra.mxu0 %v998
        %1000 = vmatprep.subr.mxu0 0.0
        %v1001 = vand.u32 %v424, 4294901760
        %v1002 = vsub.f32 %v424, %v1001
        %1003 = vmatpush1.xpose.msra.mxu0 %v1002
        %1004 = vmatprep.subr.mxu0 0.0
        %v1005 = vand.u32 %v427, 4294901760
        %v1006 = vsub.f32 %v427, %v1005
        %1007 = vmatpush1.xpose.msra.mxu0 %v1006
        %1008 = vmatprep.subr.mxu0 0.0
        %v1009 = vand.u32 %v430, 4294901760
        %v1010 = vsub.f32 %v430, %v1009
        %1011 = vmatpush1.xpose.msra.mxu0 %v1010
        %1012 = vmatprep.subr.mxu0 0.0
        %v1013 = vand.u32 %v433, 4294901760
        %v1014 = vsub.f32 %v433, %v1013
        %1015 = vmatpush1.xpose.msra.mxu0 %v1014
        %1016 = vmatprep.subr.mxu0 0.0
        %v1017 = vand.u32 %v436, 4294901760
        %v1018 = vsub.f32 %v436, %v1017
        %1019 = vmatpush1.xpose.msra.mxu0 %v1018
        %1020 = vmatprep.mubr.f32.mxu0 0.0
        %v1021 = vand.u32 %v338, 4294901760
        %v1022 = vsub.f32 %v338, %v1021
        %1023 = vmatmul.mubr.f32.gmra.mrb[0].mxu0 %v1022
        %v1024 = vpop.f32.mrb[0].mxu0
        %v1025 = vadd.f32 %v881, %v1024
        %v1026 = vpop.f32.mrb[0].mxu0
        %v1027 = vadd.f32 %v883, %v1026
        %1028 = vmatprep.mubr.f32.mxu0 0.0
        %v1029 = vand.u32 %v340, 4294901760
        %v1030 = vsub.f32 %v340, %v1029
        %1031 = vmatmul.mubr.f32.gmra.mrb[0].mxu0 %v1030
        %v1032 = vpop.f32.mrb[0].mxu0
        %v1033 = vadd.f32 %v888, %v1032
        %v1034 = vpop.f32.mrb[0].mxu0
        %v1035 = vadd.f32 %v890, %v1034
        %1036 = vdwg.mxu0
        %1037 = vmatprep.subr.mxu0 0.0
        %v1038 = vand.u32 %v343, 4294901760
        %1039 = vmatpush1.xpose.msra.mxu0 %v1038
        %1040 = vmatprep.subr.mxu0 0.0
        %v1041 = vand.u32 %v346, 4294901760
        %1042 = vmatpush1.xpose.msra.mxu0 %v1041
        %1043 = vmatprep.subr.mxu0 0.0
        %v1044 = vand.u32 %v349, 4294901760
        %1045 = vmatpush1.xpose.msra.mxu0 %v1044
        %1046 = vmatprep.subr.mxu0 0.0
        %v1047 = vand.u32 %v352, 4294901760
        %1048 = vmatpush1.xpose.msra.mxu0 %v1047
        %1049 = vmatprep.subr.mxu0 0.0
        %v1050 = vand.u32 %v355, 4294901760
        %1051 = vmatpush1.xpose.msra.mxu0 %v1050
        %1052 = vmatprep.subr.mxu0 0.0
        %v1053 = vand.u32 %v358, 4294901760
        %1054 = vmatpush1.xpose.msra.mxu0 %v1053
        %1055 = vmatprep.subr.mxu0 0.0
        %v1056 = vand.u32 %v361, 4294901760
        %1057 = vmatpush1.xpose.msra.mxu0 %v1056
        %1058 = vmatprep.subr.mxu0 0.0
        %v1059 = vand.u32 %v364, 4294901760
        %1060 = vmatpush1.xpose.msra.mxu0 %v1059
        %1061 = vmatprep.subr.mxu0 0.0
        %v1062 = vand.u32 %v367, 4294901760
        %1063 = vmatpush1.xpose.msra.mxu0 %v1062
        %1064 = vmatprep.subr.mxu0 0.0
        %v1065 = vand.u32 %v370, 4294901760
        %1066 = vmatpush1.xpose.msra.mxu0 %v1065
        %1067 = vmatprep.subr.mxu0 0.0
        %v1068 = vand.u32 %v373, 4294901760
        %1069 = vmatpush1.xpose.msra.mxu0 %v1068
        %1070 = vmatprep.subr.mxu0 0.0
        %v1071 = vand.u32 %v376, 4294901760
        %1072 = vmatpush1.xpose.msra.mxu0 %v1071
        %1073 = vmatprep.subr.mxu0 0.0
        %v1074 = vand.u32 %v379, 4294901760
        %1075 = vmatpush1.xpose.msra.mxu0 %v1074
        %1076 = vmatprep.subr.mxu0 0.0
        %v1077 = vand.u32 %v382, 4294901760
        %1078 = vmatpush1.xpose.msra.mxu0 %v1077
        %1079 = vmatprep.subr.mxu0 0.0
        %v1080 = vand.u32 %v385, 4294901760
        %1081 = vmatpush1.xpose.msra.mxu0 %v1080
        %1082 = vmatprep.subr.mxu0 0.0
        %v1083 = vand.u32 %v388, 4294901760
        %1084 = vmatpush1.xpose.msra.mxu0 %v1083
        %1085 = vmatprep.subr.mxu0 0.0
        %v1086 = vand.u32 %v391, 4294901760
        %1087 = vmatpush1.xpose.msra.mxu0 %v1086
        %1088 = vmatprep.subr.mxu0 0.0
        %v1089 = vand.u32 %v394, 4294901760
        %1090 = vmatpush1.xpose.msra.mxu0 %v1089
        %1091 = vmatprep.subr.mxu0 0.0
        %v1092 = vand.u32 %v397, 4294901760
        %1093 = vmatpush1.xpose.msra.mxu0 %v1092
        %1094 = vmatprep.subr.mxu0 0.0
        %v1095 = vand.u32 %v400, 4294901760
        %1096 = vmatpush1.xpose.msra.mxu0 %v1095
        %1097 = vmatprep.subr.mxu0 0.0
        %v1098 = vand.u32 %v403, 4294901760
        %1099 = vmatpush1.xpose.msra.mxu0 %v1098
        %1100 = vmatprep.subr.mxu0 0.0
        %v1101 = vand.u32 %v406, 4294901760
        %1102 = vmatpush1.xpose.msra.mxu0 %v1101
        %1103 = vmatprep.subr.mxu0 0.0
        %v1104 = vand.u32 %v409, 4294901760
        %1105 = vmatpush1.xpose.msra.mxu0 %v1104
        %1106 = vmatprep.subr.mxu0 0.0
        %v1107 = vand.u32 %v412, 4294901760
        %1108 = vmatpush1.xpose.msra.mxu0 %v1107
        %1109 = vmatprep.subr.mxu0 0.0
        %v1110 = vand.u32 %v415, 4294901760
        %1111 = vmatpush1.xpose.msra.mxu0 %v1110
        %1112 = vmatprep.subr.mxu0 0.0
        %v1113 = vand.u32 %v418, 4294901760
        %1114 = vmatpush1.xpose.msra.mxu0 %v1113
        %1115 = vmatprep.subr.mxu0 0.0
        %v1116 = vand.u32 %v421, 4294901760
        %1117 = vmatpush1.xpose.msra.mxu0 %v1116
        %1118 = vmatprep.subr.mxu0 0.0
        %v1119 = vand.u32 %v424, 4294901760
        %1120 = vmatpush1.xpose.msra.mxu0 %v1119
        %1121 = vmatprep.subr.mxu0 0.0
        %v1122 = vand.u32 %v427, 4294901760
        %1123 = vmatpush1.xpose.msra.mxu0 %v1122
        %1124 = vmatprep.subr.mxu0 0.0
        %v1125 = vand.u32 %v430, 4294901760
        %1126 = vmatpush1.xpose.msra.mxu0 %v1125
        %1127 = vmatprep.subr.mxu0 0.0
        %v1128 = vand.u32 %v433, 4294901760
        %1129 = vmatpush1.xpose.msra.mxu0 %v1128
        %1130 = vmatprep.subr.mxu0 0.0
        %v1131 = vand.u32 %v436, 4294901760
        %1132 = vmatpush1.xpose.msra.mxu0 %v1131
        %1133 = vmatprep.mubr.f32.mxu0 0.0
        %v1134 = vand.u32 %v338, 4294901760
        %v1135 = vsub.f32 %v338, %v1134
        %v1136 = vand.u32 %v1135, 4294901760
        %1137 = vmatmul.mubr.f32.gmra.mrb[0].mxu0 %v1136
        %v1138 = vpop.f32.mrb[0].mxu0
        %v1139 = vadd.f32 %v1025, %v1138
        %v1140 = vpop.f32.mrb[0].mxu0
        %v1141 = vadd.f32 %v1027, %v1140
        %1142 = vmatprep.mubr.f32.mxu0 0.0
        %v1143 = vand.u32 %v340, 4294901760
        %v1144 = vsub.f32 %v340, %v1143
        %v1145 = vand.u32 %v1144, 4294901760
        %1146 = vmatmul.mubr.f32.gmra.mrb[0].mxu0 %v1145
        %v1147 = vpop.f32.mrb[0].mxu0
        %v1148 = vadd.f32 %v1033, %v1147
        %v1149 = vpop.f32.mrb[0].mxu0
        %v1150 = vadd.f32 %v1035, %v1149
        %1151 = vdwg.mxu0
        %1152 = vmatprep.subr.mxu0 0.0
        %v1153 = vand.u32 %v343, 4294901760
        %v1154 = vsub.f32 %v343, %v1153
        %v1155 = vand.u32 %v1154, 4294901760
        %1156 = vmatpush1.xpose.msra.mxu0 %v1155
        %1157 = vmatprep.subr.mxu0 0.0
        %v1158 = vand.u32 %v346, 4294901760
        %v1159 = vsub.f32 %v346, %v1158
        %v1160 = vand.u32 %v1159, 4294901760
        %1161 = vmatpush1.xpose.msra.mxu0 %v1160
        %1162 = vmatprep.subr.mxu0 0.0
        %v1163 = vand.u32 %v349, 4294901760
        %v1164 = vsub.f32 %v349, %v1163
        %v1165 = vand.u32 %v1164, 4294901760
        %1166 = vmatpush1.xpose.msra.mxu0 %v1165
        %1167 = vmatprep.subr.mxu0 0.0
        %v1168 = vand.u32 %v352, 4294901760
        %v1169 = vsub.f32 %v352, %v1168
        %v1170 = vand.u32 %v1169, 4294901760
        %1171 = vmatpush1.xpose.msra.mxu0 %v1170
        %1172 = vmatprep.subr.mxu0 0.0
        %v1173 = vand.u32 %v355, 4294901760
        %v1174 = vsub.f32 %v355, %v1173
        %v1175 = vand.u32 %v1174, 4294901760
        %1176 = vmatpush1.xpose.msra.mxu0 %v1175
        %1177 = vmatprep.subr.mxu0 0.0
        %v1178 = vand.u32 %v358, 4294901760
        %v1179 = vsub.f32 %v358, %v1178
        %v1180 = vand.u32 %v1179, 4294901760
        %1181 = vmatpush1.xpose.msra.mxu0 %v1180
        %1182 = vmatprep.subr.mxu0 0.0
        %v1183 = vand.u32 %v361, 4294901760
        %v1184 = vsub.f32 %v361, %v1183
        %v1185 = vand.u32 %v1184, 4294901760
        %1186 = vmatpush1.xpose.msra.mxu0 %v1185
        %1187 = vmatprep.subr.mxu0 0.0
        %v1188 = vand.u32 %v364, 4294901760
        %v1189 = vsub.f32 %v364, %v1188
        %v1190 = vand.u32 %v1189, 4294901760
        %1191 = vmatpush1.xpose.msra.mxu0 %v1190
        %1192 = vmatprep.subr.mxu0 0.0
        %v1193 = vand.u32 %v367, 4294901760
        %v1194 = vsub.f32 %v367, %v1193
        %v1195 = vand.u32 %v1194, 4294901760
        %1196 = vmatpush1.xpose.msra.mxu0 %v1195
        %1197 = vmatprep.subr.mxu0 0.0
        %v1198 = vand.u32 %v370, 4294901760
        %v1199 = vsub.f32 %v370, %v1198
        %v1200 = vand.u32 %v1199, 4294901760
        %1201 = vmatpush1.xpose.msra.mxu0 %v1200
        %1202 = vmatprep.subr.mxu0 0.0
        %v1203 = vand.u32 %v373, 4294901760
        %v1204 = vsub.f32 %v373, %v1203
        %v1205 = vand.u32 %v1204, 4294901760
        %1206 = vmatpush1.xpose.msra.mxu0 %v1205
        %1207 = vmatprep.subr.mxu0 0.0
        %v1208 = vand.u32 %v376, 4294901760
        %v1209 = vsub.f32 %v376, %v1208
        %v1210 = vand.u32 %v1209, 4294901760
        %1211 = vmatpush1.xpose.msra.mxu0 %v1210
        %1212 = vmatprep.subr.mxu0 0.0
        %v1213 = vand.u32 %v379, 4294901760
        %v1214 = vsub.f32 %v379, %v1213
        %v1215 = vand.u32 %v1214, 4294901760
        %1216 = vmatpush1.xpose.msra.mxu0 %v1215
        %1217 = vmatprep.subr.mxu0 0.0
        %v1218 = vand.u32 %v382, 4294901760
        %v1219 = vsub.f32 %v382, %v1218
        %v1220 = vand.u32 %v1219, 4294901760
        %1221 = vmatpush1.xpose.msra.mxu0 %v1220
        %1222 = vmatprep.subr.mxu0 0.0
        %v1223 = vand.u32 %v385, 4294901760
        %v1224 = vsub.f32 %v385, %v1223
        %v1225 = vand.u32 %v1224, 4294901760
        %1226 = vmatpush1.xpose.msra.mxu0 %v1225
        %1227 = vmatprep.subr.mxu0 0.0
        %v1228 = vand.u32 %v388, 4294901760
        %v1229 = vsub.f32 %v388, %v1228
        %v1230 = vand.u32 %v1229, 4294901760
        %1231 = vmatpush1.xpose.msra.mxu0 %v1230
        %1232 = vmatprep.subr.mxu0 0.0
        %v1233 = vand.u32 %v391, 4294901760
        %v1234 = vsub.f32 %v391, %v1233
        %v1235 = vand.u32 %v1234, 4294901760
        %1236 = vmatpush1.xpose.msra.mxu0 %v1235
        %1237 = vmatprep.subr.mxu0 0.0
        %v1238 = vand.u32 %v394, 4294901760
        %v1239 = vsub.f32 %v394, %v1238
        %v1240 = vand.u32 %v1239, 4294901760
        %1241 = vmatpush1.xpose.msra.mxu0 %v1240
        %1242 = vmatprep.subr.mxu0 0.0
        %v1243 = vand.u32 %v397, 4294901760
        %v1244 = vsub.f32 %v397, %v1243
        %v1245 = vand.u32 %v1244, 4294901760
        %1246 = vmatpush1.xpose.msra.mxu0 %v1245
        %1247 = vmatprep.subr.mxu0 0.0
        %v1248 = vand.u32 %v400, 4294901760
        %v1249 = vsub.f32 %v400, %v1248
        %v1250 = vand.u32 %v1249, 4294901760
        %1251 = vmatpush1.xpose.msra.mxu0 %v1250
        %1252 = vmatprep.subr.mxu0 0.0
        %v1253 = vand.u32 %v403, 4294901760
        %v1254 = vsub.f32 %v403, %v1253
        %v1255 = vand.u32 %v1254, 4294901760
        %1256 = vmatpush1.xpose.msra.mxu0 %v1255
        %1257 = vmatprep.subr.mxu0 0.0
        %v1258 = vand.u32 %v406, 4294901760
        %v1259 = vsub.f32 %v406, %v1258
        %v1260 = vand.u32 %v1259, 4294901760
        %1261 = vmatpush1.xpose.msra.mxu0 %v1260
        %1262 = vmatprep.subr.mxu0 0.0
        %v1263 = vand.u32 %v409, 4294901760
        %v1264 = vsub.f32 %v409, %v1263
        %v1265 = vand.u32 %v1264, 4294901760
        %1266 = vmatpush1.xpose.msra.mxu0 %v1265
        %1267 = vmatprep.subr.mxu0 0.0
        %v1268 = vand.u32 %v412, 4294901760
        %v1269 = vsub.f32 %v412, %v1268
        %v1270 = vand.u32 %v1269, 4294901760
        %1271 = vmatpush1.xpose.msra.mxu0 %v1270
        %1272 = vmatprep.subr.mxu0 0.0
        %v1273 = vand.u32 %v415, 4294901760
        %v1274 = vsub.f32 %v415, %v1273
        %v1275 = vand.u32 %v1274, 4294901760
        %1276 = vmatpush1.xpose.msra.mxu0 %v1275
        %1277 = vmatprep.subr.mxu0 0.0
        %v1278 = vand.u32 %v418, 4294901760
        %v1279 = vsub.f32 %v418, %v1278
        %v1280 = vand.u32 %v1279, 4294901760
        %1281 = vmatpush1.xpose.msra.mxu0 %v1280
        %1282 = vmatprep.subr.mxu0 0.0
        %v1283 = vand.u32 %v421, 4294901760
        %v1284 = vsub.f32 %v421, %v1283
        %v1285 = vand.u32 %v1284, 4294901760
        %1286 = vmatpush1.xpose.msra.mxu0 %v1285
        %1287 = vmatprep.subr.mxu0 0.0
        %v1288 = vand.u32 %v424, 4294901760
        %v1289 = vsub.f32 %v424, %v1288
        %v1290 = vand.u32 %v1289, 4294901760
        %1291 = vmatpush1.xpose.msra.mxu0 %v1290
        %1292 = vmatprep.subr.mxu0 0.0
        %v1293 = vand.u32 %v427, 4294901760
        %v1294 = vsub.f32 %v427, %v1293
        %v1295 = vand.u32 %v1294, 4294901760
        %1296 = vmatpush1.xpose.msra.mxu0 %v1295
        %1297 = vmatprep.subr.mxu0 0.0
        %v1298 = vand.u32 %v430, 4294901760
        %v1299 = vsub.f32 %v430, %v1298
        %v1300 = vand.u32 %v1299, 4294901760
        %1301 = vmatpush1.xpose.msra.mxu0 %v1300
        %1302 = vmatprep.subr.mxu0 0.0
        %v1303 = vand.u32 %v433, 4294901760
        %v1304 = vsub.f32 %v433, %v1303
        %v1305 = vand.u32 %v1304, 4294901760
        %1306 = vmatpush1.xpose.msra.mxu0 %v1305
        %1307 = vmatprep.subr.mxu0 0.0
        %v1308 = vand.u32 %v436, 4294901760
        %v1309 = vsub.f32 %v436, %v1308
        %v1310 = vand.u32 %v1309, 4294901760
        %1311 = vmatpush1.xpose.msra.mxu0 %v1310
        %1312 = vmatprep.mubr.f32.mxu0 0.0
        %v1313 = vand.u32 %v338, 4294901760
        %1314 = vmatmul.mubr.f32.gmra.mrb[0].mxu0 %v1313
        %v1315 = vpop.f32.mrb[0].mxu0
        %v1316 = vadd.f32 %v1139, %v1315
        %v1317 = vpop.f32.mrb[0].mxu0
        %v1318 = vadd.f32 %v1141, %v1317
        %1319 = vmatprep.mubr.f32.mxu0 0.0
        %v1320 = vand.u32 %v340, 4294901760
        %1321 = vmatmul.mubr.f32.gmra.mrb[0].mxu0 %v1320
        %v1322 = vpop.f32.mrb[0].mxu0
        %v1323 = vadd.f32 %v1148, %v1322
        %v1324 = vpop.f32.mrb[0].mxu0
        %v1325 = vadd.f32 %v1150, %v1324
        %1326 = vdwg.mxu0
        %1327 = vmatprep.subr.mxu0 0.0
        %v1328 = vand.u32 %v343, 4294901760
        %1329 = vmatpush1.xpose.msra.mxu0 %v1328
        %1330 = vmatprep.subr.mxu0 0.0
        %v1331 = vand.u32 %v346, 4294901760
        %1332 = vmatpush1.xpose.msra.mxu0 %v1331
        %1333 = vmatprep.subr.mxu0 0.0
        %v1334 = vand.u32 %v349, 4294901760
        %1335 = vmatpush1.xpose.msra.mxu0 %v1334
        %1336 = vmatprep.subr.mxu0 0.0
        %v1337 = vand.u32 %v352, 4294901760
        %1338 = vmatpush1.xpose.msra.mxu0 %v1337
        %1339 = vmatprep.subr.mxu0 0.0
        %v1340 = vand.u32 %v355, 4294901760
        %1341 = vmatpush1.xpose.msra.mxu0 %v1340
        %1342 = vmatprep.subr.mxu0 0.0
        %v1343 = vand.u32 %v358, 4294901760
        %1344 = vmatpush1.xpose.msra.mxu0 %v1343
        %1345 = vmatprep.subr.mxu0 0.0
        %v1346 = vand.u32 %v361, 4294901760
        %1347 = vmatpush1.xpose.msra.mxu0 %v1346
        %1348 = vmatprep.subr.mxu0 0.0
        %v1349 = vand.u32 %v364, 4294901760
        %1350 = vmatpush1.xpose.msra.mxu0 %v1349
        %1351 = vmatprep.subr.mxu0 0.0
        %v1352 = vand.u32 %v367, 4294901760
        %1353 = vmatpush1.xpose.msra.mxu0 %v1352
        %1354 = vmatprep.subr.mxu0 0.0
        %v1355 = vand.u32 %v370, 4294901760
        %1356 = vmatpush1.xpose.msra.mxu0 %v1355
        %1357 = vmatprep.subr.mxu0 0.0
        %v1358 = vand.u32 %v373, 4294901760
        %1359 = vmatpush1.xpose.msra.mxu0 %v1358
        %1360 = vmatprep.subr.mxu0 0.0
        %v1361 = vand.u32 %v376, 4294901760
        %1362 = vmatpush1.xpose.msra.mxu0 %v1361
        %1363 = vmatprep.subr.mxu0 0.0
        %v1364 = vand.u32 %v379, 4294901760
        %1365 = vmatpush1.xpose.msra.mxu0 %v1364
        %1366 = vmatprep.subr.mxu0 0.0
        %v1367 = vand.u32 %v382, 4294901760
        %1368 = vmatpush1.xpose.msra.mxu0 %v1367
        %1369 = vmatprep.subr.mxu0 0.0
        %v1370 = vand.u32 %v385, 4294901760
        %1371 = vmatpush1.xpose.msra.mxu0 %v1370
        %1372 = vmatprep.subr.mxu0 0.0
        %v1373 = vand.u32 %v388, 4294901760
        %1374 = vmatpush1.xpose.msra.mxu0 %v1373
        %1375 = vmatprep.subr.mxu0 0.0
        %v1376 = vand.u32 %v391, 4294901760
        %1377 = vmatpush1.xpose.msra.mxu0 %v1376
        %1378 = vmatprep.subr.mxu0 0.0
        %v1379 = vand.u32 %v394, 4294901760
        %1380 = vmatpush1.xpose.msra.mxu0 %v1379
        %1381 = vmatprep.subr.mxu0 0.0
        %v1382 = vand.u32 %v397, 4294901760
        %1383 = vmatpush1.xpose.msra.mxu0 %v1382
        %1384 = vmatprep.subr.mxu0 0.0
        %v1385 = vand.u32 %v400, 4294901760
        %1386 = vmatpush1.xpose.msra.mxu0 %v1385
        %1387 = vmatprep.subr.mxu0 0.0
        %v1388 = vand.u32 %v403, 4294901760
        %1389 = vmatpush1.xpose.msra.mxu0 %v1388
        %1390 = vmatprep.subr.mxu0 0.0
        %v1391 = vand.u32 %v406, 4294901760
        %1392 = vmatpush1.xpose.msra.mxu0 %v1391
        %1393 = vmatprep.subr.mxu0 0.0
        %v1394 = vand.u32 %v409, 4294901760
        %1395 = vmatpush1.xpose.msra.mxu0 %v1394
        %1396 = vmatprep.subr.mxu0 0.0
        %v1397 = vand.u32 %v412, 4294901760
        %1398 = vmatpush1.xpose.msra.mxu0 %v1397
        %1399 = vmatprep.subr.mxu0 0.0
        %v1400 = vand.u32 %v415, 4294901760
        %1401 = vmatpush1.xpose.msra.mxu0 %v1400
        %1402 = vmatprep.subr.mxu0 0.0
        %v1403 = vand.u32 %v418, 4294901760
        %1404 = vmatpush1.xpose.msra.mxu0 %v1403
        %1405 = vmatprep.subr.mxu0 0.0
        %v1406 = vand.u32 %v421, 4294901760
        %1407 = vmatpush1.xpose.msra.mxu0 %v1406
        %1408 = vmatprep.subr.mxu0 0.0
        %v1409 = vand.u32 %v424, 4294901760
        %1410 = vmatpush1.xpose.msra.mxu0 %v1409
        %1411 = vmatprep.subr.mxu0 0.0
        %v1412 = vand.u32 %v427, 4294901760
        %1413 = vmatpush1.xpose.msra.mxu0 %v1412
        %1414 = vmatprep.subr.mxu0 0.0
        %v1415 = vand.u32 %v430, 4294901760
        %1416 = vmatpush1.xpose.msra.mxu0 %v1415
        %1417 = vmatprep.subr.mxu0 0.0
        %v1418 = vand.u32 %v433, 4294901760
        %1419 = vmatpush1.xpose.msra.mxu0 %v1418
        %1420 = vmatprep.subr.mxu0 0.0
        %v1421 = vand.u32 %v436, 4294901760
        %1422 = vmatpush1.xpose.msra.mxu0 %v1421
        %1423 = vmatprep.mubr.f32.mxu0 0.0
        %v1424 = vand.u32 %v338, 4294901760
        %1425 = vmatmul.mubr.f32.gmra.mrb[0].mxu0 %v1424
        %v1426 = vpop.f32.mrb[0].mxu0
        %v1427 = vadd.f32 %v1316, %v1426
        %v1428 = vpop.f32.mrb[0].mxu0
        %v1429 = vadd.f32 %v1318, %v1428
        %1430 = vmatprep.mubr.f32.mxu0 0.0
        %v1431 = vand.u32 %v340, 4294901760
        %1432 = vmatmul.mubr.f32.gmra.mrb[0].mxu0 %v1431
        %v1433 = vpop.f32.mrb[0].mxu0
        %v1434 = vadd.f32 %v1323, %v1433
        %v1435 = vpop.f32.mrb[0].mxu0
        %v1436 = vadd.f32 %v1325, %v1435
        %1437 = vdwg.mxu0
        %1438 = vmatprep.subr.mxu0 0.0
        %v1439 = vand.u32 %v439, 4294901760
        %1440 = vmatpush1.xpose.msra.mxu0 %v1439
        %1441 = vmatprep.subr.mxu0 0.0
        %v1442 = vand.u32 %v442, 4294901760
        %1443 = vmatpush1.xpose.msra.mxu0 %v1442
        %1444 = vmatprep.subr.mxu0 0.0
        %v1445 = vand.u32 %v445, 4294901760
        %1446 = vmatpush1.xpose.msra.mxu0 %v1445
        %1447 = vmatprep.subr.mxu0 0.0
        %v1448 = vand.u32 %v448, 4294901760
        %1449 = vmatpush1.xpose.msra.mxu0 %v1448
        %1450 = vmatprep.subr.mxu0 0.0
        %v1451 = vand.u32 %v451, 4294901760
        %1452 = vmatpush1.xpose.msra.mxu0 %v1451
        %1453 = vmatprep.subr.mxu0 0.0
        %v1454 = vand.u32 %v454, 4294901760
        %1455 = vmatpush1.xpose.msra.mxu0 %v1454
        %1456 = vmatprep.subr.mxu0 0.0
        %v1457 = vand.u32 %v457, 4294901760
        %1458 = vmatpush1.xpose.msra.mxu0 %v1457
        %1459 = vmatprep.subr.mxu0 0.0
        %v1460 = vand.u32 %v460, 4294901760
        %1461 = vmatpush1.xpose.msra.mxu0 %v1460
        %1462 = vmatprep.subr.mxu0 0.0
        %v1463 = vand.u32 %v463, 4294901760
        %1464 = vmatpush1.xpose.msra.mxu0 %v1463
        %1465 = vmatprep.subr.mxu0 0.0
        %v1466 = vand.u32 %v466, 4294901760
        %1467 = vmatpush1.xpose.msra.mxu0 %v1466
        %1468 = vmatprep.subr.mxu0 0.0
        %v1469 = vand.u32 %v469, 4294901760
        %1470 = vmatpush1.xpose.msra.mxu0 %v1469
        %1471 = vmatprep.subr.mxu0 0.0
        %v1472 = vand.u32 %v472, 4294901760
        %1473 = vmatpush1.xpose.msra.mxu0 %v1472
        %1474 = vmatprep.subr.mxu0 0.0
        %v1475 = vand.u32 %v475, 4294901760
        %1476 = vmatpush1.xpose.msra.mxu0 %v1475
        %1477 = vmatprep.subr.mxu0 0.0
        %v1478 = vand.u32 %v478, 4294901760
        %1479 = vmatpush1.xpose.msra.mxu0 %v1478
        %1480 = vmatprep.subr.mxu0 0.0
        %v1481 = vand.u32 %v481, 4294901760
        %1482 = vmatpush1.xpose.msra.mxu0 %v1481
        %1483 = vmatprep.subr.mxu0 0.0
        %v1484 = vand.u32 %v484, 4294901760
        %1485 = vmatpush1.xpose.msra.mxu0 %v1484
        %1486 = vmatprep.subr.mxu0 0.0
        %v1487 = vand.u32 %v487, 4294901760
        %1488 = vmatpush1.xpose.msra.mxu0 %v1487
        %1489 = vmatprep.subr.mxu0 0.0
        %v1490 = vand.u32 %v490, 4294901760
        %1491 = vmatpush1.xpose.msra.mxu0 %v1490
        %1492 = vmatprep.subr.mxu0 0.0
        %v1493 = vand.u32 %v493, 4294901760
        %1494 = vmatpush1.xpose.msra.mxu0 %v1493
        %1495 = vmatprep.subr.mxu0 0.0
        %v1496 = vand.u32 %v496, 4294901760
        %1497 = vmatpush1.xpose.msra.mxu0 %v1496
        %1498 = vmatprep.subr.mxu0 0.0
        %v1499 = vand.u32 %v499, 4294901760
        %1500 = vmatpush1.xpose.msra.mxu0 %v1499
        %1501 = vmatprep.subr.mxu0 0.0
        %v1502 = vand.u32 %v502, 4294901760
        %1503 = vmatpush1.xpose.msra.mxu0 %v1502
        %1504 = vmatprep.subr.mxu0 0.0
        %v1505 = vand.u32 %v505, 4294901760
        %1506 = vmatpush1.xpose.msra.mxu0 %v1505
        %1507 = vmatprep.subr.mxu0 0.0
        %v1508 = vand.u32 %v508, 4294901760
        %1509 = vmatpush1.xpose.msra.mxu0 %v1508
        %1510 = vmatprep.subr.mxu0 0.0
        %v1511 = vand.u32 %v511, 4294901760
        %1512 = vmatpush1.xpose.msra.mxu0 %v1511
        %1513 = vmatprep.subr.mxu0 0.0
        %v1514 = vand.u32 %v514, 4294901760
        %1515 = vmatpush1.xpose.msra.mxu0 %v1514
        %1516 = vmatprep.subr.mxu0 0.0
        %v1517 = vand.u32 %v517, 4294901760
        %1518 = vmatpush1.xpose.msra.mxu0 %v1517
        %1519 = vmatprep.subr.mxu0 0.0
        %v1520 = vand.u32 %v520, 4294901760
        %1521 = vmatpush1.xpose.msra.mxu0 %v1520
        %1522 = vmatprep.subr.mxu0 0.0
        %v1523 = vand.u32 %v523, 4294901760
        %1524 = vmatpush1.xpose.msra.mxu0 %v1523
        %1525 = vmatprep.subr.mxu0 0.0
        %v1526 = vand.u32 %v526, 4294901760
        %1527 = vmatpush1.xpose.msra.mxu0 %v1526
        %1528 = vmatprep.subr.mxu0 0.0
        %v1529 = vand.u32 %v529, 4294901760
        %1530 = vmatpush1.xpose.msra.mxu0 %v1529
        %1531 = vmatprep.subr.mxu0 0.0
        %v1532 = vand.u32 %v532, 4294901760
        %1533 = vmatpush1.xpose.msra.mxu0 %v1532
        %1534 = vmatprep.mubr.f32.mxu0 0.0
        %v1535 = vand.u32 %v338, 4294901760
        %v1536 = vsub.f32 %v338, %v1535
        %v1537 = vand.u32 %v1536, 4294901760
        %v1538 = vsub.f32 %v1536, %v1537
        %v1539 = vand.u32 %v1538, 4294901760
        %1540 = vmatmul.mubr.f32.gmra.mrb[0].mxu0 %v1539
        %v1541 = vpop.f32.mrb[0].mxu0
        %v1542 = vadd.f32 %v330, %v1541
        %v1543 = vpop.f32.mrb[0].mxu0
        %v1544 = vadd.f32 %v330, %v1543
        %1545 = vmatprep.mubr.f32.mxu0 0.0
        %v1546 = vand.u32 %v340, 4294901760
        %v1547 = vsub.f32 %v340, %v1546
        %v1548 = vand.u32 %v1547, 4294901760
        %v1549 = vsub.f32 %v1547, %v1548
        %v1550 = vand.u32 %v1549, 4294901760
        %1551 = vmatmul.mubr.f32.gmra.mrb[0].mxu0 %v1550
        %v1552 = vpop.f32.mrb[0].mxu0
        %v1553 = vadd.f32 %v335, %v1552
        %v1554 = vpop.f32.mrb[0].mxu0
        %v1555 = vadd.f32 %v335, %v1554
        %1556 = vdwg.mxu0
        %1557 = vmatprep.subr.mxu0 0.0
        %v1558 = vand.u32 %v439, 4294901760
        %v1559 = vsub.f32 %v439, %v1558
        %v1560 = vand.u32 %v1559, 4294901760
        %v1561 = vsub.f32 %v1559, %v1560
        %v1562 = vand.u32 %v1561, 4294901760
        %1563 = vmatpush1.xpose.msra.mxu0 %v1562
        %1564 = vmatprep.subr.mxu0 0.0
        %v1565 = vand.u32 %v442, 4294901760
        %v1566 = vsub.f32 %v442, %v1565
        %v1567 = vand.u32 %v1566, 4294901760
        %v1568 = vsub.f32 %v1566, %v1567
        %v1569 = vand.u32 %v1568, 4294901760
        %1570 = vmatpush1.xpose.msra.mxu0 %v1569
        %1571 = vmatprep.subr.mxu0 0.0
        %v1572 = vand.u32 %v445, 4294901760
        %v1573 = vsub.f32 %v445, %v1572
        %v1574 = vand.u32 %v1573, 4294901760
        %v1575 = vsub.f32 %v1573, %v1574
        %v1576 = vand.u32 %v1575, 4294901760
        %1577 = vmatpush1.xpose.msra.mxu0 %v1576
        %1578 = vmatprep.subr.mxu0 0.0
        %v1579 = vand.u32 %v448, 4294901760
        %v1580 = vsub.f32 %v448, %v1579
        %v1581 = vand.u32 %v1580, 4294901760
        %v1582 = vsub.f32 %v1580, %v1581
        %v1583 = vand.u32 %v1582, 4294901760
        %1584 = vmatpush1.xpose.msra.mxu0 %v1583
        %1585 = vmatprep.subr.mxu0 0.0
        %v1586 = vand.u32 %v451, 4294901760
        %v1587 = vsub.f32 %v451, %v1586
        %v1588 = vand.u32 %v1587, 4294901760
        %v1589 = vsub.f32 %v1587, %v1588
        %v1590 = vand.u32 %v1589, 4294901760
        %1591 = vmatpush1.xpose.msra.mxu0 %v1590
        %1592 = vmatprep.subr.mxu0 0.0
        %v1593 = vand.u32 %v454, 4294901760
        %v1594 = vsub.f32 %v454, %v1593
        %v1595 = vand.u32 %v1594, 4294901760
        %v1596 = vsub.f32 %v1594, %v1595
        %v1597 = vand.u32 %v1596, 4294901760
        %1598 = vmatpush1.xpose.msra.mxu0 %v1597
        %1599 = vmatprep.subr.mxu0 0.0
        %v1600 = vand.u32 %v457, 4294901760
        %v1601 = vsub.f32 %v457, %v1600
        %v1602 = vand.u32 %v1601, 4294901760
        %v1603 = vsub.f32 %v1601, %v1602
        %v1604 = vand.u32 %v1603, 4294901760
        %1605 = vmatpush1.xpose.msra.mxu0 %v1604
        %1606 = vmatprep.subr.mxu0 0.0
        %v1607 = vand.u32 %v460, 4294901760
        %v1608 = vsub.f32 %v460, %v1607
        %v1609 = vand.u32 %v1608, 4294901760
        %v1610 = vsub.f32 %v1608, %v1609
        %v1611 = vand.u32 %v1610, 4294901760
        %1612 = vmatpush1.xpose.msra.mxu0 %v1611
        %1613 = vmatprep.subr.mxu0 0.0
        %v1614 = vand.u32 %v463, 4294901760
        %v1615 = vsub.f32 %v463, %v1614
        %v1616 = vand.u32 %v1615, 4294901760
        %v1617 = vsub.f32 %v1615, %v1616
        %v1618 = vand.u32 %v1617, 4294901760
        %1619 = vmatpush1.xpose.msra.mxu0 %v1618
        %1620 = vmatprep.subr.mxu0 0.0
        %v1621 = vand.u32 %v466, 4294901760
        %v1622 = vsub.f32 %v466, %v1621
        %v1623 = vand.u32 %v1622, 4294901760
        %v1624 = vsub.f32 %v1622, %v1623
        %v1625 = vand.u32 %v1624, 4294901760
        %1626 = vmatpush1.xpose.msra.mxu0 %v1625
        %1627 = vmatprep.subr.mxu0 0.0
        %v1628 = vand.u32 %v469, 4294901760
        %v1629 = vsub.f32 %v469, %v1628
        %v1630 = vand.u32 %v1629, 4294901760
        %v1631 = vsub.f32 %v1629, %v1630
        %v1632 = vand.u32 %v1631, 4294901760
        %1633 = vmatpush1.xpose.msra.mxu0 %v1632
        %1634 = vmatprep.subr.mxu0 0.0
        %v1635 = vand.u32 %v472, 4294901760
        %v1636 = vsub.f32 %v472, %v1635
        %v1637 = vand.u32 %v1636, 4294901760
        %v1638 = vsub.f32 %v1636, %v1637
        %v1639 = vand.u32 %v1638, 4294901760
        %1640 = vmatpush1.xpose.msra.mxu0 %v1639
        %1641 = vmatprep.subr.mxu0 0.0
        %v1642 = vand.u32 %v475, 4294901760
        %v1643 = vsub.f32 %v475, %v1642
        %v1644 = vand.u32 %v1643, 4294901760
        %v1645 = vsub.f32 %v1643, %v1644
        %v1646 = vand.u32 %v1645, 4294901760
        %1647 = vmatpush1.xpose.msra.mxu0 %v1646
        %1648 = vmatprep.subr.mxu0 0.0
        %v1649 = vand.u32 %v478, 4294901760
        %v1650 = vsub.f32 %v478, %v1649
        %v1651 = vand.u32 %v1650, 4294901760
        %v1652 = vsub.f32 %v1650, %v1651
        %v1653 = vand.u32 %v1652, 4294901760
        %1654 = vmatpush1.xpose.msra.mxu0 %v1653
        %1655 = vmatprep.subr.mxu0 0.0
        %v1656 = vand.u32 %v481, 4294901760
        %v1657 = vsub.f32 %v481, %v1656
        %v1658 = vand.u32 %v1657, 4294901760
        %v1659 = vsub.f32 %v1657, %v1658
        %v1660 = vand.u32 %v1659, 4294901760
        %1661 = vmatpush1.xpose.msra.mxu0 %v1660
        %1662 = vmatprep.subr.mxu0 0.0
        %v1663 = vand.u32 %v484, 4294901760
        %v1664 = vsub.f32 %v484, %v1663
        %v1665 = vand.u32 %v1664, 4294901760
        %v1666 = vsub.f32 %v1664, %v1665
        %v1667 = vand.u32 %v1666, 4294901760
        %1668 = vmatpush1.xpose.msra.mxu0 %v1667
        %1669 = vmatprep.subr.mxu0 0.0
        %v1670 = vand.u32 %v487, 4294901760
        %v1671 = vsub.f32 %v487, %v1670
        %v1672 = vand.u32 %v1671, 4294901760
        %v1673 = vsub.f32 %v1671, %v1672
        %v1674 = vand.u32 %v1673, 4294901760
        %1675 = vmatpush1.xpose.msra.mxu0 %v1674
        %1676 = vmatprep.subr.mxu0 0.0
        %v1677 = vand.u32 %v490, 4294901760
        %v1678 = vsub.f32 %v490, %v1677
        %v1679 = vand.u32 %v1678, 4294901760
        %v1680 = vsub.f32 %v1678, %v1679
        %v1681 = vand.u32 %v1680, 4294901760
        %1682 = vmatpush1.xpose.msra.mxu0 %v1681
        %1683 = vmatprep.subr.mxu0 0.0
        %v1684 = vand.u32 %v493, 4294901760
        %v1685 = vsub.f32 %v493, %v1684
        %v1686 = vand.u32 %v1685, 4294901760
        %v1687 = vsub.f32 %v1685, %v1686
        %v1688 = vand.u32 %v1687, 4294901760
        %1689 = vmatpush1.xpose.msra.mxu0 %v1688
        %1690 = vmatprep.subr.mxu0 0.0
        %v1691 = vand.u32 %v496, 4294901760
        %v1692 = vsub.f32 %v496, %v1691
        %v1693 = vand.u32 %v1692, 4294901760
        %v1694 = vsub.f32 %v1692, %v1693
        %v1695 = vand.u32 %v1694, 4294901760
        %1696 = vmatpush1.xpose.msra.mxu0 %v1695
        %1697 = vmatprep.subr.mxu0 0.0
        %v1698 = vand.u32 %v499, 4294901760
        %v1699 = vsub.f32 %v499, %v1698
        %v1700 = vand.u32 %v1699, 4294901760
        %v1701 = vsub.f32 %v1699, %v1700
        %v1702 = vand.u32 %v1701, 4294901760
        %1703 = vmatpush1.xpose.msra.mxu0 %v1702
        %1704 = vmatprep.subr.mxu0 0.0
        %v1705 = vand.u32 %v502, 4294901760
        %v1706 = vsub.f32 %v502, %v1705
        %v1707 = vand.u32 %v1706, 4294901760
        %v1708 = vsub.f32 %v1706, %v1707
        %v1709 = vand.u32 %v1708, 4294901760
        %1710 = vmatpush1.xpose.msra.mxu0 %v1709
        %1711 = vmatprep.subr.mxu0 0.0
        %v1712 = vand.u32 %v505, 4294901760
        %v1713 = vsub.f32 %v505, %v1712
        %v1714 = vand.u32 %v1713, 4294901760
        %v1715 = vsub.f32 %v1713, %v1714
        %v1716 = vand.u32 %v1715, 4294901760
        %1717 = vmatpush1.xpose.msra.mxu0 %v1716
        %1718 = vmatprep.subr.mxu0 0.0
        %v1719 = vand.u32 %v508, 4294901760
        %v1720 = vsub.f32 %v508, %v1719
        %v1721 = vand.u32 %v1720, 4294901760
        %v1722 = vsub.f32 %v1720, %v1721
        %v1723 = vand.u32 %v1722, 4294901760
        %1724 = vmatpush1.xpose.msra.mxu0 %v1723
        %1725 = vmatprep.subr.mxu0 0.0
        %v1726 = vand.u32 %v511, 4294901760
        %v1727 = vsub.f32 %v511, %v1726
        %v1728 = vand.u32 %v1727, 4294901760
        %v1729 = vsub.f32 %v1727, %v1728
        %v1730 = vand.u32 %v1729, 4294901760
        %1731 = vmatpush1.xpose.msra.mxu0 %v1730
        %1732 = vmatprep.subr.mxu0 0.0
        %v1733 = vand.u32 %v514, 4294901760
        %v1734 = vsub.f32 %v514, %v1733
        %v1735 = vand.u32 %v1734, 4294901760
        %v1736 = vsub.f32 %v1734, %v1735
        %v1737 = vand.u32 %v1736, 4294901760
        %1738 = vmatpush1.xpose.msra.mxu0 %v1737
        %1739 = vmatprep.subr.mxu0 0.0
        %v1740 = vand.u32 %v517, 4294901760
        %v1741 = vsub.f32 %v517, %v1740
        %v1742 = vand.u32 %v1741, 4294901760
        %v1743 = vsub.f32 %v1741, %v1742
        %v1744 = vand.u32 %v1743, 4294901760
        %1745 = vmatpush1.xpose.msra.mxu0 %v1744
        %1746 = vmatprep.subr.mxu0 0.0
        %v1747 = vand.u32 %v520, 4294901760
        %v1748 = vsub.f32 %v520, %v1747
        %v1749 = vand.u32 %v1748, 4294901760
        %v1750 = vsub.f32 %v1748, %v1749
        %v1751 = vand.u32 %v1750, 4294901760
        %1752 = vmatpush1.xpose.msra.mxu0 %v1751
        %1753 = vmatprep.subr.mxu0 0.0
        %v1754 = vand.u32 %v523, 4294901760
        %v1755 = vsub.f32 %v523, %v1754
        %v1756 = vand.u32 %v1755, 4294901760
        %v1757 = vsub.f32 %v1755, %v1756
        %v1758 = vand.u32 %v1757, 4294901760
        %1759 = vmatpush1.xpose.msra.mxu0 %v1758
        %1760 = vmatprep.subr.mxu0 0.0
        %v1761 = vand.u32 %v526, 4294901760
        %v1762 = vsub.f32 %v526, %v1761
        %v1763 = vand.u32 %v1762, 4294901760
        %v1764 = vsub.f32 %v1762, %v1763
        %v1765 = vand.u32 %v1764, 4294901760
        %1766 = vmatpush1.xpose.msra.mxu0 %v1765
        %1767 = vmatprep.subr.mxu0 0.0
        %v1768 = vand.u32 %v529, 4294901760
        %v1769 = vsub.f32 %v529, %v1768
        %v1770 = vand.u32 %v1769, 4294901760
        %v1771 = vsub.f32 %v1769, %v1770
        %v1772 = vand.u32 %v1771, 4294901760
        %1773 = vmatpush1.xpose.msra.mxu0 %v1772
        %1774 = vmatprep.subr.mxu0 0.0
        %v1775 = vand.u32 %v532, 4294901760
        %v1776 = vsub.f32 %v532, %v1775
        %v1777 = vand.u32 %v1776, 4294901760
        %v1778 = vsub.f32 %v1776, %v1777
        %v1779 = vand.u32 %v1778, 4294901760
        %1780 = vmatpush1.xpose.msra.mxu0 %v1779
        %1781 = vmatprep.mubr.f32.mxu0 0.0
        %v1782 = vand.u32 %v338, 4294901760
        %1783 = vmatmul.mubr.f32.gmra.mrb[0].mxu0 %v1782
        %v1784 = vpop.f32.mrb[0].mxu0
        %v1785 = vadd.f32 %v1542, %v1784
        %v1786 = vpop.f32.mrb[0].mxu0
        %v1787 = vadd.f32 %v1544, %v1786
        %1788 = vmatprep.mubr.f32.mxu0 0.0
        %v1789 = vand.u32 %v340, 4294901760
        %1790 = vmatmul.mubr.f32.gmra.mrb[0].mxu0 %v1789
        %v1791 = vpop.f32.mrb[0].mxu0
        %v1792 = vadd.f32 %v1553, %v1791
        %v1793 = vpop.f32.mrb[0].mxu0
        %v1794 = vadd.f32 %v1555, %v1793
        %1795 = vdwg.mxu0
        %1796 = vmatprep.subr.mxu0 0.0
        %v1797 = vand.u32 %v439, 4294901760
        %v1798 = vsub.f32 %v439, %v1797
        %1799 = vmatpush1.xpose.msra.mxu0 %v1798
        %1800 = vmatprep.subr.mxu0 0.0
        %v1801 = vand.u32 %v442, 4294901760
        %v1802 = vsub.f32 %v442, %v1801
        %1803 = vmatpush1.xpose.msra.mxu0 %v1802
        %1804 = vmatprep.subr.mxu0 0.0
        %v1805 = vand.u32 %v445, 4294901760
        %v1806 = vsub.f32 %v445, %v1805
        %1807 = vmatpush1.xpose.msra.mxu0 %v1806
        %1808 = vmatprep.subr.mxu0 0.0
        %v1809 = vand.u32 %v448, 4294901760
        %v1810 = vsub.f32 %v448, %v1809
        %1811 = vmatpush1.xpose.msra.mxu0 %v1810
        %1812 = vmatprep.subr.mxu0 0.0
        %v1813 = vand.u32 %v451, 4294901760
        %v1814 = vsub.f32 %v451, %v1813
        %1815 = vmatpush1.xpose.msra.mxu0 %v1814
        %1816 = vmatprep.subr.mxu0 0.0
        %v1817 = vand.u32 %v454, 4294901760
        %v1818 = vsub.f32 %v454, %v1817
        %1819 = vmatpush1.xpose.msra.mxu0 %v1818
        %1820 = vmatprep.subr.mxu0 0.0
        %v1821 = vand.u32 %v457, 4294901760
        %v1822 = vsub.f32 %v457, %v1821
        %1823 = vmatpush1.xpose.msra.mxu0 %v1822
        %1824 = vmatprep.subr.mxu0 0.0
        %v1825 = vand.u32 %v460, 4294901760
        %v1826 = vsub.f32 %v460, %v1825
        %1827 = vmatpush1.xpose.msra.mxu0 %v1826
        %1828 = vmatprep.subr.mxu0 0.0
        %v1829 = vand.u32 %v463, 4294901760
        %v1830 = vsub.f32 %v463, %v1829
        %1831 = vmatpush1.xpose.msra.mxu0 %v1830
        %1832 = vmatprep.subr.mxu0 0.0
        %v1833 = vand.u32 %v466, 4294901760
        %v1834 = vsub.f32 %v466, %v1833
        %1835 = vmatpush1.xpose.msra.mxu0 %v1834
        %1836 = vmatprep.subr.mxu0 0.0
        %v1837 = vand.u32 %v469, 4294901760
        %v1838 = vsub.f32 %v469, %v1837
        %1839 = vmatpush1.xpose.msra.mxu0 %v1838
        %1840 = vmatprep.subr.mxu0 0.0
        %v1841 = vand.u32 %v472, 4294901760
        %v1842 = vsub.f32 %v472, %v1841
        %1843 = vmatpush1.xpose.msra.mxu0 %v1842
        %1844 = vmatprep.subr.mxu0 0.0
        %v1845 = vand.u32 %v475, 4294901760
        %v1846 = vsub.f32 %v475, %v1845
        %1847 = vmatpush1.xpose.msra.mxu0 %v1846
        %1848 = vmatprep.subr.mxu0 0.0
        %v1849 = vand.u32 %v478, 4294901760
        %v1850 = vsub.f32 %v478, %v1849
        %1851 = vmatpush1.xpose.msra.mxu0 %v1850
        %1852 = vmatprep.subr.mxu0 0.0
        %v1853 = vand.u32 %v481, 4294901760
        %v1854 = vsub.f32 %v481, %v1853
        %1855 = vmatpush1.xpose.msra.mxu0 %v1854
        %1856 = vmatprep.subr.mxu0 0.0
        %v1857 = vand.u32 %v484, 4294901760
        %v1858 = vsub.f32 %v484, %v1857
        %1859 = vmatpush1.xpose.msra.mxu0 %v1858
        %1860 = vmatprep.subr.mxu0 0.0
        %v1861 = vand.u32 %v487, 4294901760
        %v1862 = vsub.f32 %v487, %v1861
        %1863 = vmatpush1.xpose.msra.mxu0 %v1862
        %1864 = vmatprep.subr.mxu0 0.0
        %v1865 = vand.u32 %v490, 4294901760
        %v1866 = vsub.f32 %v490, %v1865
        %1867 = vmatpush1.xpose.msra.mxu0 %v1866
        %1868 = vmatprep.subr.mxu0 0.0
        %v1869 = vand.u32 %v493, 4294901760
        %v1870 = vsub.f32 %v493, %v1869
        %1871 = vmatpush1.xpose.msra.mxu0 %v1870
        %1872 = vmatprep.subr.mxu0 0.0
        %v1873 = vand.u32 %v496, 4294901760
        %v1874 = vsub.f32 %v496, %v1873
        %1875 = vmatpush1.xpose.msra.mxu0 %v1874
        %1876 = vmatprep.subr.mxu0 0.0
        %v1877 = vand.u32 %v499, 4294901760
        %v1878 = vsub.f32 %v499, %v1877
        %1879 = vmatpush1.xpose.msra.mxu0 %v1878
        %1880 = vmatprep.subr.mxu0 0.0
        %v1881 = vand.u32 %v502, 4294901760
        %v1882 = vsub.f32 %v502, %v1881
        %1883 = vmatpush1.xpose.msra.mxu0 %v1882
        %1884 = vmatprep.subr.mxu0 0.0
        %v1885 = vand.u32 %v505, 4294901760
        %v1886 = vsub.f32 %v505, %v1885
        %1887 = vmatpush1.xpose.msra.mxu0 %v1886
        %1888 = vmatprep.subr.mxu0 0.0
        %v1889 = vand.u32 %v508, 4294901760
        %v1890 = vsub.f32 %v508, %v1889
        %1891 = vmatpush1.xpose.msra.mxu0 %v1890
        %1892 = vmatprep.subr.mxu0 0.0
        %v1893 = vand.u32 %v511, 4294901760
        %v1894 = vsub.f32 %v511, %v1893
        %1895 = vmatpush1.xpose.msra.mxu0 %v1894
        %1896 = vmatprep.subr.mxu0 0.0
        %v1897 = vand.u32 %v514, 4294901760
        %v1898 = vsub.f32 %v514, %v1897
        %1899 = vmatpush1.xpose.msra.mxu0 %v1898
        %1900 = vmatprep.subr.mxu0 0.0
        %v1901 = vand.u32 %v517, 4294901760
        %v1902 = vsub.f32 %v517, %v1901
        %1903 = vmatpush1.xpose.msra.mxu0 %v1902
        %1904 = vmatprep.subr.mxu0 0.0
        %v1905 = vand.u32 %v520, 4294901760
        %v1906 = vsub.f32 %v520, %v1905
        %1907 = vmatpush1.xpose.msra.mxu0 %v1906
        %1908 = vmatprep.subr.mxu0 0.0
        %v1909 = vand.u32 %v523, 4294901760
        %v1910 = vsub.f32 %v523, %v1909
        %1911 = vmatpush1.xpose.msra.mxu0 %v1910
        %1912 = vmatprep.subr.mxu0 0.0
        %v1913 = vand.u32 %v526, 4294901760
        %v1914 = vsub.f32 %v526, %v1913
        %1915 = vmatpush1.xpose.msra.mxu0 %v1914
        %1916 = vmatprep.subr.mxu0 0.0
        %v1917 = vand.u32 %v529, 4294901760
        %v1918 = vsub.f32 %v529, %v1917
        %1919 = vmatpush1.xpose.msra.mxu0 %v1918
        %1920 = vmatprep.subr.mxu0 0.0
        %v1921 = vand.u32 %v532, 4294901760
        %v1922 = vsub.f32 %v532, %v1921
        %1923 = vmatpush1.xpose.msra.mxu0 %v1922
        %1924 = vmatprep.mubr.f32.mxu0 0.0
        %v1925 = vand.u32 %v338, 4294901760
        %v1926 = vsub.f32 %v338, %v1925
        %1927 = vmatmul.mubr.f32.gmra.mrb[0].mxu0 %v1926
        %v1928 = vpop.f32.mrb[0].mxu0
        %v1929 = vadd.f32 %v1785, %v1928
        %v1930 = vpop.f32.mrb[0].mxu0
        %v1931 = vadd.f32 %v1787, %v1930
        %1932 = vmatprep.mubr.f32.mxu0 0.0
        %v1933 = vand.u32 %v340, 4294901760
        %v1934 = vsub.f32 %v340, %v1933
        %1935 = vmatmul.mubr.f32.gmra.mrb[0].mxu0 %v1934
        %v1936 = vpop.f32.mrb[0].mxu0
        %v1937 = vadd.f32 %v1792, %v1936
        %v1938 = vpop.f32.mrb[0].mxu0
        %v1939 = vadd.f32 %v1794, %v1938
        %1940 = vdwg.mxu0
        %1941 = vmatprep.subr.mxu0 0.0
        %v1942 = vand.u32 %v439, 4294901760
        %1943 = vmatpush1.xpose.msra.mxu0 %v1942
        %1944 = vmatprep.subr.mxu0 0.0
        %v1945 = vand.u32 %v442, 4294901760
        %1946 = vmatpush1.xpose.msra.mxu0 %v1945
        %1947 = vmatprep.subr.mxu0 0.0
        %v1948 = vand.u32 %v445, 4294901760
        %1949 = vmatpush1.xpose.msra.mxu0 %v1948
        %1950 = vmatprep.subr.mxu0 0.0
        %v1951 = vand.u32 %v448, 4294901760
        %1952 = vmatpush1.xpose.msra.mxu0 %v1951
        %1953 = vmatprep.subr.mxu0 0.0
        %v1954 = vand.u32 %v451, 4294901760
        %1955 = vmatpush1.xpose.msra.mxu0 %v1954
        %1956 = vmatprep.subr.mxu0 0.0
        %v1957 = vand.u32 %v454, 4294901760
        %1958 = vmatpush1.xpose.msra.mxu0 %v1957
        %1959 = vmatprep.subr.mxu0 0.0
        %v1960 = vand.u32 %v457, 4294901760
        %1961 = vmatpush1.xpose.msra.mxu0 %v1960
        %1962 = vmatprep.subr.mxu0 0.0
        %v1963 = vand.u32 %v460, 4294901760
        %1964 = vmatpush1.xpose.msra.mxu0 %v1963
        %1965 = vmatprep.subr.mxu0 0.0
        %v1966 = vand.u32 %v463, 4294901760
        %1967 = vmatpush1.xpose.msra.mxu0 %v1966
        %1968 = vmatprep.subr.mxu0 0.0
        %v1969 = vand.u32 %v466, 4294901760
        %1970 = vmatpush1.xpose.msra.mxu0 %v1969
        %1971 = vmatprep.subr.mxu0 0.0
        %v1972 = vand.u32 %v469, 4294901760
        %1973 = vmatpush1.xpose.msra.mxu0 %v1972
        %1974 = vmatprep.subr.mxu0 0.0
        %v1975 = vand.u32 %v472, 4294901760
        %1976 = vmatpush1.xpose.msra.mxu0 %v1975
        %1977 = vmatprep.subr.mxu0 0.0
        %v1978 = vand.u32 %v475, 4294901760
        %1979 = vmatpush1.xpose.msra.mxu0 %v1978
        %1980 = vmatprep.subr.mxu0 0.0
        %v1981 = vand.u32 %v478, 4294901760
        %1982 = vmatpush1.xpose.msra.mxu0 %v1981
        %1983 = vmatprep.subr.mxu0 0.0
        %v1984 = vand.u32 %v481, 4294901760
        %1985 = vmatpush1.xpose.msra.mxu0 %v1984
        %1986 = vmatprep.subr.mxu0 0.0
        %v1987 = vand.u32 %v484, 4294901760
        %1988 = vmatpush1.xpose.msra.mxu0 %v1987
        %1989 = vmatprep.subr.mxu0 0.0
        %v1990 = vand.u32 %v487, 4294901760
        %1991 = vmatpush1.xpose.msra.mxu0 %v1990
        %1992 = vmatprep.subr.mxu0 0.0
        %v1993 = vand.u32 %v490, 4294901760
        %1994 = vmatpush1.xpose.msra.mxu0 %v1993
        %1995 = vmatprep.subr.mxu0 0.0
        %v1996 = vand.u32 %v493, 4294901760
        %1997 = vmatpush1.xpose.msra.mxu0 %v1996
        %1998 = vmatprep.subr.mxu0 0.0
        %v1999 = vand.u32 %v496, 4294901760
        %2000 = vmatpush1.xpose.msra.mxu0 %v1999
        %2001 = vmatprep.subr.mxu0 0.0
        %v2002 = vand.u32 %v499, 4294901760
        %2003 = vmatpush1.xpose.msra.mxu0 %v2002
        %2004 = vmatprep.subr.mxu0 0.0
        %v2005 = vand.u32 %v502, 4294901760
        %2006 = vmatpush1.xpose.msra.mxu0 %v2005
        %2007 = vmatprep.subr.mxu0 0.0
        %v2008 = vand.u32 %v505, 4294901760
        %2009 = vmatpush1.xpose.msra.mxu0 %v2008
        %2010 = vmatprep.subr.mxu0 0.0
        %v2011 = vand.u32 %v508, 4294901760
        %2012 = vmatpush1.xpose.msra.mxu0 %v2011
        %2013 = vmatprep.subr.mxu0 0.0
        %v2014 = vand.u32 %v511, 4294901760
        %2015 = vmatpush1.xpose.msra.mxu0 %v2014
        %2016 = vmatprep.subr.mxu0 0.0
        %v2017 = vand.u32 %v514, 4294901760
        %2018 = vmatpush1.xpose.msra.mxu0 %v2017
        %2019 = vmatprep.subr.mxu0 0.0
        %v2020 = vand.u32 %v517, 4294901760
        %2021 = vmatpush1.xpose.msra.mxu0 %v2020
        %2022 = vmatprep.subr.mxu0 0.0
        %v2023 = vand.u32 %v520, 4294901760
        %2024 = vmatpush1.xpose.msra.mxu0 %v2023
        %2025 = vmatprep.subr.mxu0 0.0
        %v2026 = vand.u32 %v523, 4294901760
        %2027 = vmatpush1.xpose.msra.mxu0 %v2026
        %2028 = vmatprep.subr.mxu0 0.0
        %v2029 = vand.u32 %v526, 4294901760
        %2030 = vmatpush1.xpose.msra.mxu0 %v2029
        %2031 = vmatprep.subr.mxu0 0.0
        %v2032 = vand.u32 %v529, 4294901760
        %2033 = vmatpush1.xpose.msra.mxu0 %v2032
        %2034 = vmatprep.subr.mxu0 0.0
        %v2035 = vand.u32 %v532, 4294901760
        %2036 = vmatpush1.xpose.msra.mxu0 %v2035
        %2037 = vmatprep.mubr.f32.mxu0 0.0
        %v2038 = vand.u32 %v338, 4294901760
        %v2039 = vsub.f32 %v338, %v2038
        %v2040 = vand.u32 %v2039, 4294901760
        %2041 = vmatmul.mubr.f32.gmra.mrb[0].mxu0 %v2040
        %v2042 = vpop.f32.mrb[0].mxu0
        %v2043 = vadd.f32 %v1929, %v2042
        %v2044 = vpop.f32.mrb[0].mxu0
        %v2045 = vadd.f32 %v1931, %v2044
        %2046 = vmatprep.mubr.f32.mxu0 0.0
        %v2047 = vand.u32 %v340, 4294901760
        %v2048 = vsub.f32 %v340, %v2047
        %v2049 = vand.u32 %v2048, 4294901760
        %2050 = vmatmul.mubr.f32.gmra.mrb[0].mxu0 %v2049
        %v2051 = vpop.f32.mrb[0].mxu0
        %v2052 = vadd.f32 %v1937, %v2051
        %v2053 = vpop.f32.mrb[0].mxu0
        %v2054 = vadd.f32 %v1939, %v2053
        %2055 = vdwg.mxu0
        %2056 = vmatprep.subr.mxu0 0.0
        %v2057 = vand.u32 %v439, 4294901760
        %v2058 = vsub.f32 %v439, %v2057
        %v2059 = vand.u32 %v2058, 4294901760
        %2060 = vmatpush1.xpose.msra.mxu0 %v2059
        %2061 = vmatprep.subr.mxu0 0.0
        %v2062 = vand.u32 %v442, 4294901760
        %v2063 = vsub.f32 %v442, %v2062
        %v2064 = vand.u32 %v2063, 4294901760
        %2065 = vmatpush1.xpose.msra.mxu0 %v2064
        %2066 = vmatprep.subr.mxu0 0.0
        %v2067 = vand.u32 %v445, 4294901760
        %v2068 = vsub.f32 %v445, %v2067
        %v2069 = vand.u32 %v2068, 4294901760
        %2070 = vmatpush1.xpose.msra.mxu0 %v2069
        %2071 = vmatprep.subr.mxu0 0.0
        %v2072 = vand.u32 %v448, 4294901760
        %v2073 = vsub.f32 %v448, %v2072
        %v2074 = vand.u32 %v2073, 4294901760
        %2075 = vmatpush1.xpose.msra.mxu0 %v2074
        %2076 = vmatprep.subr.mxu0 0.0
        %v2077 = vand.u32 %v451, 4294901760
        %v2078 = vsub.f32 %v451, %v2077
        %v2079 = vand.u32 %v2078, 4294901760
        %2080 = vmatpush1.xpose.msra.mxu0 %v2079
        %2081 = vmatprep.subr.mxu0 0.0
        %v2082 = vand.u32 %v454, 4294901760
        %v2083 = vsub.f32 %v454, %v2082
        %v2084 = vand.u32 %v2083, 4294901760
        %2085 = vmatpush1.xpose.msra.mxu0 %v2084
        %2086 = vmatprep.subr.mxu0 0.0
        %v2087 = vand.u32 %v457, 4294901760
        %v2088 = vsub.f32 %v457, %v2087
        %v2089 = vand.u32 %v2088, 4294901760
        %2090 = vmatpush1.xpose.msra.mxu0 %v2089
        %2091 = vmatprep.subr.mxu0 0.0
        %v2092 = vand.u32 %v460, 4294901760
        %v2093 = vsub.f32 %v460, %v2092
        %v2094 = vand.u32 %v2093, 4294901760
        %2095 = vmatpush1.xpose.msra.mxu0 %v2094
        %2096 = vmatprep.subr.mxu0 0.0
        %v2097 = vand.u32 %v463, 4294901760
        %v2098 = vsub.f32 %v463, %v2097
        %v2099 = vand.u32 %v2098, 4294901760
        %2100 = vmatpush1.xpose.msra.mxu0 %v2099
        %2101 = vmatprep.subr.mxu0 0.0
        %v2102 = vand.u32 %v466, 4294901760
        %v2103 = vsub.f32 %v466, %v2102
        %v2104 = vand.u32 %v2103, 4294901760
        %2105 = vmatpush1.xpose.msra.mxu0 %v2104
        %2106 = vmatprep.subr.mxu0 0.0
        %v2107 = vand.u32 %v469, 4294901760
        %v2108 = vsub.f32 %v469, %v2107
        %v2109 = vand.u32 %v2108, 4294901760
        %2110 = vmatpush1.xpose.msra.mxu0 %v2109
        %2111 = vmatprep.subr.mxu0 0.0
        %v2112 = vand.u32 %v472, 4294901760
        %v2113 = vsub.f32 %v472, %v2112
        %v2114 = vand.u32 %v2113, 4294901760
        %2115 = vmatpush1.xpose.msra.mxu0 %v2114
        %2116 = vmatprep.subr.mxu0 0.0
        %v2117 = vand.u32 %v475, 4294901760
        %v2118 = vsub.f32 %v475, %v2117
        %v2119 = vand.u32 %v2118, 4294901760
        %2120 = vmatpush1.xpose.msra.mxu0 %v2119
        %2121 = vmatprep.subr.mxu0 0.0
        %v2122 = vand.u32 %v478, 4294901760
        %v2123 = vsub.f32 %v478, %v2122
        %v2124 = vand.u32 %v2123, 4294901760
        %2125 = vmatpush1.xpose.msra.mxu0 %v2124
        %2126 = vmatprep.subr.mxu0 0.0
        %v2127 = vand.u32 %v481, 4294901760
        %v2128 = vsub.f32 %v481, %v2127
        %v2129 = vand.u32 %v2128, 4294901760
        %2130 = vmatpush1.xpose.msra.mxu0 %v2129
        %2131 = vmatprep.subr.mxu0 0.0
        %v2132 = vand.u32 %v484, 4294901760
        %v2133 = vsub.f32 %v484, %v2132
        %v2134 = vand.u32 %v2133, 4294901760
        %2135 = vmatpush1.xpose.msra.mxu0 %v2134
        %2136 = vmatprep.subr.mxu0 0.0
        %v2137 = vand.u32 %v487, 4294901760
        %v2138 = vsub.f32 %v487, %v2137
        %v2139 = vand.u32 %v2138, 4294901760
        %2140 = vmatpush1.xpose.msra.mxu0 %v2139
        %2141 = vmatprep.subr.mxu0 0.0
        %v2142 = vand.u32 %v490, 4294901760
        %v2143 = vsub.f32 %v490, %v2142
        %v2144 = vand.u32 %v2143, 4294901760
        %2145 = vmatpush1.xpose.msra.mxu0 %v2144
        %2146 = vmatprep.subr.mxu0 0.0
        %v2147 = vand.u32 %v493, 4294901760
        %v2148 = vsub.f32 %v493, %v2147
        %v2149 = vand.u32 %v2148, 4294901760
        %2150 = vmatpush1.xpose.msra.mxu0 %v2149
        %2151 = vmatprep.subr.mxu0 0.0
        %v2152 = vand.u32 %v496, 4294901760
        %v2153 = vsub.f32 %v496, %v2152
        %v2154 = vand.u32 %v2153, 4294901760
        %2155 = vmatpush1.xpose.msra.mxu0 %v2154
        %2156 = vmatprep.subr.mxu0 0.0
        %v2157 = vand.u32 %v499, 4294901760
        %v2158 = vsub.f32 %v499, %v2157
        %v2159 = vand.u32 %v2158, 4294901760
        %2160 = vmatpush1.xpose.msra.mxu0 %v2159
        %2161 = vmatprep.subr.mxu0 0.0
        %v2162 = vand.u32 %v502, 4294901760
        %v2163 = vsub.f32 %v502, %v2162
        %v2164 = vand.u32 %v2163, 4294901760
        %2165 = vmatpush1.xpose.msra.mxu0 %v2164
        %2166 = vmatprep.subr.mxu0 0.0
        %v2167 = vand.u32 %v505, 4294901760
        %v2168 = vsub.f32 %v505, %v2167
        %v2169 = vand.u32 %v2168, 4294901760
        %2170 = vmatpush1.xpose.msra.mxu0 %v2169
        %2171 = vmatprep.subr.mxu0 0.0
        %v2172 = vand.u32 %v508, 4294901760
        %v2173 = vsub.f32 %v508, %v2172
        %v2174 = vand.u32 %v2173, 4294901760
        %2175 = vmatpush1.xpose.msra.mxu0 %v2174
        %2176 = vmatprep.subr.mxu0 0.0
        %v2177 = vand.u32 %v511, 4294901760
        %v2178 = vsub.f32 %v511, %v2177
        %v2179 = vand.u32 %v2178, 4294901760
        %2180 = vmatpush1.xpose.msra.mxu0 %v2179
        %2181 = vmatprep.subr.mxu0 0.0
        %v2182 = vand.u32 %v514, 4294901760
        %v2183 = vsub.f32 %v514, %v2182
        %v2184 = vand.u32 %v2183, 4294901760
        %2185 = vmatpush1.xpose.msra.mxu0 %v2184
        %2186 = vmatprep.subr.mxu0 0.0
        %v2187 = vand.u32 %v517, 4294901760
        %v2188 = vsub.f32 %v517, %v2187
        %v2189 = vand.u32 %v2188, 4294901760
        %2190 = vmatpush1.xpose.msra.mxu0 %v2189
        %2191 = vmatprep.subr.mxu0 0.0
        %v2192 = vand.u32 %v520, 4294901760
        %v2193 = vsub.f32 %v520, %v2192
        %v2194 = vand.u32 %v2193, 4294901760
        %2195 = vmatpush1.xpose.msra.mxu0 %v2194
        %2196 = vmatprep.subr.mxu0 0.0
        %v2197 = vand.u32 %v523, 4294901760
        %v2198 = vsub.f32 %v523, %v2197
        %v2199 = vand.u32 %v2198, 4294901760
        %2200 = vmatpush1.xpose.msra.mxu0 %v2199
        %2201 = vmatprep.subr.mxu0 0.0
        %v2202 = vand.u32 %v526, 4294901760
        %v2203 = vsub.f32 %v526, %v2202
        %v2204 = vand.u32 %v2203, 4294901760
        %2205 = vmatpush1.xpose.msra.mxu0 %v2204
        %2206 = vmatprep.subr.mxu0 0.0
        %v2207 = vand.u32 %v529, 4294901760
        %v2208 = vsub.f32 %v529, %v2207
        %v2209 = vand.u32 %v2208, 4294901760
        %2210 = vmatpush1.xpose.msra.mxu0 %v2209
        %2211 = vmatprep.subr.mxu0 0.0
        %v2212 = vand.u32 %v532, 4294901760
        %v2213 = vsub.f32 %v532, %v2212
        %v2214 = vand.u32 %v2213, 4294901760
        %2215 = vmatpush1.xpose.msra.mxu0 %v2214
        %2216 = vmatprep.mubr.f32.mxu0 0.0
        %v2217 = vand.u32 %v338, 4294901760
        %2218 = vmatmul.mubr.f32.gmra.mrb[0].mxu0 %v2217
        %v2219 = vpop.f32.mrb[0].mxu0
        %v2220 = vadd.f32 %v2043, %v2219
        %v2221 = vpop.f32.mrb[0].mxu0
        %v2222 = vadd.f32 %v2045, %v2221
        %2223 = vmatprep.mubr.f32.mxu0 0.0
        %v2224 = vand.u32 %v340, 4294901760
        %2225 = vmatmul.mubr.f32.gmra.mrb[0].mxu0 %v2224
        %v2226 = vpop.f32.mrb[0].mxu0
        %v2227 = vadd.f32 %v2052, %v2226
        %v2228 = vpop.f32.mrb[0].mxu0
        %v2229 = vadd.f32 %v2054, %v2228
        %2230 = vdwg.mxu0
        %2231 = vmatprep.subr.mxu0 0.0
        %v2232 = vand.u32 %v439, 4294901760
        %2233 = vmatpush1.xpose.msra.mxu0 %v2232
        %2234 = vmatprep.subr.mxu0 0.0
        %v2235 = vand.u32 %v442, 4294901760
        %2236 = vmatpush1.xpose.msra.mxu0 %v2235
        %2237 = vmatprep.subr.mxu0 0.0
        %v2238 = vand.u32 %v445, 4294901760
        %2239 = vmatpush1.xpose.msra.mxu0 %v2238
        %2240 = vmatprep.subr.mxu0 0.0
        %v2241 = vand.u32 %v448, 4294901760
        %2242 = vmatpush1.xpose.msra.mxu0 %v2241
        %2243 = vmatprep.subr.mxu0 0.0
        %v2244 = vand.u32 %v451, 4294901760
        %2245 = vmatpush1.xpose.msra.mxu0 %v2244
        %2246 = vmatprep.subr.mxu0 0.0
        %v2247 = vand.u32 %v454, 4294901760
        %2248 = vmatpush1.xpose.msra.mxu0 %v2247
        %2249 = vmatprep.subr.mxu0 0.0
        %v2250 = vand.u32 %v457, 4294901760
        %2251 = vmatpush1.xpose.msra.mxu0 %v2250
        %2252 = vmatprep.subr.mxu0 0.0
        %v2253 = vand.u32 %v460, 4294901760
        %2254 = vmatpush1.xpose.msra.mxu0 %v2253
        %2255 = vmatprep.subr.mxu0 0.0
        %v2256 = vand.u32 %v463, 4294901760
        %2257 = vmatpush1.xpose.msra.mxu0 %v2256
        %2258 = vmatprep.subr.mxu0 0.0
        %v2259 = vand.u32 %v466, 4294901760
        %2260 = vmatpush1.xpose.msra.mxu0 %v2259
        %2261 = vmatprep.subr.mxu0 0.0
        %v2262 = vand.u32 %v469, 4294901760
        %2263 = vmatpush1.xpose.msra.mxu0 %v2262
        %2264 = vmatprep.subr.mxu0 0.0
        %v2265 = vand.u32 %v472, 4294901760
        %2266 = vmatpush1.xpose.msra.mxu0 %v2265
        %2267 = vmatprep.subr.mxu0 0.0
        %v2268 = vand.u32 %v475, 4294901760
        %2269 = vmatpush1.xpose.msra.mxu0 %v2268
        %2270 = vmatprep.subr.mxu0 0.0
        %v2271 = vand.u32 %v478, 4294901760
        %2272 = vmatpush1.xpose.msra.mxu0 %v2271
        %2273 = vmatprep.subr.mxu0 0.0
        %v2274 = vand.u32 %v481, 4294901760
        %2275 = vmatpush1.xpose.msra.mxu0 %v2274
        %2276 = vmatprep.subr.mxu0 0.0
        %v2277 = vand.u32 %v484, 4294901760
        %2278 = vmatpush1.xpose.msra.mxu0 %v2277
        %2279 = vmatprep.subr.mxu0 0.0
        %v2280 = vand.u32 %v487, 4294901760
        %2281 = vmatpush1.xpose.msra.mxu0 %v2280
        %2282 = vmatprep.subr.mxu0 0.0
        %v2283 = vand.u32 %v490, 4294901760
        %2284 = vmatpush1.xpose.msra.mxu0 %v2283
        %2285 = vmatprep.subr.mxu0 0.0
        %v2286 = vand.u32 %v493, 4294901760
        %2287 = vmatpush1.xpose.msra.mxu0 %v2286
        %2288 = vmatprep.subr.mxu0 0.0
        %v2289 = vand.u32 %v496, 4294901760
        %2290 = vmatpush1.xpose.msra.mxu0 %v2289
        %2291 = vmatprep.subr.mxu0 0.0
        %v2292 = vand.u32 %v499, 4294901760
        %2293 = vmatpush1.xpose.msra.mxu0 %v2292
        %2294 = vmatprep.subr.mxu0 0.0
        %v2295 = vand.u32 %v502, 4294901760
        %2296 = vmatpush1.xpose.msra.mxu0 %v2295
        %2297 = vmatprep.subr.mxu0 0.0
        %v2298 = vand.u32 %v505, 4294901760
        %2299 = vmatpush1.xpose.msra.mxu0 %v2298
        %2300 = vmatprep.subr.mxu0 0.0
        %v2301 = vand.u32 %v508, 4294901760
        %2302 = vmatpush1.xpose.msra.mxu0 %v2301
        %2303 = vmatprep.subr.mxu0 0.0
        %v2304 = vand.u32 %v511, 4294901760
        %2305 = vmatpush1.xpose.msra.mxu0 %v2304
        %2306 = vmatprep.subr.mxu0 0.0
        %v2307 = vand.u32 %v514, 4294901760
        %2308 = vmatpush1.xpose.msra.mxu0 %v2307
        %2309 = vmatprep.subr.mxu0 0.0
        %v2310 = vand.u32 %v517, 4294901760
        %2311 = vmatpush1.xpose.msra.mxu0 %v2310
        %2312 = vmatprep.subr.mxu0 0.0
        %v2313 = vand.u32 %v520, 4294901760
        %2314 = vmatpush1.xpose.msra.mxu0 %v2313
        %2315 = vmatprep.subr.mxu0 0.0
        %v2316 = vand.u32 %v523, 4294901760
        %2317 = vmatpush1.xpose.msra.mxu0 %v2316
        %2318 = vmatprep.subr.mxu0 0.0
        %v2319 = vand.u32 %v526, 4294901760
        %2320 = vmatpush1.xpose.msra.mxu0 %v2319
        %2321 = vmatprep.subr.mxu0 0.0
        %v2322 = vand.u32 %v529, 4294901760
        %2323 = vmatpush1.xpose.msra.mxu0 %v2322
        %2324 = vmatprep.subr.mxu0 0.0
        %v2325 = vand.u32 %v532, 4294901760
        %2326 = vmatpush1.xpose.msra.mxu0 %v2325
        %2327 = vmatprep.mubr.f32.mxu0 0.0
        %v2328 = vand.u32 %v338, 4294901760
        %2329 = vmatmul.mubr.f32.gmra.mrb[0].mxu0 %v2328
        %v2330 = vpop.f32.mrb[0].mxu0
        %v2331 = vadd.f32 %v2220, %v2330
        %v2332 = vpop.f32.mrb[0].mxu0
        %v2333 = vadd.f32 %v2222, %v2332
        %2334 = vmatprep.mubr.f32.mxu0 0.0
        %v2335 = vand.u32 %v340, 4294901760
        %2336 = vmatmul.mubr.f32.gmra.mrb[0].mxu0 %v2335
        %v2337 = vpop.f32.mrb[0].mxu0
        %v2338 = vadd.f32 %v2227, %v2337
        %v2339 = vpop.f32.mrb[0].mxu0
        %v2340 = vadd.f32 %v2229, %v2339
        %2341 = vdwg.mxu0
        %v2342 = vmax.f32 %v1427, 0.0
        %v2343 = vmax.f32 %v1429, 0.0
        %v2344 = vmax.f32 %v2331, 0.0
        %v2345 = vmax.f32 %v2333, 0.0
        %v2346 = vmax.f32 %v1434, 0.0
        %v2347 = vmax.f32 %v1436, 0.0
        %v2348 = vmax.f32 %v2338, 0.0
        %v2349 = vmax.f32 %v2340, 0.0
        %2351 = vset.pattern.permute.xlu0 33
        %2352 = vperm.xlu0 %2351, %v198
        %v2353 = vpop.permute.xlu0 %2352
        %vm2355 = vcmask 130048
        %v2357 = vsel %vm2355, %v196, 0
        %v2359 = vand.u32 %v2343, 4294901760
        %2360 = vmatprep.subr.mxu0 %v2359
        %v2361 = vand.u32 %v2342, 4294901760
        %2362 = vmatpush1.msra.mxu0 %v2361
        %v2363 = vand.u32 %v2347, 4294901760
        %2364 = vmatprep.subr.mxu0 %v2363
        %v2365 = vand.u32 %v2346, 4294901760
        %2366 = vmatpush1.msra.mxu0 %v2365
        %2367 = vmatprep.subr.mxu0 0.0
        %2368 = vmatpush1.msra.mxu0 0.0
        %2369 = vmatprep.subr.mxu0 0.0
        %2370 = vmatpush1.msra.mxu0 0.0
        %2371 = vmatprep.subr.mxu0 0.0
        %2372 = vmatpush1.msra.mxu0 0.0
        %2373 = vmatprep.subr.mxu0 0.0
        %2374 = vmatpush1.msra.mxu0 0.0
        %2375 = vmatprep.subr.mxu0 0.0
        %2376 = vmatpush1.msra.mxu0 0.0
        %2377 = vmatprep.subr.mxu0 0.0
        %2378 = vmatpush1.msra.mxu0 0.0
        %2379 = vmatprep.subr.mxu0 0.0
        %2380 = vmatpush1.msra.mxu0 0.0
        %2381 = vmatprep.subr.mxu0 0.0
        %2382 = vmatpush1.msra.mxu0 0.0
        %2383 = vmatprep.subr.mxu0 0.0
        %2384 = vmatpush1.msra.mxu0 0.0
        %2385 = vmatprep.subr.mxu0 0.0
        %2386 = vmatpush1.msra.mxu0 0.0
        %2387 = vmatprep.subr.mxu0 0.0
        %2388 = vmatpush1.msra.mxu0 0.0
        %2389 = vmatprep.subr.mxu0 0.0
        %2390 = vmatpush1.msra.mxu0 0.0
        %2391 = vmatprep.subr.mxu0 0.0
        %2392 = vmatpush1.msra.mxu0 0.0
        %2393 = vmatprep.subr.mxu0 0.0
        %2394 = vmatpush1.msra.mxu0 0.0
        %2395 = vmatprep.subr.mxu0 0.0
        %2396 = vmatpush1.msra.mxu0 0.0
        %2397 = vmatprep.subr.mxu0 0.0
        %2398 = vmatpush1.msra.mxu0 0.0
        %2399 = vmatprep.subr.mxu0 0.0
        %2400 = vmatpush1.msra.mxu0 0.0
        %2401 = vmatprep.subr.mxu0 0.0
        %2402 = vmatpush1.msra.mxu0 0.0
        %2403 = vmatprep.subr.mxu0 0.0
        %2404 = vmatpush1.msra.mxu0 0.0
        %2405 = vmatprep.subr.mxu0 0.0
        %2406 = vmatpush1.msra.mxu0 0.0
        %2407 = vmatprep.subr.mxu0 0.0
        %2408 = vmatpush1.msra.mxu0 0.0
        %2409 = vmatprep.subr.mxu0 0.0
        %2410 = vmatpush1.msra.mxu0 0.0
        %2411 = vmatprep.subr.mxu0 0.0
        %2412 = vmatpush1.msra.mxu0 0.0
        %2413 = vmatprep.subr.mxu0 0.0
        %2414 = vmatpush1.msra.mxu0 0.0
        %2415 = vmatprep.subr.mxu0 0.0
        %2416 = vmatpush1.msra.mxu0 0.0
        %2417 = vmatprep.subr.mxu0 0.0
        %2418 = vmatpush1.msra.mxu0 0.0
        %2419 = vmatprep.subr.mxu0 0.0
        %2420 = vmatpush1.msra.mxu0 0.0
        %2421 = vmatprep.subr.mxu0 0.0
        %2422 = vmatpush1.msra.mxu0 0.0
        %2423 = vmatprep.subr.mxu0 0.0
        %2424 = vmatpush1.msra.mxu0 0.0
        %2425 = vmatprep.subr.mxu0 0.0
        %2426 = vmatpush1.msra.mxu0 0.0
        %2427 = vmatprep.mubr.f32.mxu0 0.0
        %v2428 = vand.u32 %v2357, 4294901760
        %v2429 = vsub.f32 %v2357, %v2428
        %v2430 = vand.u32 %v2429, 4294901760
        %v2431 = vsub.f32 %v2429, %v2430
        %v2432 = vand.u32 %v2431, 4294901760
        %2433 = vmatmul.mubr.f32.gmra.mrb[0].mxu0 %v2432
        %v2434 = vpop.f32.mrb[0].mxu0
        %v2435 = vadd.f32 %v2353, %v2434
        %v2436 = vpop.f32.mrb[0].mxu0
        %v2437 = vadd.f32 %v2353, %v2436
        %2438 = vdwg.mxu0
        %v2439 = vand.u32 %v2343, 4294901760
        %v2440 = vsub.f32 %v2343, %v2439
        %v2441 = vand.u32 %v2440, 4294901760
        %v2442 = vsub.f32 %v2440, %v2441
        %v2443 = vand.u32 %v2442, 4294901760
        %2444 = vmatprep.subr.mxu0 %v2443
        %v2445 = vand.u32 %v2342, 4294901760
        %v2446 = vsub.f32 %v2342, %v2445
        %v2447 = vand.u32 %v2446, 4294901760
        %v2448 = vsub.f32 %v2446, %v2447
        %v2449 = vand.u32 %v2448, 4294901760
        %2450 = vmatpush1.msra.mxu0 %v2449
        %v2451 = vand.u32 %v2347, 4294901760
        %v2452 = vsub.f32 %v2347, %v2451
        %v2453 = vand.u32 %v2452, 4294901760
        %v2454 = vsub.f32 %v2452, %v2453
        %v2455 = vand.u32 %v2454, 4294901760
        %2456 = vmatprep.subr.mxu0 %v2455
        %v2457 = vand.u32 %v2346, 4294901760
        %v2458 = vsub.f32 %v2346, %v2457
        %v2459 = vand.u32 %v2458, 4294901760
        %v2460 = vsub.f32 %v2458, %v2459
        %v2461 = vand.u32 %v2460, 4294901760
        %2462 = vmatpush1.msra.mxu0 %v2461
        %2463 = vmatprep.subr.mxu0 0.0
        %2464 = vmatpush1.msra.mxu0 0.0
        %2465 = vmatprep.subr.mxu0 0.0
        %2466 = vmatpush1.msra.mxu0 0.0
        %2467 = vmatprep.subr.mxu0 0.0
        %2468 = vmatpush1.msra.mxu0 0.0
        %2469 = vmatprep.subr.mxu0 0.0
        %2470 = vmatpush1.msra.mxu0 0.0
        %2471 = vmatprep.subr.mxu0 0.0
        %2472 = vmatpush1.msra.mxu0 0.0
        %2473 = vmatprep.subr.mxu0 0.0
        %2474 = vmatpush1.msra.mxu0 0.0
        %2475 = vmatprep.subr.mxu0 0.0
        %2476 = vmatpush1.msra.mxu0 0.0
        %2477 = vmatprep.subr.mxu0 0.0
        %2478 = vmatpush1.msra.mxu0 0.0
        %2479 = vmatprep.subr.mxu0 0.0
        %2480 = vmatpush1.msra.mxu0 0.0
        %2481 = vmatprep.subr.mxu0 0.0
        %2482 = vmatpush1.msra.mxu0 0.0
        %2483 = vmatprep.subr.mxu0 0.0
        %2484 = vmatpush1.msra.mxu0 0.0
        %2485 = vmatprep.subr.mxu0 0.0
        %2486 = vmatpush1.msra.mxu0 0.0
        %2487 = vmatprep.subr.mxu0 0.0
        %2488 = vmatpush1.msra.mxu0 0.0
        %2489 = vmatprep.subr.mxu0 0.0
        %2490 = vmatpush1.msra.mxu0 0.0
        %2491 = vmatprep.subr.mxu0 0.0
        %2492 = vmatpush1.msra.mxu0 0.0
        %2493 = vmatprep.subr.mxu0 0.0
        %2494 = vmatpush1.msra.mxu0 0.0
        %2495 = vmatprep.subr.mxu0 0.0
        %2496 = vmatpush1.msra.mxu0 0.0
        %2497 = vmatprep.subr.mxu0 0.0
        %2498 = vmatpush1.msra.mxu0 0.0
        %2499 = vmatprep.subr.mxu0 0.0
        %2500 = vmatpush1.msra.mxu0 0.0
        %2501 = vmatprep.subr.mxu0 0.0
        %2502 = vmatpush1.msra.mxu0 0.0
        %2503 = vmatprep.subr.mxu0 0.0
        %2504 = vmatpush1.msra.mxu0 0.0
        %2505 = vmatprep.subr.mxu0 0.0
        %2506 = vmatpush1.msra.mxu0 0.0
        %2507 = vmatprep.subr.mxu0 0.0
        %2508 = vmatpush1.msra.mxu0 0.0
        %2509 = vmatprep.subr.mxu0 0.0
        %2510 = vmatpush1.msra.mxu0 0.0
        %2511 = vmatprep.subr.mxu0 0.0
        %2512 = vmatpush1.msra.mxu0 0.0
        %2513 = vmatprep.subr.mxu0 0.0
        %2514 = vmatpush1.msra.mxu0 0.0
        %2515 = vmatprep.subr.mxu0 0.0
        %2516 = vmatpush1.msra.mxu0 0.0
        %2517 = vmatprep.subr.mxu0 0.0
        %2518 = vmatpush1.msra.mxu0 0.0
        %2519 = vmatprep.subr.mxu0 0.0
        %2520 = vmatpush1.msra.mxu0 0.0
        %2521 = vmatprep.subr.mxu0 0.0
        %2522 = vmatpush1.msra.mxu0 0.0
        %2523 = vmatprep.mubr.f32.mxu0 0.0
        %v2524 = vand.u32 %v2357, 4294901760
        %2525 = vmatmul.mubr.f32.gmra.mrb[0].mxu0 %v2524
        %v2526 = vpop.f32.mrb[0].mxu0
        %v2527 = vadd.f32 %v2435, %v2526
        %v2528 = vpop.f32.mrb[0].mxu0
        %v2529 = vadd.f32 %v2437, %v2528
        %2530 = vdwg.mxu0
        %v2531 = vand.u32 %v2343, 4294901760
        %v2532 = vsub.f32 %v2343, %v2531
        %2533 = vmatprep.subr.mxu0 %v2532
        %v2534 = vand.u32 %v2342, 4294901760
        %v2535 = vsub.f32 %v2342, %v2534
        %2536 = vmatpush1.msra.mxu0 %v2535
        %v2537 = vand.u32 %v2347, 4294901760
        %v2538 = vsub.f32 %v2347, %v2537
        %2539 = vmatprep.subr.mxu0 %v2538
        %v2540 = vand.u32 %v2346, 4294901760
        %v2541 = vsub.f32 %v2346, %v2540
        %2542 = vmatpush1.msra.mxu0 %v2541
        %2543 = vmatprep.subr.mxu0 0.0
        %2544 = vmatpush1.msra.mxu0 0.0
        %2545 = vmatprep.subr.mxu0 0.0
        %2546 = vmatpush1.msra.mxu0 0.0
        %2547 = vmatprep.subr.mxu0 0.0
        %2548 = vmatpush1.msra.mxu0 0.0
        %2549 = vmatprep.subr.mxu0 0.0
        %2550 = vmatpush1.msra.mxu0 0.0
        %2551 = vmatprep.subr.mxu0 0.0
        %2552 = vmatpush1.msra.mxu0 0.0
        %2553 = vmatprep.subr.mxu0 0.0
        %2554 = vmatpush1.msra.mxu0 0.0
        %2555 = vmatprep.subr.mxu0 0.0
        %2556 = vmatpush1.msra.mxu0 0.0
        %2557 = vmatprep.subr.mxu0 0.0
        %2558 = vmatpush1.msra.mxu0 0.0
        %2559 = vmatprep.subr.mxu0 0.0
        %2560 = vmatpush1.msra.mxu0 0.0
        %2561 = vmatprep.subr.mxu0 0.0
        %2562 = vmatpush1.msra.mxu0 0.0
        %2563 = vmatprep.subr.mxu0 0.0
        %2564 = vmatpush1.msra.mxu0 0.0
        %2565 = vmatprep.subr.mxu0 0.0
        %2566 = vmatpush1.msra.mxu0 0.0
        %2567 = vmatprep.subr.mxu0 0.0
        %2568 = vmatpush1.msra.mxu0 0.0
        %2569 = vmatprep.subr.mxu0 0.0
        %2570 = vmatpush1.msra.mxu0 0.0
        %2571 = vmatprep.subr.mxu0 0.0
        %2572 = vmatpush1.msra.mxu0 0.0
        %2573 = vmatprep.subr.mxu0 0.0
        %2574 = vmatpush1.msra.mxu0 0.0
        %2575 = vmatprep.subr.mxu0 0.0
        %2576 = vmatpush1.msra.mxu0 0.0
        %2577 = vmatprep.subr.mxu0 0.0
        %2578 = vmatpush1.msra.mxu0 0.0
        %2579 = vmatprep.subr.mxu0 0.0
        %2580 = vmatpush1.msra.mxu0 0.0
        %2581 = vmatprep.subr.mxu0 0.0
        %2582 = vmatpush1.msra.mxu0 0.0
        %2583 = vmatprep.subr.mxu0 0.0
        %2584 = vmatpush1.msra.mxu0 0.0
        %2585 = vmatprep.subr.mxu0 0.0
        %2586 = vmatpush1.msra.mxu0 0.0
        %2587 = vmatprep.subr.mxu0 0.0
        %2588 = vmatpush1.msra.mxu0 0.0
        %2589 = vmatprep.subr.mxu0 0.0
        %2590 = vmatpush1.msra.mxu0 0.0
        %2591 = vmatprep.subr.mxu0 0.0
        %2592 = vmatpush1.msra.mxu0 0.0
        %2593 = vmatprep.subr.mxu0 0.0
        %2594 = vmatpush1.msra.mxu0 0.0
        %2595 = vmatprep.subr.mxu0 0.0
        %2596 = vmatpush1.msra.mxu0 0.0
        %2597 = vmatprep.subr.mxu0 0.0
        %2598 = vmatpush1.msra.mxu0 0.0
        %2599 = vmatprep.subr.mxu0 0.0
        %2600 = vmatpush1.msra.mxu0 0.0
        %2601 = vmatprep.subr.mxu0 0.0
        %2602 = vmatpush1.msra.mxu0 0.0
        %2603 = vmatprep.mubr.f32.mxu0 0.0
        %v2604 = vand.u32 %v2357, 4294901760
        %v2605 = vsub.f32 %v2357, %v2604
        %2606 = vmatmul.mubr.f32.gmra.mrb[0].mxu0 %v2605
        %v2607 = vpop.f32.mrb[0].mxu0
        %v2608 = vadd.f32 %v2527, %v2607
        %v2609 = vpop.f32.mrb[0].mxu0
        %v2610 = vadd.f32 %v2529, %v2609
        %2611 = vdwg.mxu0
        %v2612 = vand.u32 %v2343, 4294901760
        %2613 = vmatprep.subr.mxu0 %v2612
        %v2614 = vand.u32 %v2342, 4294901760
        %2615 = vmatpush1.msra.mxu0 %v2614
        %v2616 = vand.u32 %v2347, 4294901760
        %2617 = vmatprep.subr.mxu0 %v2616
        %v2618 = vand.u32 %v2346, 4294901760
        %2619 = vmatpush1.msra.mxu0 %v2618
        %2620 = vmatprep.subr.mxu0 0.0
        %2621 = vmatpush1.msra.mxu0 0.0
        %2622 = vmatprep.subr.mxu0 0.0
        %2623 = vmatpush1.msra.mxu0 0.0
        %2624 = vmatprep.subr.mxu0 0.0
        %2625 = vmatpush1.msra.mxu0 0.0
        %2626 = vmatprep.subr.mxu0 0.0
        %2627 = vmatpush1.msra.mxu0 0.0
        %2628 = vmatprep.subr.mxu0 0.0
        %2629 = vmatpush1.msra.mxu0 0.0
        %2630 = vmatprep.subr.mxu0 0.0
        %2631 = vmatpush1.msra.mxu0 0.0
        %2632 = vmatprep.subr.mxu0 0.0
        %2633 = vmatpush1.msra.mxu0 0.0
        %2634 = vmatprep.subr.mxu0 0.0
        %2635 = vmatpush1.msra.mxu0 0.0
        %2636 = vmatprep.subr.mxu0 0.0
        %2637 = vmatpush1.msra.mxu0 0.0
        %2638 = vmatprep.subr.mxu0 0.0
        %2639 = vmatpush1.msra.mxu0 0.0
        %2640 = vmatprep.subr.mxu0 0.0
        %2641 = vmatpush1.msra.mxu0 0.0
        %2642 = vmatprep.subr.mxu0 0.0
        %2643 = vmatpush1.msra.mxu0 0.0
        %2644 = vmatprep.subr.mxu0 0.0
        %2645 = vmatpush1.msra.mxu0 0.0
        %2646 = vmatprep.subr.mxu0 0.0
        %2647 = vmatpush1.msra.mxu0 0.0
        %2648 = vmatprep.subr.mxu0 0.0
        %2649 = vmatpush1.msra.mxu0 0.0
        %2650 = vmatprep.subr.mxu0 0.0
        %2651 = vmatpush1.msra.mxu0 0.0
        %2652 = vmatprep.subr.mxu0 0.0
        %2653 = vmatpush1.msra.mxu0 0.0
        %2654 = vmatprep.subr.mxu0 0.0
        %2655 = vmatpush1.msra.mxu0 0.0
        %2656 = vmatprep.subr.mxu0 0.0
        %2657 = vmatpush1.msra.mxu0 0.0
        %2658 = vmatprep.subr.mxu0 0.0
        %2659 = vmatpush1.msra.mxu0 0.0
        %2660 = vmatprep.subr.mxu0 0.0
        %2661 = vmatpush1.msra.mxu0 0.0
        %2662 = vmatprep.subr.mxu0 0.0
        %2663 = vmatpush1.msra.mxu0 0.0
        %2664 = vmatprep.subr.mxu0 0.0
        %2665 = vmatpush1.msra.mxu0 0.0
        %2666 = vmatprep.subr.mxu0 0.0
        %2667 = vmatpush1.msra.mxu0 0.0
        %2668 = vmatprep.subr.mxu0 0.0
        %2669 = vmatpush1.msra.mxu0 0.0
        %2670 = vmatprep.subr.mxu0 0.0
        %2671 = vmatpush1.msra.mxu0 0.0
        %2672 = vmatprep.subr.mxu0 0.0
        %2673 = vmatpush1.msra.mxu0 0.0
        %2674 = vmatprep.subr.mxu0 0.0
        %2675 = vmatpush1.msra.mxu0 0.0
        %2676 = vmatprep.subr.mxu0 0.0
        %2677 = vmatpush1.msra.mxu0 0.0
        %2678 = vmatprep.subr.mxu0 0.0
        %2679 = vmatpush1.msra.mxu0 0.0
        %2680 = vmatprep.mubr.f32.mxu0 0.0
        %v2681 = vand.u32 %v2357, 4294901760
        %v2682 = vsub.f32 %v2357, %v2681
        %v2683 = vand.u32 %v2682, 4294901760
        %2684 = vmatmul.mubr.f32.gmra.mrb[0].mxu0 %v2683
        %v2685 = vpop.f32.mrb[0].mxu0
        %v2686 = vadd.f32 %v2608, %v2685
        %v2687 = vpop.f32.mrb[0].mxu0
        %v2688 = vadd.f32 %v2610, %v2687
        %2689 = vdwg.mxu0
        %v2690 = vand.u32 %v2343, 4294901760
        %v2691 = vsub.f32 %v2343, %v2690
        %v2692 = vand.u32 %v2691, 4294901760
        %2693 = vmatprep.subr.mxu0 %v2692
        %v2694 = vand.u32 %v2342, 4294901760
        %v2695 = vsub.f32 %v2342, %v2694
        %v2696 = vand.u32 %v2695, 4294901760
        %2697 = vmatpush1.msra.mxu0 %v2696
        %v2698 = vand.u32 %v2347, 4294901760
        %v2699 = vsub.f32 %v2347, %v2698
        %v2700 = vand.u32 %v2699, 4294901760
        %2701 = vmatprep.subr.mxu0 %v2700
        %v2702 = vand.u32 %v2346, 4294901760
        %v2703 = vsub.f32 %v2346, %v2702
        %v2704 = vand.u32 %v2703, 4294901760
        %2705 = vmatpush1.msra.mxu0 %v2704
        %2706 = vmatprep.subr.mxu0 0.0
        %2707 = vmatpush1.msra.mxu0 0.0
        %2708 = vmatprep.subr.mxu0 0.0
        %2709 = vmatpush1.msra.mxu0 0.0
        %2710 = vmatprep.subr.mxu0 0.0
        %2711 = vmatpush1.msra.mxu0 0.0
        %2712 = vmatprep.subr.mxu0 0.0
        %2713 = vmatpush1.msra.mxu0 0.0
        %2714 = vmatprep.subr.mxu0 0.0
        %2715 = vmatpush1.msra.mxu0 0.0
        %2716 = vmatprep.subr.mxu0 0.0
        %2717 = vmatpush1.msra.mxu0 0.0
        %2718 = vmatprep.subr.mxu0 0.0
        %2719 = vmatpush1.msra.mxu0 0.0
        %2720 = vmatprep.subr.mxu0 0.0
        %2721 = vmatpush1.msra.mxu0 0.0
        %2722 = vmatprep.subr.mxu0 0.0
        %2723 = vmatpush1.msra.mxu0 0.0
        %2724 = vmatprep.subr.mxu0 0.0
        %2725 = vmatpush1.msra.mxu0 0.0
        %2726 = vmatprep.subr.mxu0 0.0
        %2727 = vmatpush1.msra.mxu0 0.0
        %2728 = vmatprep.subr.mxu0 0.0
        %2729 = vmatpush1.msra.mxu0 0.0
        %2730 = vmatprep.subr.mxu0 0.0
        %2731 = vmatpush1.msra.mxu0 0.0
        %2732 = vmatprep.subr.mxu0 0.0
        %2733 = vmatpush1.msra.mxu0 0.0
        %2734 = vmatprep.subr.mxu0 0.0
        %2735 = vmatpush1.msra.mxu0 0.0
        %2736 = vmatprep.subr.mxu0 0.0
        %2737 = vmatpush1.msra.mxu0 0.0
        %2738 = vmatprep.subr.mxu0 0.0
        %2739 = vmatpush1.msra.mxu0 0.0
        %2740 = vmatprep.subr.mxu0 0.0
        %2741 = vmatpush1.msra.mxu0 0.0
        %2742 = vmatprep.subr.mxu0 0.0
        %2743 = vmatpush1.msra.mxu0 0.0
        %2744 = vmatprep.subr.mxu0 0.0
        %2745 = vmatpush1.msra.mxu0 0.0
        %2746 = vmatprep.subr.mxu0 0.0
        %2747 = vmatpush1.msra.mxu0 0.0
        %2748 = vmatprep.subr.mxu0 0.0
        %2749 = vmatpush1.msra.mxu0 0.0
        %2750 = vmatprep.subr.mxu0 0.0
        %2751 = vmatpush1.msra.mxu0 0.0
        %2752 = vmatprep.subr.mxu0 0.0
        %2753 = vmatpush1.msra.mxu0 0.0
        %2754 = vmatprep.subr.mxu0 0.0
        %2755 = vmatpush1.msra.mxu0 0.0
        %2756 = vmatprep.subr.mxu0 0.0
        %2757 = vmatpush1.msra.mxu0 0.0
        %2758 = vmatprep.subr.mxu0 0.0
        %2759 = vmatpush1.msra.mxu0 0.0
        %2760 = vmatprep.subr.mxu0 0.0
        %2761 = vmatpush1.msra.mxu0 0.0
        %2762 = vmatprep.subr.mxu0 0.0
        %2763 = vmatpush1.msra.mxu0 0.0
        %2764 = vmatprep.subr.mxu0 0.0
        %2765 = vmatpush1.msra.mxu0 0.0
        %2766 = vmatprep.mubr.f32.mxu0 0.0
        %v2767 = vand.u32 %v2357, 4294901760
        %2768 = vmatmul.mubr.f32.gmra.mrb[0].mxu0 %v2767
        %v2769 = vpop.f32.mrb[0].mxu0
        %v2770 = vadd.f32 %v2686, %v2769
        %v2771 = vpop.f32.mrb[0].mxu0
        %v2772 = vadd.f32 %v2688, %v2771
        %2773 = vdwg.mxu0
        %v2774 = vand.u32 %v2343, 4294901760
        %2775 = vmatprep.subr.mxu0 %v2774
        %v2776 = vand.u32 %v2342, 4294901760
        %2777 = vmatpush1.msra.mxu0 %v2776
        %v2778 = vand.u32 %v2347, 4294901760
        %2779 = vmatprep.subr.mxu0 %v2778
        %v2780 = vand.u32 %v2346, 4294901760
        %2781 = vmatpush1.msra.mxu0 %v2780
        %2782 = vmatprep.subr.mxu0 0.0
        %2783 = vmatpush1.msra.mxu0 0.0
        %2784 = vmatprep.subr.mxu0 0.0
        %2785 = vmatpush1.msra.mxu0 0.0
        %2786 = vmatprep.subr.mxu0 0.0
        %2787 = vmatpush1.msra.mxu0 0.0
        %2788 = vmatprep.subr.mxu0 0.0
        %2789 = vmatpush1.msra.mxu0 0.0
        %2790 = vmatprep.subr.mxu0 0.0
        %2791 = vmatpush1.msra.mxu0 0.0
        %2792 = vmatprep.subr.mxu0 0.0
        %2793 = vmatpush1.msra.mxu0 0.0
        %2794 = vmatprep.subr.mxu0 0.0
        %2795 = vmatpush1.msra.mxu0 0.0
        %2796 = vmatprep.subr.mxu0 0.0
        %2797 = vmatpush1.msra.mxu0 0.0
        %2798 = vmatprep.subr.mxu0 0.0
        %2799 = vmatpush1.msra.mxu0 0.0
        %2800 = vmatprep.subr.mxu0 0.0
        %2801 = vmatpush1.msra.mxu0 0.0
        %2802 = vmatprep.subr.mxu0 0.0
        %2803 = vmatpush1.msra.mxu0 0.0
        %2804 = vmatprep.subr.mxu0 0.0
        %2805 = vmatpush1.msra.mxu0 0.0
        %2806 = vmatprep.subr.mxu0 0.0
        %2807 = vmatpush1.msra.mxu0 0.0
        %2808 = vmatprep.subr.mxu0 0.0
        %2809 = vmatpush1.msra.mxu0 0.0
        %2810 = vmatprep.subr.mxu0 0.0
        %2811 = vmatpush1.msra.mxu0 0.0
        %2812 = vmatprep.subr.mxu0 0.0
        %2813 = vmatpush1.msra.mxu0 0.0
        %2814 = vmatprep.subr.mxu0 0.0
        %2815 = vmatpush1.msra.mxu0 0.0
        %2816 = vmatprep.subr.mxu0 0.0
        %2817 = vmatpush1.msra.mxu0 0.0
        %2818 = vmatprep.subr.mxu0 0.0
        %2819 = vmatpush1.msra.mxu0 0.0
        %2820 = vmatprep.subr.mxu0 0.0
        %2821 = vmatpush1.msra.mxu0 0.0
        %2822 = vmatprep.subr.mxu0 0.0
        %2823 = vmatpush1.msra.mxu0 0.0
        %2824 = vmatprep.subr.mxu0 0.0
        %2825 = vmatpush1.msra.mxu0 0.0
        %2826 = vmatprep.subr.mxu0 0.0
        %2827 = vmatpush1.msra.mxu0 0.0
        %2828 = vmatprep.subr.mxu0 0.0
        %2829 = vmatpush1.msra.mxu0 0.0
        %2830 = vmatprep.subr.mxu0 0.0
        %2831 = vmatpush1.msra.mxu0 0.0
        %2832 = vmatprep.subr.mxu0 0.0
        %2833 = vmatpush1.msra.mxu0 0.0
        %2834 = vmatprep.subr.mxu0 0.0
        %2835 = vmatpush1.msra.mxu0 0.0
        %2836 = vmatprep.subr.mxu0 0.0
        %2837 = vmatpush1.msra.mxu0 0.0
        %2838 = vmatprep.subr.mxu0 0.0
        %2839 = vmatpush1.msra.mxu0 0.0
        %2840 = vmatprep.subr.mxu0 0.0
        %2841 = vmatpush1.msra.mxu0 0.0
        %2842 = vmatprep.mubr.f32.mxu0 0.0
        %v2843 = vand.u32 %v2357, 4294901760
        %2844 = vmatmul.mubr.f32.gmra.mrb[0].mxu0 %v2843
        %v2845 = vpop.f32.mrb[0].mxu0
        %v2846 = vadd.f32 %v2770, %v2845
        %v2847 = vpop.f32.mrb[0].mxu0
        %v2848 = vadd.f32 %v2772, %v2847
        %2849 = vdwg.mxu0
        %v2850 = vand.u32 %v2345, 4294901760
        %2851 = vmatprep.subr.mxu0 %v2850
        %v2852 = vand.u32 %v2344, 4294901760
        %2853 = vmatpush1.msra.mxu0 %v2852
        %v2854 = vand.u32 %v2349, 4294901760
        %2855 = vmatprep.subr.mxu0 %v2854
        %v2856 = vand.u32 %v2348, 4294901760
        %2857 = vmatpush1.msra.mxu0 %v2856
        %2858 = vmatprep.subr.mxu0 0.0
        %2859 = vmatpush1.msra.mxu0 0.0
        %2860 = vmatprep.subr.mxu0 0.0
        %2861 = vmatpush1.msra.mxu0 0.0
        %2862 = vmatprep.subr.mxu0 0.0
        %2863 = vmatpush1.msra.mxu0 0.0
        %2864 = vmatprep.subr.mxu0 0.0
        %2865 = vmatpush1.msra.mxu0 0.0
        %2866 = vmatprep.subr.mxu0 0.0
        %2867 = vmatpush1.msra.mxu0 0.0
        %2868 = vmatprep.subr.mxu0 0.0
        %2869 = vmatpush1.msra.mxu0 0.0
        %2870 = vmatprep.subr.mxu0 0.0
        %2871 = vmatpush1.msra.mxu0 0.0
        %2872 = vmatprep.subr.mxu0 0.0
        %2873 = vmatpush1.msra.mxu0 0.0
        %2874 = vmatprep.subr.mxu0 0.0
        %2875 = vmatpush1.msra.mxu0 0.0
        %2876 = vmatprep.subr.mxu0 0.0
        %2877 = vmatpush1.msra.mxu0 0.0
        %2878 = vmatprep.subr.mxu0 0.0
        %2879 = vmatpush1.msra.mxu0 0.0
        %2880 = vmatprep.subr.mxu0 0.0
        %2881 = vmatpush1.msra.mxu0 0.0
        %2882 = vmatprep.subr.mxu0 0.0
        %2883 = vmatpush1.msra.mxu0 0.0
        %2884 = vmatprep.subr.mxu0 0.0
        %2885 = vmatpush1.msra.mxu0 0.0
        %2886 = vmatprep.subr.mxu0 0.0
        %2887 = vmatpush1.msra.mxu0 0.0
        %2888 = vmatprep.subr.mxu0 0.0
        %2889 = vmatpush1.msra.mxu0 0.0
        %2890 = vmatprep.subr.mxu0 0.0
        %2891 = vmatpush1.msra.mxu0 0.0
        %2892 = vmatprep.subr.mxu0 0.0
        %2893 = vmatpush1.msra.mxu0 0.0
        %2894 = vmatprep.subr.mxu0 0.0
        %2895 = vmatpush1.msra.mxu0 0.0
        %2896 = vmatprep.subr.mxu0 0.0
        %2897 = vmatpush1.msra.mxu0 0.0
        %2898 = vmatprep.subr.mxu0 0.0
        %2899 = vmatpush1.msra.mxu0 0.0
        %2900 = vmatprep.subr.mxu0 0.0
        %2901 = vmatpush1.msra.mxu0 0.0
        %2902 = vmatprep.subr.mxu0 0.0
        %2903 = vmatpush1.msra.mxu0 0.0
        %2904 = vmatprep.subr.mxu0 0.0
        %2905 = vmatpush1.msra.mxu0 0.0
        %2906 = vmatprep.subr.mxu0 0.0
        %2907 = vmatpush1.msra.mxu0 0.0
        %2908 = vmatprep.subr.mxu0 0.0
        %2909 = vmatpush1.msra.mxu0 0.0
        %2910 = vmatprep.subr.mxu0 0.0
        %2911 = vmatpush1.msra.mxu0 0.0
        %2912 = vmatprep.subr.mxu0 0.0
        %2913 = vmatpush1.msra.mxu0 0.0
        %2914 = vmatprep.subr.mxu0 0.0
        %2915 = vmatpush1.msra.mxu0 0.0
        %2916 = vmatprep.subr.mxu0 0.0
        %2917 = vmatpush1.msra.mxu0 0.0
        %2918 = vmatprep.mubr.f32.mxu0 0.0
        %v2919 = vand.u32 %v2357, 4294901760
        %v2920 = vsub.f32 %v2357, %v2919
        %v2921 = vand.u32 %v2920, 4294901760
        %v2922 = vsub.f32 %v2920, %v2921
        %v2923 = vand.u32 %v2922, 4294901760
        %2924 = vmatmul.mubr.f32.gmra.mrb[0].mxu0 %v2923
        %v2925 = vpop.f32.mrb[0].mxu0
        %v2926 = vadd.f32 %v2353, %v2925
        %v2927 = vpop.f32.mrb[0].mxu0
        %v2928 = vadd.f32 %v2353, %v2927
        %2929 = vdwg.mxu0
        %v2930 = vand.u32 %v2345, 4294901760
        %v2931 = vsub.f32 %v2345, %v2930
        %v2932 = vand.u32 %v2931, 4294901760
        %v2933 = vsub.f32 %v2931, %v2932
        %v2934 = vand.u32 %v2933, 4294901760
        %2935 = vmatprep.subr.mxu0 %v2934
        %v2936 = vand.u32 %v2344, 4294901760
        %v2937 = vsub.f32 %v2344, %v2936
        %v2938 = vand.u32 %v2937, 4294901760
        %v2939 = vsub.f32 %v2937, %v2938
        %v2940 = vand.u32 %v2939, 4294901760
        %2941 = vmatpush1.msra.mxu0 %v2940
        %v2942 = vand.u32 %v2349, 4294901760
        %v2943 = vsub.f32 %v2349, %v2942
        %v2944 = vand.u32 %v2943, 4294901760
        %v2945 = vsub.f32 %v2943, %v2944
        %v2946 = vand.u32 %v2945, 4294901760
        %2947 = vmatprep.subr.mxu0 %v2946
        %v2948 = vand.u32 %v2348, 4294901760
        %v2949 = vsub.f32 %v2348, %v2948
        %v2950 = vand.u32 %v2949, 4294901760
        %v2951 = vsub.f32 %v2949, %v2950
        %v2952 = vand.u32 %v2951, 4294901760
        %2953 = vmatpush1.msra.mxu0 %v2952
        %2954 = vmatprep.subr.mxu0 0.0
        %2955 = vmatpush1.msra.mxu0 0.0
        %2956 = vmatprep.subr.mxu0 0.0
        %2957 = vmatpush1.msra.mxu0 0.0
        %2958 = vmatprep.subr.mxu0 0.0
        %2959 = vmatpush1.msra.mxu0 0.0
        %2960 = vmatprep.subr.mxu0 0.0
        %2961 = vmatpush1.msra.mxu0 0.0
        %2962 = vmatprep.subr.mxu0 0.0
        %2963 = vmatpush1.msra.mxu0 0.0
        %2964 = vmatprep.subr.mxu0 0.0
        %2965 = vmatpush1.msra.mxu0 0.0
        %2966 = vmatprep.subr.mxu0 0.0
        %2967 = vmatpush1.msra.mxu0 0.0
        %2968 = vmatprep.subr.mxu0 0.0
        %2969 = vmatpush1.msra.mxu0 0.0
        %2970 = vmatprep.subr.mxu0 0.0
        %2971 = vmatpush1.msra.mxu0 0.0
        %2972 = vmatprep.subr.mxu0 0.0
        %2973 = vmatpush1.msra.mxu0 0.0
        %2974 = vmatprep.subr.mxu0 0.0
        %2975 = vmatpush1.msra.mxu0 0.0
        %2976 = vmatprep.subr.mxu0 0.0
        %2977 = vmatpush1.msra.mxu0 0.0
        %2978 = vmatprep.subr.mxu0 0.0
        %2979 = vmatpush1.msra.mxu0 0.0
        %2980 = vmatprep.subr.mxu0 0.0
        %2981 = vmatpush1.msra.mxu0 0.0
        %2982 = vmatprep.subr.mxu0 0.0
        %2983 = vmatpush1.msra.mxu0 0.0
        %2984 = vmatprep.subr.mxu0 0.0
        %2985 = vmatpush1.msra.mxu0 0.0
        %2986 = vmatprep.subr.mxu0 0.0
        %2987 = vmatpush1.msra.mxu0 0.0
        %2988 = vmatprep.subr.mxu0 0.0
        %2989 = vmatpush1.msra.mxu0 0.0
        %2990 = vmatprep.subr.mxu0 0.0
        %2991 = vmatpush1.msra.mxu0 0.0
        %2992 = vmatprep.subr.mxu0 0.0
        %2993 = vmatpush1.msra.mxu0 0.0
        %2994 = vmatprep.subr.mxu0 0.0
        %2995 = vmatpush1.msra.mxu0 0.0
        %2996 = vmatprep.subr.mxu0 0.0
        %2997 = vmatpush1.msra.mxu0 0.0
        %2998 = vmatprep.subr.mxu0 0.0
        %2999 = vmatpush1.msra.mxu0 0.0
        %3000 = vmatprep.subr.mxu0 0.0
        %3001 = vmatpush1.msra.mxu0 0.0
        %3002 = vmatprep.subr.mxu0 0.0
        %3003 = vmatpush1.msra.mxu0 0.0
        %3004 = vmatprep.subr.mxu0 0.0
        %3005 = vmatpush1.msra.mxu0 0.0
        %3006 = vmatprep.subr.mxu0 0.0
        %3007 = vmatpush1.msra.mxu0 0.0
        %3008 = vmatprep.subr.mxu0 0.0
        %3009 = vmatpush1.msra.mxu0 0.0
        %3010 = vmatprep.subr.mxu0 0.0
        %3011 = vmatpush1.msra.mxu0 0.0
        %3012 = vmatprep.subr.mxu0 0.0
        %3013 = vmatpush1.msra.mxu0 0.0
        %3014 = vmatprep.mubr.f32.mxu0 0.0
        %v3015 = vand.u32 %v2357, 4294901760
        %3016 = vmatmul.mubr.f32.gmra.mrb[0].mxu0 %v3015
        %v3017 = vpop.f32.mrb[0].mxu0
        %v3018 = vadd.f32 %v2926, %v3017
        %v3019 = vpop.f32.mrb[0].mxu0
        %v3020 = vadd.f32 %v2928, %v3019
        %3021 = vdwg.mxu0
        %v3022 = vand.u32 %v2345, 4294901760
        %v3023 = vsub.f32 %v2345, %v3022
        %3024 = vmatprep.subr.mxu0 %v3023
        %v3025 = vand.u32 %v2344, 4294901760
        %v3026 = vsub.f32 %v2344, %v3025
        %3027 = vmatpush1.msra.mxu0 %v3026
        %v3028 = vand.u32 %v2349, 4294901760
        %v3029 = vsub.f32 %v2349, %v3028
        %3030 = vmatprep.subr.mxu0 %v3029
        %v3031 = vand.u32 %v2348, 4294901760
        %v3032 = vsub.f32 %v2348, %v3031
        %3033 = vmatpush1.msra.mxu0 %v3032
        %3034 = vmatprep.subr.mxu0 0.0
        %3035 = vmatpush1.msra.mxu0 0.0
        %3036 = vmatprep.subr.mxu0 0.0
        %3037 = vmatpush1.msra.mxu0 0.0
        %3038 = vmatprep.subr.mxu0 0.0
        %3039 = vmatpush1.msra.mxu0 0.0
        %3040 = vmatprep.subr.mxu0 0.0
        %3041 = vmatpush1.msra.mxu0 0.0
        %3042 = vmatprep.subr.mxu0 0.0
        %3043 = vmatpush1.msra.mxu0 0.0
        %3044 = vmatprep.subr.mxu0 0.0
        %3045 = vmatpush1.msra.mxu0 0.0
        %3046 = vmatprep.subr.mxu0 0.0
        %3047 = vmatpush1.msra.mxu0 0.0
        %3048 = vmatprep.subr.mxu0 0.0
        %3049 = vmatpush1.msra.mxu0 0.0
        %3050 = vmatprep.subr.mxu0 0.0
        %3051 = vmatpush1.msra.mxu0 0.0
        %3052 = vmatprep.subr.mxu0 0.0
        %3053 = vmatpush1.msra.mxu0 0.0
        %3054 = vmatprep.subr.mxu0 0.0
        %3055 = vmatpush1.msra.mxu0 0.0
        %3056 = vmatprep.subr.mxu0 0.0
        %3057 = vmatpush1.msra.mxu0 0.0
        %3058 = vmatprep.subr.mxu0 0.0
        %3059 = vmatpush1.msra.mxu0 0.0
        %3060 = vmatprep.subr.mxu0 0.0
        %3061 = vmatpush1.msra.mxu0 0.0
        %3062 = vmatprep.subr.mxu0 0.0
        %3063 = vmatpush1.msra.mxu0 0.0
        %3064 = vmatprep.subr.mxu0 0.0
        %3065 = vmatpush1.msra.mxu0 0.0
        %3066 = vmatprep.subr.mxu0 0.0
        %3067 = vmatpush1.msra.mxu0 0.0
        %3068 = vmatprep.subr.mxu0 0.0
        %3069 = vmatpush1.msra.mxu0 0.0
        %3070 = vmatprep.subr.mxu0 0.0
        %3071 = vmatpush1.msra.mxu0 0.0
        %3072 = vmatprep.subr.mxu0 0.0
        %3073 = vmatpush1.msra.mxu0 0.0
        %3074 = vmatprep.subr.mxu0 0.0
        %3075 = vmatpush1.msra.mxu0 0.0
        %3076 = vmatprep.subr.mxu0 0.0
        %3077 = vmatpush1.msra.mxu0 0.0
        %3078 = vmatprep.subr.mxu0 0.0
        %3079 = vmatpush1.msra.mxu0 0.0
        %3080 = vmatprep.subr.mxu0 0.0
        %3081 = vmatpush1.msra.mxu0 0.0
        %3082 = vmatprep.subr.mxu0 0.0
        %3083 = vmatpush1.msra.mxu0 0.0
        %3084 = vmatprep.subr.mxu0 0.0
        %3085 = vmatpush1.msra.mxu0 0.0
        %3086 = vmatprep.subr.mxu0 0.0
        %3087 = vmatpush1.msra.mxu0 0.0
        %3088 = vmatprep.subr.mxu0 0.0
        %3089 = vmatpush1.msra.mxu0 0.0
        %3090 = vmatprep.subr.mxu0 0.0
        %3091 = vmatpush1.msra.mxu0 0.0
        %3092 = vmatprep.subr.mxu0 0.0
        %3093 = vmatpush1.msra.mxu0 0.0
        %3094 = vmatprep.mubr.f32.mxu0 0.0
        %v3095 = vand.u32 %v2357, 4294901760
        %v3096 = vsub.f32 %v2357, %v3095
        %3097 = vmatmul.mubr.f32.gmra.mrb[0].mxu0 %v3096
        %v3098 = vpop.f32.mrb[0].mxu0
        %v3099 = vadd.f32 %v3018, %v3098
        %v3100 = vpop.f32.mrb[0].mxu0
        %v3101 = vadd.f32 %v3020, %v3100
        %3102 = vdwg.mxu0
        %v3103 = vand.u32 %v2345, 4294901760
        %3104 = vmatprep.subr.mxu0 %v3103
        %v3105 = vand.u32 %v2344, 4294901760
        %3106 = vmatpush1.msra.mxu0 %v3105
        %v3107 = vand.u32 %v2349, 4294901760
        %3108 = vmatprep.subr.mxu0 %v3107
        %v3109 = vand.u32 %v2348, 4294901760
        %3110 = vmatpush1.msra.mxu0 %v3109
        %3111 = vmatprep.subr.mxu0 0.0
        %3112 = vmatpush1.msra.mxu0 0.0
        %3113 = vmatprep.subr.mxu0 0.0
        %3114 = vmatpush1.msra.mxu0 0.0
        %3115 = vmatprep.subr.mxu0 0.0
        %3116 = vmatpush1.msra.mxu0 0.0
        %3117 = vmatprep.subr.mxu0 0.0
        %3118 = vmatpush1.msra.mxu0 0.0
        %3119 = vmatprep.subr.mxu0 0.0
        %3120 = vmatpush1.msra.mxu0 0.0
        %3121 = vmatprep.subr.mxu0 0.0
        %3122 = vmatpush1.msra.mxu0 0.0
        %3123 = vmatprep.subr.mxu0 0.0
        %3124 = vmatpush1.msra.mxu0 0.0
        %3125 = vmatprep.subr.mxu0 0.0
        %3126 = vmatpush1.msra.mxu0 0.0
        %3127 = vmatprep.subr.mxu0 0.0
        %3128 = vmatpush1.msra.mxu0 0.0
        %3129 = vmatprep.subr.mxu0 0.0
        %3130 = vmatpush1.msra.mxu0 0.0
        %3131 = vmatprep.subr.mxu0 0.0
        %3132 = vmatpush1.msra.mxu0 0.0
        %3133 = vmatprep.subr.mxu0 0.0
        %3134 = vmatpush1.msra.mxu0 0.0
        %3135 = vmatprep.subr.mxu0 0.0
        %3136 = vmatpush1.msra.mxu0 0.0
        %3137 = vmatprep.subr.mxu0 0.0
        %3138 = vmatpush1.msra.mxu0 0.0
        %3139 = vmatprep.subr.mxu0 0.0
        %3140 = vmatpush1.msra.mxu0 0.0
        %3141 = vmatprep.subr.mxu0 0.0
        %3142 = vmatpush1.msra.mxu0 0.0
        %3143 = vmatprep.subr.mxu0 0.0
        %3144 = vmatpush1.msra.mxu0 0.0
        %3145 = vmatprep.subr.mxu0 0.0
        %3146 = vmatpush1.msra.mxu0 0.0
        %3147 = vmatprep.subr.mxu0 0.0
        %3148 = vmatpush1.msra.mxu0 0.0
        %3149 = vmatprep.subr.mxu0 0.0
        %3150 = vmatpush1.msra.mxu0 0.0
        %3151 = vmatprep.subr.mxu0 0.0
        %3152 = vmatpush1.msra.mxu0 0.0
        %3153 = vmatprep.subr.mxu0 0.0
        %3154 = vmatpush1.msra.mxu0 0.0
        %3155 = vmatprep.subr.mxu0 0.0
        %3156 = vmatpush1.msra.mxu0 0.0
        %3157 = vmatprep.subr.mxu0 0.0
        %3158 = vmatpush1.msra.mxu0 0.0
        %3159 = vmatprep.subr.mxu0 0.0
        %3160 = vmatpush1.msra.mxu0 0.0
        %3161 = vmatprep.subr.mxu0 0.0
        %3162 = vmatpush1.msra.mxu0 0.0
        %3163 = vmatprep.subr.mxu0 0.0
        %3164 = vmatpush1.msra.mxu0 0.0
        %3165 = vmatprep.subr.mxu0 0.0
        %3166 = vmatpush1.msra.mxu0 0.0
        %3167 = vmatprep.subr.mxu0 0.0
        %3168 = vmatpush1.msra.mxu0 0.0
        %3169 = vmatprep.subr.mxu0 0.0
        %3170 = vmatpush1.msra.mxu0 0.0
        %3171 = vmatprep.mubr.f32.mxu0 0.0
        %v3172 = vand.u32 %v2357, 4294901760
        %v3173 = vsub.f32 %v2357, %v3172
        %v3174 = vand.u32 %v3173, 4294901760
        %3175 = vmatmul.mubr.f32.gmra.mrb[0].mxu0 %v3174
        %v3176 = vpop.f32.mrb[0].mxu0
        %v3177 = vadd.f32 %v3099, %v3176
        %v3178 = vpop.f32.mrb[0].mxu0
        %v3179 = vadd.f32 %v3101, %v3178
        %3180 = vdwg.mxu0
        %v3181 = vand.u32 %v2345, 4294901760
        %v3182 = vsub.f32 %v2345, %v3181
        %v3183 = vand.u32 %v3182, 4294901760
        %3184 = vmatprep.subr.mxu0 %v3183
        %v3185 = vand.u32 %v2344, 4294901760
        %v3186 = vsub.f32 %v2344, %v3185
        %v3187 = vand.u32 %v3186, 4294901760
        %3188 = vmatpush1.msra.mxu0 %v3187
        %v3189 = vand.u32 %v2349, 4294901760
        %v3190 = vsub.f32 %v2349, %v3189
        %v3191 = vand.u32 %v3190, 4294901760
        %3192 = vmatprep.subr.mxu0 %v3191
        %v3193 = vand.u32 %v2348, 4294901760
        %v3194 = vsub.f32 %v2348, %v3193
        %v3195 = vand.u32 %v3194, 4294901760
        %3196 = vmatpush1.msra.mxu0 %v3195
        %3197 = vmatprep.subr.mxu0 0.0
        %3198 = vmatpush1.msra.mxu0 0.0
        %3199 = vmatprep.subr.mxu0 0.0
        %3200 = vmatpush1.msra.mxu0 0.0
        %3201 = vmatprep.subr.mxu0 0.0
        %3202 = vmatpush1.msra.mxu0 0.0
        %3203 = vmatprep.subr.mxu0 0.0
        %3204 = vmatpush1.msra.mxu0 0.0
        %3205 = vmatprep.subr.mxu0 0.0
        %3206 = vmatpush1.msra.mxu0 0.0
        %3207 = vmatprep.subr.mxu0 0.0
        %3208 = vmatpush1.msra.mxu0 0.0
        %3209 = vmatprep.subr.mxu0 0.0
        %3210 = vmatpush1.msra.mxu0 0.0
        %3211 = vmatprep.subr.mxu0 0.0
        %3212 = vmatpush1.msra.mxu0 0.0
        %3213 = vmatprep.subr.mxu0 0.0
        %3214 = vmatpush1.msra.mxu0 0.0
        %3215 = vmatprep.subr.mxu0 0.0
        %3216 = vmatpush1.msra.mxu0 0.0
        %3217 = vmatprep.subr.mxu0 0.0
        %3218 = vmatpush1.msra.mxu0 0.0
        %3219 = vmatprep.subr.mxu0 0.0
        %3220 = vmatpush1.msra.mxu0 0.0
        %3221 = vmatprep.subr.mxu0 0.0
        %3222 = vmatpush1.msra.mxu0 0.0
        %3223 = vmatprep.subr.mxu0 0.0
        %3224 = vmatpush1.msra.mxu0 0.0
        %3225 = vmatprep.subr.mxu0 0.0
        %3226 = vmatpush1.msra.mxu0 0.0
        %3227 = vmatprep.subr.mxu0 0.0
        %3228 = vmatpush1.msra.mxu0 0.0
        %3229 = vmatprep.subr.mxu0 0.0
        %3230 = vmatpush1.msra.mxu0 0.0
        %3231 = vmatprep.subr.mxu0 0.0
        %3232 = vmatpush1.msra.mxu0 0.0
        %3233 = vmatprep.subr.mxu0 0.0
        %3234 = vmatpush1.msra.mxu0 0.0
        %3235 = vmatprep.subr.mxu0 0.0
        %3236 = vmatpush1.msra.mxu0 0.0
        %3237 = vmatprep.subr.mxu0 0.0
        %3238 = vmatpush1.msra.mxu0 0.0
        %3239 = vmatprep.subr.mxu0 0.0
        %3240 = vmatpush1.msra.mxu0 0.0
        %3241 = vmatprep.subr.mxu0 0.0
        %3242 = vmatpush1.msra.mxu0 0.0
        %3243 = vmatprep.subr.mxu0 0.0
        %3244 = vmatpush1.msra.mxu0 0.0
        %3245 = vmatprep.subr.mxu0 0.0
        %3246 = vmatpush1.msra.mxu0 0.0
        %3247 = vmatprep.subr.mxu0 0.0
        %3248 = vmatpush1.msra.mxu0 0.0
        %3249 = vmatprep.subr.mxu0 0.0
        %3250 = vmatpush1.msra.mxu0 0.0
        %3251 = vmatprep.subr.mxu0 0.0
        %3252 = vmatpush1.msra.mxu0 0.0
        %3253 = vmatprep.subr.mxu0 0.0
        %3254 = vmatpush1.msra.mxu0 0.0
        %3255 = vmatprep.subr.mxu0 0.0
        %3256 = vmatpush1.msra.mxu0 0.0
        %3257 = vmatprep.mubr.f32.mxu0 0.0
        %v3258 = vand.u32 %v2357, 4294901760
        %3259 = vmatmul.mubr.f32.gmra.mrb[0].mxu0 %v3258
        %v3260 = vpop.f32.mrb[0].mxu0
        %v3261 = vadd.f32 %v3177, %v3260
        %v3262 = vpop.f32.mrb[0].mxu0
        %v3263 = vadd.f32 %v3179, %v3262
        %3264 = vdwg.mxu0
        %v3265 = vand.u32 %v2345, 4294901760
        %3266 = vmatprep.subr.mxu0 %v3265
        %v3267 = vand.u32 %v2344, 4294901760
        %3268 = vmatpush1.msra.mxu0 %v3267
        %v3269 = vand.u32 %v2349, 4294901760
        %3270 = vmatprep.subr.mxu0 %v3269
        %v3271 = vand.u32 %v2348, 4294901760
        %3272 = vmatpush1.msra.mxu0 %v3271
        %3273 = vmatprep.subr.mxu0 0.0
        %3274 = vmatpush1.msra.mxu0 0.0
        %3275 = vmatprep.subr.mxu0 0.0
        %3276 = vmatpush1.msra.mxu0 0.0
        %3277 = vmatprep.subr.mxu0 0.0
        %3278 = vmatpush1.msra.mxu0 0.0
        %3279 = vmatprep.subr.mxu0 0.0
        %3280 = vmatpush1.msra.mxu0 0.0
        %3281 = vmatprep.subr.mxu0 0.0
        %3282 = vmatpush1.msra.mxu0 0.0
        %3283 = vmatprep.subr.mxu0 0.0
        %3284 = vmatpush1.msra.mxu0 0.0
        %3285 = vmatprep.subr.mxu0 0.0
        %3286 = vmatpush1.msra.mxu0 0.0
        %3287 = vmatprep.subr.mxu0 0.0
        %3288 = vmatpush1.msra.mxu0 0.0
        %3289 = vmatprep.subr.mxu0 0.0
        %3290 = vmatpush1.msra.mxu0 0.0
        %3291 = vmatprep.subr.mxu0 0.0
        %3292 = vmatpush1.msra.mxu0 0.0
        %3293 = vmatprep.subr.mxu0 0.0
        %3294 = vmatpush1.msra.mxu0 0.0
        %3295 = vmatprep.subr.mxu0 0.0
        %3296 = vmatpush1.msra.mxu0 0.0
        %3297 = vmatprep.subr.mxu0 0.0
        %3298 = vmatpush1.msra.mxu0 0.0
        %3299 = vmatprep.subr.mxu0 0.0
        %3300 = vmatpush1.msra.mxu0 0.0
        %3301 = vmatprep.subr.mxu0 0.0
        %3302 = vmatpush1.msra.mxu0 0.0
        %3303 = vmatprep.subr.mxu0 0.0
        %3304 = vmatpush1.msra.mxu0 0.0
        %3305 = vmatprep.subr.mxu0 0.0
        %3306 = vmatpush1.msra.mxu0 0.0
        %3307 = vmatprep.subr.mxu0 0.0
        %3308 = vmatpush1.msra.mxu0 0.0
        %3309 = vmatprep.subr.mxu0 0.0
        %3310 = vmatpush1.msra.mxu0 0.0
        %3311 = vmatprep.subr.mxu0 0.0
        %3312 = vmatpush1.msra.mxu0 0.0
        %3313 = vmatprep.subr.mxu0 0.0
        %3314 = vmatpush1.msra.mxu0 0.0
        %3315 = vmatprep.subr.mxu0 0.0
        %3316 = vmatpush1.msra.mxu0 0.0
        %3317 = vmatprep.subr.mxu0 0.0
        %3318 = vmatpush1.msra.mxu0 0.0
        %3319 = vmatprep.subr.mxu0 0.0
        %3320 = vmatpush1.msra.mxu0 0.0
        %3321 = vmatprep.subr.mxu0 0.0
        %3322 = vmatpush1.msra.mxu0 0.0
        %3323 = vmatprep.subr.mxu0 0.0
        %3324 = vmatpush1.msra.mxu0 0.0
        %3325 = vmatprep.subr.mxu0 0.0
        %3326 = vmatpush1.msra.mxu0 0.0
        %3327 = vmatprep.subr.mxu0 0.0
        %3328 = vmatpush1.msra.mxu0 0.0
        %3329 = vmatprep.subr.mxu0 0.0
        %3330 = vmatpush1.msra.mxu0 0.0
        %3331 = vmatprep.subr.mxu0 0.0
        %3332 = vmatpush1.msra.mxu0 0.0
        %3333 = vmatprep.mubr.f32.mxu0 0.0
        %v3334 = vand.u32 %v2357, 4294901760
        %3335 = vmatmul.mubr.f32.gmra.mrb[0].mxu0 %v3334
        %v3336 = vpop.f32.mrb[0].mxu0
        %v3337 = vadd.f32 %v3261, %v3336
        %v3338 = vpop.f32.mrb[0].mxu0
        %v3339 = vadd.f32 %v3263, %v3338
        %3340 = vdwg.mxu0
        %v3341 = vmax.f32 %v2846, 0.0
        %v3342 = vmax.f32 %v2848, 0.0
        %v3343 = vmax.f32 %v3337, 0.0
        %v3344 = vmax.f32 %v3339, 0.0
        %vm3345 = vcmask 31744
        %v3347 = vsel %vm3345, %v197, 0
        %v3350 = vsel %vm3345, %v263, 0
        %v3353 = vsel %vm3345, %v264, 0
        %v3356 = vsel %vm3345, %v265, 0
        %v3359 = vsel %vm3345, %v266, 0
        %v3362 = vsel %vm3345, %v267, 0
        %v3365 = vsel %vm3345, %v268, 0
        %v3368 = vsel %vm3345, %v269, 0
        %v3371 = vsel %vm3345, %v270, 0
        %v3374 = vsel %vm3345, %v271, 0
        %v3377 = vsel %vm3345, %v272, 0
        %v3380 = vsel %vm3345, %v273, 0
        %v3383 = vsel %vm3345, %v274, 0
        %v3386 = vsel %vm3345, %v275, 0
        %v3389 = vsel %vm3345, %v276, 0
        %v3392 = vsel %vm3345, %v277, 0
        %v3395 = vsel %vm3345, %v278, 0
        %v3398 = vsel %vm3345, %v279, 0
        %v3401 = vsel %vm3345, %v280, 0
        %v3404 = vsel %vm3345, %v281, 0
        %v3407 = vsel %vm3345, %v282, 0
        %v3410 = vsel %vm3345, %v283, 0
        %v3413 = vsel %vm3345, %v284, 0
        %v3416 = vsel %vm3345, %v285, 0
        %v3419 = vsel %vm3345, %v286, 0
        %v3422 = vsel %vm3345, %v287, 0
        %v3425 = vsel %vm3345, %v288, 0
        %v3428 = vsel %vm3345, %v289, 0
        %v3431 = vsel %vm3345, %v290, 0
        %v3434 = vsel %vm3345, %v291, 0
        %v3437 = vsel %vm3345, %v292, 0
        %v3440 = vsel %vm3345, %v293, 0
        %v3443 = vsel %vm3345, %v294, 0
        %v3446 = vsel %vm3345, %v295, 0
        %v3449 = vsel %vm3345, %v296, 0
        %v3452 = vsel %vm3345, %v297, 0
        %v3455 = vsel %vm3345, %v298, 0
        %v3458 = vsel %vm3345, %v299, 0
        %v3461 = vsel %vm3345, %v300, 0
        %v3464 = vsel %vm3345, %v301, 0
        %v3467 = vsel %vm3345, %v302, 0
        %v3470 = vsel %vm3345, %v303, 0
        %v3473 = vsel %vm3345, %v304, 0
        %v3476 = vsel %vm3345, %v305, 0
        %v3479 = vsel %vm3345, %v306, 0
        %v3482 = vsel %vm3345, %v307, 0
        %v3485 = vsel %vm3345, %v308, 0
        %v3488 = vsel %vm3345, %v309, 0
        %v3491 = vsel %vm3345, %v310, 0
        %v3494 = vsel %vm3345, %v311, 0
        %v3497 = vsel %vm3345, %v312, 0
        %v3500 = vsel %vm3345, %v313, 0
        %v3503 = vsel %vm3345, %v314, 0
        %v3506 = vsel %vm3345, %v315, 0
        %v3509 = vsel %vm3345, %v316, 0
        %v3512 = vsel %vm3345, %v317, 0
        %v3515 = vsel %vm3345, %v318, 0
        %v3518 = vsel %vm3345, %v319, 0
        %v3521 = vsel %vm3345, %v320, 0
        %v3524 = vsel %vm3345, %v321, 0
        %v3527 = vsel %vm3345, %v322, 0
        %v3530 = vsel %vm3345, %v323, 0
        %v3533 = vsel %vm3345, %v324, 0
        %v3536 = vsel %vm3345, %v325, 0
        %v3539 = vsel %vm3345, %v326, 0
        %3541 = vmatprep.subr.mxu0 0.0
        %v3542 = vand.u32 %v3350, 4294901760
        %3543 = vmatpush1.xpose.msra.mxu0 %v3542
        %3544 = vmatprep.subr.mxu0 0.0
        %v3545 = vand.u32 %v3353, 4294901760
        %3546 = vmatpush1.xpose.msra.mxu0 %v3545
        %3547 = vmatprep.subr.mxu0 0.0
        %v3548 = vand.u32 %v3356, 4294901760
        %3549 = vmatpush1.xpose.msra.mxu0 %v3548
        %3550 = vmatprep.subr.mxu0 0.0
        %v3551 = vand.u32 %v3359, 4294901760
        %3552 = vmatpush1.xpose.msra.mxu0 %v3551
        %3553 = vmatprep.subr.mxu0 0.0
        %v3554 = vand.u32 %v3362, 4294901760
        %3555 = vmatpush1.xpose.msra.mxu0 %v3554
        %3556 = vmatprep.subr.mxu0 0.0
        %v3557 = vand.u32 %v3365, 4294901760
        %3558 = vmatpush1.xpose.msra.mxu0 %v3557
        %3559 = vmatprep.subr.mxu0 0.0
        %v3560 = vand.u32 %v3368, 4294901760
        %3561 = vmatpush1.xpose.msra.mxu0 %v3560
        %3562 = vmatprep.subr.mxu0 0.0
        %v3563 = vand.u32 %v3371, 4294901760
        %3564 = vmatpush1.xpose.msra.mxu0 %v3563
        %3565 = vmatprep.subr.mxu0 0.0
        %v3566 = vand.u32 %v3374, 4294901760
        %3567 = vmatpush1.xpose.msra.mxu0 %v3566
        %3568 = vmatprep.subr.mxu0 0.0
        %v3569 = vand.u32 %v3377, 4294901760
        %3570 = vmatpush1.xpose.msra.mxu0 %v3569
        %3571 = vmatprep.subr.mxu0 0.0
        %v3572 = vand.u32 %v3380, 4294901760
        %3573 = vmatpush1.xpose.msra.mxu0 %v3572
        %3574 = vmatprep.subr.mxu0 0.0
        %v3575 = vand.u32 %v3383, 4294901760
        %3576 = vmatpush1.xpose.msra.mxu0 %v3575
        %3577 = vmatprep.subr.mxu0 0.0
        %v3578 = vand.u32 %v3386, 4294901760
        %3579 = vmatpush1.xpose.msra.mxu0 %v3578
        %3580 = vmatprep.subr.mxu0 0.0
        %v3581 = vand.u32 %v3389, 4294901760
        %3582 = vmatpush1.xpose.msra.mxu0 %v3581
        %3583 = vmatprep.subr.mxu0 0.0
        %v3584 = vand.u32 %v3392, 4294901760
        %3585 = vmatpush1.xpose.msra.mxu0 %v3584
        %3586 = vmatprep.subr.mxu0 0.0
        %v3587 = vand.u32 %v3395, 4294901760
        %3588 = vmatpush1.xpose.msra.mxu0 %v3587
        %3589 = vmatprep.subr.mxu0 0.0
        %v3590 = vand.u32 %v3398, 4294901760
        %3591 = vmatpush1.xpose.msra.mxu0 %v3590
        %3592 = vmatprep.subr.mxu0 0.0
        %v3593 = vand.u32 %v3401, 4294901760
        %3594 = vmatpush1.xpose.msra.mxu0 %v3593
        %3595 = vmatprep.subr.mxu0 0.0
        %v3596 = vand.u32 %v3404, 4294901760
        %3597 = vmatpush1.xpose.msra.mxu0 %v3596
        %3598 = vmatprep.subr.mxu0 0.0
        %v3599 = vand.u32 %v3407, 4294901760
        %3600 = vmatpush1.xpose.msra.mxu0 %v3599
        %3601 = vmatprep.subr.mxu0 0.0
        %v3602 = vand.u32 %v3410, 4294901760
        %3603 = vmatpush1.xpose.msra.mxu0 %v3602
        %3604 = vmatprep.subr.mxu0 0.0
        %v3605 = vand.u32 %v3413, 4294901760
        %3606 = vmatpush1.xpose.msra.mxu0 %v3605
        %3607 = vmatprep.subr.mxu0 0.0
        %v3608 = vand.u32 %v3416, 4294901760
        %3609 = vmatpush1.xpose.msra.mxu0 %v3608
        %3610 = vmatprep.subr.mxu0 0.0
        %v3611 = vand.u32 %v3419, 4294901760
        %3612 = vmatpush1.xpose.msra.mxu0 %v3611
        %3613 = vmatprep.subr.mxu0 0.0
        %v3614 = vand.u32 %v3422, 4294901760
        %3615 = vmatpush1.xpose.msra.mxu0 %v3614
        %3616 = vmatprep.subr.mxu0 0.0
        %v3617 = vand.u32 %v3425, 4294901760
        %3618 = vmatpush1.xpose.msra.mxu0 %v3617
        %3619 = vmatprep.subr.mxu0 0.0
        %v3620 = vand.u32 %v3428, 4294901760
        %3621 = vmatpush1.xpose.msra.mxu0 %v3620
        %3622 = vmatprep.subr.mxu0 0.0
        %v3623 = vand.u32 %v3431, 4294901760
        %3624 = vmatpush1.xpose.msra.mxu0 %v3623
        %3625 = vmatprep.subr.mxu0 0.0
        %v3626 = vand.u32 %v3434, 4294901760
        %3627 = vmatpush1.xpose.msra.mxu0 %v3626
        %3628 = vmatprep.subr.mxu0 0.0
        %v3629 = vand.u32 %v3437, 4294901760
        %3630 = vmatpush1.xpose.msra.mxu0 %v3629
        %3631 = vmatprep.subr.mxu0 0.0
        %v3632 = vand.u32 %v3440, 4294901760
        %3633 = vmatpush1.xpose.msra.mxu0 %v3632
        %3634 = vmatprep.subr.mxu0 0.0
        %v3635 = vand.u32 %v3443, 4294901760
        %3636 = vmatpush1.xpose.msra.mxu0 %v3635
        %3637 = vmatprep.mubr.f32.mxu0 0.0
        %v3638 = vand.u32 %v3347, 4294901760
        %v3639 = vsub.f32 %v3347, %v3638
        %v3640 = vand.u32 %v3639, 4294901760
        %v3641 = vsub.f32 %v3639, %v3640
        %v3642 = vand.u32 %v3641, 4294901760
        %3643 = vmatmul.mubr.f32.gmra.mrb[0].mxu0 %v3642
        %v3644 = vpop.f32.mrb[0].mxu0
        %v3645 = vadd.f32 0.0, %v3644
        %v3646 = vpop.f32.mrb[0].mxu0
        %v3647 = vadd.f32 0.0, %v3646
        %3648 = vdwg.mxu0
        %3649 = vmatprep.subr.mxu0 0.0
        %v3650 = vand.u32 %v3350, 4294901760
        %v3651 = vsub.f32 %v3350, %v3650
        %v3652 = vand.u32 %v3651, 4294901760
        %v3653 = vsub.f32 %v3651, %v3652
        %v3654 = vand.u32 %v3653, 4294901760
        %3655 = vmatpush1.xpose.msra.mxu0 %v3654
        %3656 = vmatprep.subr.mxu0 0.0
        %v3657 = vand.u32 %v3353, 4294901760
        %v3658 = vsub.f32 %v3353, %v3657
        %v3659 = vand.u32 %v3658, 4294901760
        %v3660 = vsub.f32 %v3658, %v3659
        %v3661 = vand.u32 %v3660, 4294901760
        %3662 = vmatpush1.xpose.msra.mxu0 %v3661
        %3663 = vmatprep.subr.mxu0 0.0
        %v3664 = vand.u32 %v3356, 4294901760
        %v3665 = vsub.f32 %v3356, %v3664
        %v3666 = vand.u32 %v3665, 4294901760
        %v3667 = vsub.f32 %v3665, %v3666
        %v3668 = vand.u32 %v3667, 4294901760
        %3669 = vmatpush1.xpose.msra.mxu0 %v3668
        %3670 = vmatprep.subr.mxu0 0.0
        %v3671 = vand.u32 %v3359, 4294901760
        %v3672 = vsub.f32 %v3359, %v3671
        %v3673 = vand.u32 %v3672, 4294901760
        %v3674 = vsub.f32 %v3672, %v3673
        %v3675 = vand.u32 %v3674, 4294901760
        %3676 = vmatpush1.xpose.msra.mxu0 %v3675
        %3677 = vmatprep.subr.mxu0 0.0
        %v3678 = vand.u32 %v3362, 4294901760
        %v3679 = vsub.f32 %v3362, %v3678
        %v3680 = vand.u32 %v3679, 4294901760
        %v3681 = vsub.f32 %v3679, %v3680
        %v3682 = vand.u32 %v3681, 4294901760
        %3683 = vmatpush1.xpose.msra.mxu0 %v3682
        %3684 = vmatprep.subr.mxu0 0.0
        %v3685 = vand.u32 %v3365, 4294901760
        %v3686 = vsub.f32 %v3365, %v3685
        %v3687 = vand.u32 %v3686, 4294901760
        %v3688 = vsub.f32 %v3686, %v3687
        %v3689 = vand.u32 %v3688, 4294901760
        %3690 = vmatpush1.xpose.msra.mxu0 %v3689
        %3691 = vmatprep.subr.mxu0 0.0
        %v3692 = vand.u32 %v3368, 4294901760
        %v3693 = vsub.f32 %v3368, %v3692
        %v3694 = vand.u32 %v3693, 4294901760
        %v3695 = vsub.f32 %v3693, %v3694
        %v3696 = vand.u32 %v3695, 4294901760
        %3697 = vmatpush1.xpose.msra.mxu0 %v3696
        %3698 = vmatprep.subr.mxu0 0.0
        %v3699 = vand.u32 %v3371, 4294901760
        %v3700 = vsub.f32 %v3371, %v3699
        %v3701 = vand.u32 %v3700, 4294901760
        %v3702 = vsub.f32 %v3700, %v3701
        %v3703 = vand.u32 %v3702, 4294901760
        %3704 = vmatpush1.xpose.msra.mxu0 %v3703
        %3705 = vmatprep.subr.mxu0 0.0
        %v3706 = vand.u32 %v3374, 4294901760
        %v3707 = vsub.f32 %v3374, %v3706
        %v3708 = vand.u32 %v3707, 4294901760
        %v3709 = vsub.f32 %v3707, %v3708
        %v3710 = vand.u32 %v3709, 4294901760
        %3711 = vmatpush1.xpose.msra.mxu0 %v3710
        %3712 = vmatprep.subr.mxu0 0.0
        %v3713 = vand.u32 %v3377, 4294901760
        %v3714 = vsub.f32 %v3377, %v3713
        %v3715 = vand.u32 %v3714, 4294901760
        %v3716 = vsub.f32 %v3714, %v3715
        %v3717 = vand.u32 %v3716, 4294901760
        %3718 = vmatpush1.xpose.msra.mxu0 %v3717
        %3719 = vmatprep.subr.mxu0 0.0
        %v3720 = vand.u32 %v3380, 4294901760
        %v3721 = vsub.f32 %v3380, %v3720
        %v3722 = vand.u32 %v3721, 4294901760
        %v3723 = vsub.f32 %v3721, %v3722
        %v3724 = vand.u32 %v3723, 4294901760
        %3725 = vmatpush1.xpose.msra.mxu0 %v3724
        %3726 = vmatprep.subr.mxu0 0.0
        %v3727 = vand.u32 %v3383, 4294901760
        %v3728 = vsub.f32 %v3383, %v3727
        %v3729 = vand.u32 %v3728, 4294901760
        %v3730 = vsub.f32 %v3728, %v3729
        %v3731 = vand.u32 %v3730, 4294901760
        %3732 = vmatpush1.xpose.msra.mxu0 %v3731
        %3733 = vmatprep.subr.mxu0 0.0
        %v3734 = vand.u32 %v3386, 4294901760
        %v3735 = vsub.f32 %v3386, %v3734
        %v3736 = vand.u32 %v3735, 4294901760
        %v3737 = vsub.f32 %v3735, %v3736
        %v3738 = vand.u32 %v3737, 4294901760
        %3739 = vmatpush1.xpose.msra.mxu0 %v3738
        %3740 = vmatprep.subr.mxu0 0.0
        %v3741 = vand.u32 %v3389, 4294901760
        %v3742 = vsub.f32 %v3389, %v3741
        %v3743 = vand.u32 %v3742, 4294901760
        %v3744 = vsub.f32 %v3742, %v3743
        %v3745 = vand.u32 %v3744, 4294901760
        %3746 = vmatpush1.xpose.msra.mxu0 %v3745
        %3747 = vmatprep.subr.mxu0 0.0
        %v3748 = vand.u32 %v3392, 4294901760
        %v3749 = vsub.f32 %v3392, %v3748
        %v3750 = vand.u32 %v3749, 4294901760
        %v3751 = vsub.f32 %v3749, %v3750
        %v3752 = vand.u32 %v3751, 4294901760
        %3753 = vmatpush1.xpose.msra.mxu0 %v3752
        %3754 = vmatprep.subr.mxu0 0.0
        %v3755 = vand.u32 %v3395, 4294901760
        %v3756 = vsub.f32 %v3395, %v3755
        %v3757 = vand.u32 %v3756, 4294901760
        %v3758 = vsub.f32 %v3756, %v3757
        %v3759 = vand.u32 %v3758, 4294901760
        %3760 = vmatpush1.xpose.msra.mxu0 %v3759
        %3761 = vmatprep.subr.mxu0 0.0
        %v3762 = vand.u32 %v3398, 4294901760
        %v3763 = vsub.f32 %v3398, %v3762
        %v3764 = vand.u32 %v3763, 4294901760
        %v3765 = vsub.f32 %v3763, %v3764
        %v3766 = vand.u32 %v3765, 4294901760
        %3767 = vmatpush1.xpose.msra.mxu0 %v3766
        %3768 = vmatprep.subr.mxu0 0.0
        %v3769 = vand.u32 %v3401, 4294901760
        %v3770 = vsub.f32 %v3401, %v3769
        %v3771 = vand.u32 %v3770, 4294901760
        %v3772 = vsub.f32 %v3770, %v3771
        %v3773 = vand.u32 %v3772, 4294901760
        %3774 = vmatpush1.xpose.msra.mxu0 %v3773
        %3775 = vmatprep.subr.mxu0 0.0
        %v3776 = vand.u32 %v3404, 4294901760
        %v3777 = vsub.f32 %v3404, %v3776
        %v3778 = vand.u32 %v3777, 4294901760
        %v3779 = vsub.f32 %v3777, %v3778
        %v3780 = vand.u32 %v3779, 4294901760
        %3781 = vmatpush1.xpose.msra.mxu0 %v3780
        %3782 = vmatprep.subr.mxu0 0.0
        %v3783 = vand.u32 %v3407, 4294901760
        %v3784 = vsub.f32 %v3407, %v3783
        %v3785 = vand.u32 %v3784, 4294901760
        %v3786 = vsub.f32 %v3784, %v3785
        %v3787 = vand.u32 %v3786, 4294901760
        %3788 = vmatpush1.xpose.msra.mxu0 %v3787
        %3789 = vmatprep.subr.mxu0 0.0
        %v3790 = vand.u32 %v3410, 4294901760
        %v3791 = vsub.f32 %v3410, %v3790
        %v3792 = vand.u32 %v3791, 4294901760
        %v3793 = vsub.f32 %v3791, %v3792
        %v3794 = vand.u32 %v3793, 4294901760
        %3795 = vmatpush1.xpose.msra.mxu0 %v3794
        %3796 = vmatprep.subr.mxu0 0.0
        %v3797 = vand.u32 %v3413, 4294901760
        %v3798 = vsub.f32 %v3413, %v3797
        %v3799 = vand.u32 %v3798, 4294901760
        %v3800 = vsub.f32 %v3798, %v3799
        %v3801 = vand.u32 %v3800, 4294901760
        %3802 = vmatpush1.xpose.msra.mxu0 %v3801
        %3803 = vmatprep.subr.mxu0 0.0
        %v3804 = vand.u32 %v3416, 4294901760
        %v3805 = vsub.f32 %v3416, %v3804
        %v3806 = vand.u32 %v3805, 4294901760
        %v3807 = vsub.f32 %v3805, %v3806
        %v3808 = vand.u32 %v3807, 4294901760
        %3809 = vmatpush1.xpose.msra.mxu0 %v3808
        %3810 = vmatprep.subr.mxu0 0.0
        %v3811 = vand.u32 %v3419, 4294901760
        %v3812 = vsub.f32 %v3419, %v3811
        %v3813 = vand.u32 %v3812, 4294901760
        %v3814 = vsub.f32 %v3812, %v3813
        %v3815 = vand.u32 %v3814, 4294901760
        %3816 = vmatpush1.xpose.msra.mxu0 %v3815
        %3817 = vmatprep.subr.mxu0 0.0
        %v3818 = vand.u32 %v3422, 4294901760
        %v3819 = vsub.f32 %v3422, %v3818
        %v3820 = vand.u32 %v3819, 4294901760
        %v3821 = vsub.f32 %v3819, %v3820
        %v3822 = vand.u32 %v3821, 4294901760
        %3823 = vmatpush1.xpose.msra.mxu0 %v3822
        %3824 = vmatprep.subr.mxu0 0.0
        %v3825 = vand.u32 %v3425, 4294901760
        %v3826 = vsub.f32 %v3425, %v3825
        %v3827 = vand.u32 %v3826, 4294901760
        %v3828 = vsub.f32 %v3826, %v3827
        %v3829 = vand.u32 %v3828, 4294901760
        %3830 = vmatpush1.xpose.msra.mxu0 %v3829
        %3831 = vmatprep.subr.mxu0 0.0
        %v3832 = vand.u32 %v3428, 4294901760
        %v3833 = vsub.f32 %v3428, %v3832
        %v3834 = vand.u32 %v3833, 4294901760
        %v3835 = vsub.f32 %v3833, %v3834
        %v3836 = vand.u32 %v3835, 4294901760
        %3837 = vmatpush1.xpose.msra.mxu0 %v3836
        %3838 = vmatprep.subr.mxu0 0.0
        %v3839 = vand.u32 %v3431, 4294901760
        %v3840 = vsub.f32 %v3431, %v3839
        %v3841 = vand.u32 %v3840, 4294901760
        %v3842 = vsub.f32 %v3840, %v3841
        %v3843 = vand.u32 %v3842, 4294901760
        %3844 = vmatpush1.xpose.msra.mxu0 %v3843
        %3845 = vmatprep.subr.mxu0 0.0
        %v3846 = vand.u32 %v3434, 4294901760
        %v3847 = vsub.f32 %v3434, %v3846
        %v3848 = vand.u32 %v3847, 4294901760
        %v3849 = vsub.f32 %v3847, %v3848
        %v3850 = vand.u32 %v3849, 4294901760
        %3851 = vmatpush1.xpose.msra.mxu0 %v3850
        %3852 = vmatprep.subr.mxu0 0.0
        %v3853 = vand.u32 %v3437, 4294901760
        %v3854 = vsub.f32 %v3437, %v3853
        %v3855 = vand.u32 %v3854, 4294901760
        %v3856 = vsub.f32 %v3854, %v3855
        %v3857 = vand.u32 %v3856, 4294901760
        %3858 = vmatpush1.xpose.msra.mxu0 %v3857
        %3859 = vmatprep.subr.mxu0 0.0
        %v3860 = vand.u32 %v3440, 4294901760
        %v3861 = vsub.f32 %v3440, %v3860
        %v3862 = vand.u32 %v3861, 4294901760
        %v3863 = vsub.f32 %v3861, %v3862
        %v3864 = vand.u32 %v3863, 4294901760
        %3865 = vmatpush1.xpose.msra.mxu0 %v3864
        %3866 = vmatprep.subr.mxu0 0.0
        %v3867 = vand.u32 %v3443, 4294901760
        %v3868 = vsub.f32 %v3443, %v3867
        %v3869 = vand.u32 %v3868, 4294901760
        %v3870 = vsub.f32 %v3868, %v3869
        %v3871 = vand.u32 %v3870, 4294901760
        %3872 = vmatpush1.xpose.msra.mxu0 %v3871
        %3873 = vmatprep.mubr.f32.mxu0 0.0
        %v3874 = vand.u32 %v3347, 4294901760
        %3875 = vmatmul.mubr.f32.gmra.mrb[0].mxu0 %v3874
        %v3876 = vpop.f32.mrb[0].mxu0
        %v3877 = vadd.f32 %v3645, %v3876
        %v3878 = vpop.f32.mrb[0].mxu0
        %v3879 = vadd.f32 %v3647, %v3878
        %3880 = vdwg.mxu0
        %3881 = vmatprep.subr.mxu0 0.0
        %v3882 = vand.u32 %v3350, 4294901760
        %v3883 = vsub.f32 %v3350, %v3882
        %3884 = vmatpush1.xpose.msra.mxu0 %v3883
        %3885 = vmatprep.subr.mxu0 0.0
        %v3886 = vand.u32 %v3353, 4294901760
        %v3887 = vsub.f32 %v3353, %v3886
        %3888 = vmatpush1.xpose.msra.mxu0 %v3887
        %3889 = vmatprep.subr.mxu0 0.0
        %v3890 = vand.u32 %v3356, 4294901760
        %v3891 = vsub.f32 %v3356, %v3890
        %3892 = vmatpush1.xpose.msra.mxu0 %v3891
        %3893 = vmatprep.subr.mxu0 0.0
        %v3894 = vand.u32 %v3359, 4294901760
        %v3895 = vsub.f32 %v3359, %v3894
        %3896 = vmatpush1.xpose.msra.mxu0 %v3895
        %3897 = vmatprep.subr.mxu0 0.0
        %v3898 = vand.u32 %v3362, 4294901760
        %v3899 = vsub.f32 %v3362, %v3898
        %3900 = vmatpush1.xpose.msra.mxu0 %v3899
        %3901 = vmatprep.subr.mxu0 0.0
        %v3902 = vand.u32 %v3365, 4294901760
        %v3903 = vsub.f32 %v3365, %v3902
        %3904 = vmatpush1.xpose.msra.mxu0 %v3903
        %3905 = vmatprep.subr.mxu0 0.0
        %v3906 = vand.u32 %v3368, 4294901760
        %v3907 = vsub.f32 %v3368, %v3906
        %3908 = vmatpush1.xpose.msra.mxu0 %v3907
        %3909 = vmatprep.subr.mxu0 0.0
        %v3910 = vand.u32 %v3371, 4294901760
        %v3911 = vsub.f32 %v3371, %v3910
        %3912 = vmatpush1.xpose.msra.mxu0 %v3911
        %3913 = vmatprep.subr.mxu0 0.0
        %v3914 = vand.u32 %v3374, 4294901760
        %v3915 = vsub.f32 %v3374, %v3914
        %3916 = vmatpush1.xpose.msra.mxu0 %v3915
        %3917 = vmatprep.subr.mxu0 0.0
        %v3918 = vand.u32 %v3377, 4294901760
        %v3919 = vsub.f32 %v3377, %v3918
        %3920 = vmatpush1.xpose.msra.mxu0 %v3919
        %3921 = vmatprep.subr.mxu0 0.0
        %v3922 = vand.u32 %v3380, 4294901760
        %v3923 = vsub.f32 %v3380, %v3922
        %3924 = vmatpush1.xpose.msra.mxu0 %v3923
        %3925 = vmatprep.subr.mxu0 0.0
        %v3926 = vand.u32 %v3383, 4294901760
        %v3927 = vsub.f32 %v3383, %v3926
        %3928 = vmatpush1.xpose.msra.mxu0 %v3927
        %3929 = vmatprep.subr.mxu0 0.0
        %v3930 = vand.u32 %v3386, 4294901760
        %v3931 = vsub.f32 %v3386, %v3930
        %3932 = vmatpush1.xpose.msra.mxu0 %v3931
        %3933 = vmatprep.subr.mxu0 0.0
        %v3934 = vand.u32 %v3389, 4294901760
        %v3935 = vsub.f32 %v3389, %v3934
        %3936 = vmatpush1.xpose.msra.mxu0 %v3935
        %3937 = vmatprep.subr.mxu0 0.0
        %v3938 = vand.u32 %v3392, 4294901760
        %v3939 = vsub.f32 %v3392, %v3938
        %3940 = vmatpush1.xpose.msra.mxu0 %v3939
        %3941 = vmatprep.subr.mxu0 0.0
        %v3942 = vand.u32 %v3395, 4294901760
        %v3943 = vsub.f32 %v3395, %v3942
        %3944 = vmatpush1.xpose.msra.mxu0 %v3943
        %3945 = vmatprep.subr.mxu0 0.0
        %v3946 = vand.u32 %v3398, 4294901760
        %v3947 = vsub.f32 %v3398, %v3946
        %3948 = vmatpush1.xpose.msra.mxu0 %v3947
        %3949 = vmatprep.subr.mxu0 0.0
        %v3950 = vand.u32 %v3401, 4294901760
        %v3951 = vsub.f32 %v3401, %v3950
        %3952 = vmatpush1.xpose.msra.mxu0 %v3951
        %3953 = vmatprep.subr.mxu0 0.0
        %v3954 = vand.u32 %v3404, 4294901760
        %v3955 = vsub.f32 %v3404, %v3954
        %3956 = vmatpush1.xpose.msra.mxu0 %v3955
        %3957 = vmatprep.subr.mxu0 0.0
        %v3958 = vand.u32 %v3407, 4294901760
        %v3959 = vsub.f32 %v3407, %v3958
        %3960 = vmatpush1.xpose.msra.mxu0 %v3959
        %3961 = vmatprep.subr.mxu0 0.0
        %v3962 = vand.u32 %v3410, 4294901760
        %v3963 = vsub.f32 %v3410, %v3962
        %3964 = vmatpush1.xpose.msra.mxu0 %v3963
        %3965 = vmatprep.subr.mxu0 0.0
        %v3966 = vand.u32 %v3413, 4294901760
        %v3967 = vsub.f32 %v3413, %v3966
        %3968 = vmatpush1.xpose.msra.mxu0 %v3967
        %3969 = vmatprep.subr.mxu0 0.0
        %v3970 = vand.u32 %v3416, 4294901760
        %v3971 = vsub.f32 %v3416, %v3970
        %3972 = vmatpush1.xpose.msra.mxu0 %v3971
        %3973 = vmatprep.subr.mxu0 0.0
        %v3974 = vand.u32 %v3419, 4294901760
        %v3975 = vsub.f32 %v3419, %v3974
        %3976 = vmatpush1.xpose.msra.mxu0 %v3975
        %3977 = vmatprep.subr.mxu0 0.0
        %v3978 = vand.u32 %v3422, 4294901760
        %v3979 = vsub.f32 %v3422, %v3978
        %3980 = vmatpush1.xpose.msra.mxu0 %v3979
        %3981 = vmatprep.subr.mxu0 0.0
        %v3982 = vand.u32 %v3425, 4294901760
        %v3983 = vsub.f32 %v3425, %v3982
        %3984 = vmatpush1.xpose.msra.mxu0 %v3983
        %3985 = vmatprep.subr.mxu0 0.0
        %v3986 = vand.u32 %v3428, 4294901760
        %v3987 = vsub.f32 %v3428, %v3986
        %3988 = vmatpush1.xpose.msra.mxu0 %v3987
        %3989 = vmatprep.subr.mxu0 0.0
        %v3990 = vand.u32 %v3431, 4294901760
        %v3991 = vsub.f32 %v3431, %v3990
        %3992 = vmatpush1.xpose.msra.mxu0 %v3991
        %3993 = vmatprep.subr.mxu0 0.0
        %v3994 = vand.u32 %v3434, 4294901760
        %v3995 = vsub.f32 %v3434, %v3994
        %3996 = vmatpush1.xpose.msra.mxu0 %v3995
        %3997 = vmatprep.subr.mxu0 0.0
        %v3998 = vand.u32 %v3437, 4294901760
        %v3999 = vsub.f32 %v3437, %v3998
        %4000 = vmatpush1.xpose.msra.mxu0 %v3999
        %4001 = vmatprep.subr.mxu0 0.0
        %v4002 = vand.u32 %v3440, 4294901760
        %v4003 = vsub.f32 %v3440, %v4002
        %4004 = vmatpush1.xpose.msra.mxu0 %v4003
        %4005 = vmatprep.subr.mxu0 0.0
        %v4006 = vand.u32 %v3443, 4294901760
        %v4007 = vsub.f32 %v3443, %v4006
        %4008 = vmatpush1.xpose.msra.mxu0 %v4007
        %4009 = vmatprep.mubr.f32.mxu0 0.0
        %v4010 = vand.u32 %v3347, 4294901760
        %v4011 = vsub.f32 %v3347, %v4010
        %4012 = vmatmul.mubr.f32.gmra.mrb[0].mxu0 %v4011
        %v4013 = vpop.f32.mrb[0].mxu0
        %v4014 = vadd.f32 %v3877, %v4013
        %v4015 = vpop.f32.mrb[0].mxu0
        %v4016 = vadd.f32 %v3879, %v4015
        %4017 = vdwg.mxu0
        %4018 = vmatprep.subr.mxu0 0.0
        %v4019 = vand.u32 %v3350, 4294901760
        %4020 = vmatpush1.xpose.msra.mxu0 %v4019
        %4021 = vmatprep.subr.mxu0 0.0
        %v4022 = vand.u32 %v3353, 4294901760
        %4023 = vmatpush1.xpose.msra.mxu0 %v4022
        %4024 = vmatprep.subr.mxu0 0.0
        %v4025 = vand.u32 %v3356, 4294901760
        %4026 = vmatpush1.xpose.msra.mxu0 %v4025
        %4027 = vmatprep.subr.mxu0 0.0
        %v4028 = vand.u32 %v3359, 4294901760
        %4029 = vmatpush1.xpose.msra.mxu0 %v4028
        %4030 = vmatprep.subr.mxu0 0.0
        %v4031 = vand.u32 %v3362, 4294901760
        %4032 = vmatpush1.xpose.msra.mxu0 %v4031
        %4033 = vmatprep.subr.mxu0 0.0
        %v4034 = vand.u32 %v3365, 4294901760
        %4035 = vmatpush1.xpose.msra.mxu0 %v4034
        %4036 = vmatprep.subr.mxu0 0.0
        %v4037 = vand.u32 %v3368, 4294901760
        %4038 = vmatpush1.xpose.msra.mxu0 %v4037
        %4039 = vmatprep.subr.mxu0 0.0
        %v4040 = vand.u32 %v3371, 4294901760
        %4041 = vmatpush1.xpose.msra.mxu0 %v4040
        %4042 = vmatprep.subr.mxu0 0.0
        %v4043 = vand.u32 %v3374, 4294901760
        %4044 = vmatpush1.xpose.msra.mxu0 %v4043
        %4045 = vmatprep.subr.mxu0 0.0
        %v4046 = vand.u32 %v3377, 4294901760
        %4047 = vmatpush1.xpose.msra.mxu0 %v4046
        %4048 = vmatprep.subr.mxu0 0.0
        %v4049 = vand.u32 %v3380, 4294901760
        %4050 = vmatpush1.xpose.msra.mxu0 %v4049
        %4051 = vmatprep.subr.mxu0 0.0
        %v4052 = vand.u32 %v3383, 4294901760
        %4053 = vmatpush1.xpose.msra.mxu0 %v4052
        %4054 = vmatprep.subr.mxu0 0.0
        %v4055 = vand.u32 %v3386, 4294901760
        %4056 = vmatpush1.xpose.msra.mxu0 %v4055
        %4057 = vmatprep.subr.mxu0 0.0
        %v4058 = vand.u32 %v3389, 4294901760
        %4059 = vmatpush1.xpose.msra.mxu0 %v4058
        %4060 = vmatprep.subr.mxu0 0.0
        %v4061 = vand.u32 %v3392, 4294901760
        %4062 = vmatpush1.xpose.msra.mxu0 %v4061
        %4063 = vmatprep.subr.mxu0 0.0
        %v4064 = vand.u32 %v3395, 4294901760
        %4065 = vmatpush1.xpose.msra.mxu0 %v4064
        %4066 = vmatprep.subr.mxu0 0.0
        %v4067 = vand.u32 %v3398, 4294901760
        %4068 = vmatpush1.xpose.msra.mxu0 %v4067
        %4069 = vmatprep.subr.mxu0 0.0
        %v4070 = vand.u32 %v3401, 4294901760
        %4071 = vmatpush1.xpose.msra.mxu0 %v4070
        %4072 = vmatprep.subr.mxu0 0.0
        %v4073 = vand.u32 %v3404, 4294901760
        %4074 = vmatpush1.xpose.msra.mxu0 %v4073
        %4075 = vmatprep.subr.mxu0 0.0
        %v4076 = vand.u32 %v3407, 4294901760
        %4077 = vmatpush1.xpose.msra.mxu0 %v4076
        %4078 = vmatprep.subr.mxu0 0.0
        %v4079 = vand.u32 %v3410, 4294901760
        %4080 = vmatpush1.xpose.msra.mxu0 %v4079
        %4081 = vmatprep.subr.mxu0 0.0
        %v4082 = vand.u32 %v3413, 4294901760
        %4083 = vmatpush1.xpose.msra.mxu0 %v4082
        %4084 = vmatprep.subr.mxu0 0.0
        %v4085 = vand.u32 %v3416, 4294901760
        %4086 = vmatpush1.xpose.msra.mxu0 %v4085
        %4087 = vmatprep.subr.mxu0 0.0
        %v4088 = vand.u32 %v3419, 4294901760
        %4089 = vmatpush1.xpose.msra.mxu0 %v4088
        %4090 = vmatprep.subr.mxu0 0.0
        %v4091 = vand.u32 %v3422, 4294901760
        %4092 = vmatpush1.xpose.msra.mxu0 %v4091
        %4093 = vmatprep.subr.mxu0 0.0
        %v4094 = vand.u32 %v3425, 4294901760
        %4095 = vmatpush1.xpose.msra.mxu0 %v4094
        %4096 = vmatprep.subr.mxu0 0.0
        %v4097 = vand.u32 %v3428, 4294901760
        %4098 = vmatpush1.xpose.msra.mxu0 %v4097
        %4099 = vmatprep.subr.mxu0 0.0
        %v4100 = vand.u32 %v3431, 4294901760
        %4101 = vmatpush1.xpose.msra.mxu0 %v4100
        %4102 = vmatprep.subr.mxu0 0.0
        %v4103 = vand.u32 %v3434, 4294901760
        %4104 = vmatpush1.xpose.msra.mxu0 %v4103
        %4105 = vmatprep.subr.mxu0 0.0
        %v4106 = vand.u32 %v3437, 4294901760
        %4107 = vmatpush1.xpose.msra.mxu0 %v4106
        %4108 = vmatprep.subr.mxu0 0.0
        %v4109 = vand.u32 %v3440, 4294901760
        %4110 = vmatpush1.xpose.msra.mxu0 %v4109
        %4111 = vmatprep.subr.mxu0 0.0
        %v4112 = vand.u32 %v3443, 4294901760
        %4113 = vmatpush1.xpose.msra.mxu0 %v4112
        %4114 = vmatprep.mubr.f32.mxu0 0.0
        %v4115 = vand.u32 %v3347, 4294901760
        %v4116 = vsub.f32 %v3347, %v4115
        %v4117 = vand.u32 %v4116, 4294901760
        %4118 = vmatmul.mubr.f32.gmra.mrb[0].mxu0 %v4117
        %v4119 = vpop.f32.mrb[0].mxu0
        %v4120 = vadd.f32 %v4014, %v4119
        %v4121 = vpop.f32.mrb[0].mxu0
        %v4122 = vadd.f32 %v4016, %v4121
        %4123 = vdwg.mxu0
        %4124 = vmatprep.subr.mxu0 0.0
        %v4125 = vand.u32 %v3350, 4294901760
        %v4126 = vsub.f32 %v3350, %v4125
        %v4127 = vand.u32 %v4126, 4294901760
        %4128 = vmatpush1.xpose.msra.mxu0 %v4127
        %4129 = vmatprep.subr.mxu0 0.0
        %v4130 = vand.u32 %v3353, 4294901760
        %v4131 = vsub.f32 %v3353, %v4130
        %v4132 = vand.u32 %v4131, 4294901760
        %4133 = vmatpush1.xpose.msra.mxu0 %v4132
        %4134 = vmatprep.subr.mxu0 0.0
        %v4135 = vand.u32 %v3356, 4294901760
        %v4136 = vsub.f32 %v3356, %v4135
        %v4137 = vand.u32 %v4136, 4294901760
        %4138 = vmatpush1.xpose.msra.mxu0 %v4137
        %4139 = vmatprep.subr.mxu0 0.0
        %v4140 = vand.u32 %v3359, 4294901760
        %v4141 = vsub.f32 %v3359, %v4140
        %v4142 = vand.u32 %v4141, 4294901760
        %4143 = vmatpush1.xpose.msra.mxu0 %v4142
        %4144 = vmatprep.subr.mxu0 0.0
        %v4145 = vand.u32 %v3362, 4294901760
        %v4146 = vsub.f32 %v3362, %v4145
        %v4147 = vand.u32 %v4146, 4294901760
        %4148 = vmatpush1.xpose.msra.mxu0 %v4147
        %4149 = vmatprep.subr.mxu0 0.0
        %v4150 = vand.u32 %v3365, 4294901760
        %v4151 = vsub.f32 %v3365, %v4150
        %v4152 = vand.u32 %v4151, 4294901760
        %4153 = vmatpush1.xpose.msra.mxu0 %v4152
        %4154 = vmatprep.subr.mxu0 0.0
        %v4155 = vand.u32 %v3368, 4294901760
        %v4156 = vsub.f32 %v3368, %v4155
        %v4157 = vand.u32 %v4156, 4294901760
        %4158 = vmatpush1.xpose.msra.mxu0 %v4157
        %4159 = vmatprep.subr.mxu0 0.0
        %v4160 = vand.u32 %v3371, 4294901760
        %v4161 = vsub.f32 %v3371, %v4160
        %v4162 = vand.u32 %v4161, 4294901760
        %4163 = vmatpush1.xpose.msra.mxu0 %v4162
        %4164 = vmatprep.subr.mxu0 0.0
        %v4165 = vand.u32 %v3374, 4294901760
        %v4166 = vsub.f32 %v3374, %v4165
        %v4167 = vand.u32 %v4166, 4294901760
        %4168 = vmatpush1.xpose.msra.mxu0 %v4167
        %4169 = vmatprep.subr.mxu0 0.0
        %v4170 = vand.u32 %v3377, 4294901760
        %v4171 = vsub.f32 %v3377, %v4170
        %v4172 = vand.u32 %v4171, 4294901760
        %4173 = vmatpush1.xpose.msra.mxu0 %v4172
        %4174 = vmatprep.subr.mxu0 0.0
        %v4175 = vand.u32 %v3380, 4294901760
        %v4176 = vsub.f32 %v3380, %v4175
        %v4177 = vand.u32 %v4176, 4294901760
        %4178 = vmatpush1.xpose.msra.mxu0 %v4177
        %4179 = vmatprep.subr.mxu0 0.0
        %v4180 = vand.u32 %v3383, 4294901760
        %v4181 = vsub.f32 %v3383, %v4180
        %v4182 = vand.u32 %v4181, 4294901760
        %4183 = vmatpush1.xpose.msra.mxu0 %v4182
        %4184 = vmatprep.subr.mxu0 0.0
        %v4185 = vand.u32 %v3386, 4294901760
        %v4186 = vsub.f32 %v3386, %v4185
        %v4187 = vand.u32 %v4186, 4294901760
        %4188 = vmatpush1.xpose.msra.mxu0 %v4187
        %4189 = vmatprep.subr.mxu0 0.0
        %v4190 = vand.u32 %v3389, 4294901760
        %v4191 = vsub.f32 %v3389, %v4190
        %v4192 = vand.u32 %v4191, 4294901760
        %4193 = vmatpush1.xpose.msra.mxu0 %v4192
        %4194 = vmatprep.subr.mxu0 0.0
        %v4195 = vand.u32 %v3392, 4294901760
        %v4196 = vsub.f32 %v3392, %v4195
        %v4197 = vand.u32 %v4196, 4294901760
        %4198 = vmatpush1.xpose.msra.mxu0 %v4197
        %4199 = vmatprep.subr.mxu0 0.0
        %v4200 = vand.u32 %v3395, 4294901760
        %v4201 = vsub.f32 %v3395, %v4200
        %v4202 = vand.u32 %v4201, 4294901760
        %4203 = vmatpush1.xpose.msra.mxu0 %v4202
        %4204 = vmatprep.subr.mxu0 0.0
        %v4205 = vand.u32 %v3398, 4294901760
        %v4206 = vsub.f32 %v3398, %v4205
        %v4207 = vand.u32 %v4206, 4294901760
        %4208 = vmatpush1.xpose.msra.mxu0 %v4207
        %4209 = vmatprep.subr.mxu0 0.0
        %v4210 = vand.u32 %v3401, 4294901760
        %v4211 = vsub.f32 %v3401, %v4210
        %v4212 = vand.u32 %v4211, 4294901760
        %4213 = vmatpush1.xpose.msra.mxu0 %v4212
        %4214 = vmatprep.subr.mxu0 0.0
        %v4215 = vand.u32 %v3404, 4294901760
        %v4216 = vsub.f32 %v3404, %v4215
        %v4217 = vand.u32 %v4216, 4294901760
        %4218 = vmatpush1.xpose.msra.mxu0 %v4217
        %4219 = vmatprep.subr.mxu0 0.0
        %v4220 = vand.u32 %v3407, 4294901760
        %v4221 = vsub.f32 %v3407, %v4220
        %v4222 = vand.u32 %v4221, 4294901760
        %4223 = vmatpush1.xpose.msra.mxu0 %v4222
        %4224 = vmatprep.subr.mxu0 0.0
        %v4225 = vand.u32 %v3410, 4294901760
        %v4226 = vsub.f32 %v3410, %v4225
        %v4227 = vand.u32 %v4226, 4294901760
        %4228 = vmatpush1.xpose.msra.mxu0 %v4227
        %4229 = vmatprep.subr.mxu0 0.0
        %v4230 = vand.u32 %v3413, 4294901760
        %v4231 = vsub.f32 %v3413, %v4230
        %v4232 = vand.u32 %v4231, 4294901760
        %4233 = vmatpush1.xpose.msra.mxu0 %v4232
        %4234 = vmatprep.subr.mxu0 0.0
        %v4235 = vand.u32 %v3416, 4294901760
        %v4236 = vsub.f32 %v3416, %v4235
        %v4237 = vand.u32 %v4236, 4294901760
        %4238 = vmatpush1.xpose.msra.mxu0 %v4237
        %4239 = vmatprep.subr.mxu0 0.0
        %v4240 = vand.u32 %v3419, 4294901760
        %v4241 = vsub.f32 %v3419, %v4240
        %v4242 = vand.u32 %v4241, 4294901760
        %4243 = vmatpush1.xpose.msra.mxu0 %v4242
        %4244 = vmatprep.subr.mxu0 0.0
        %v4245 = vand.u32 %v3422, 4294901760
        %v4246 = vsub.f32 %v3422, %v4245
        %v4247 = vand.u32 %v4246, 4294901760
        %4248 = vmatpush1.xpose.msra.mxu0 %v4247
        %4249 = vmatprep.subr.mxu0 0.0
        %v4250 = vand.u32 %v3425, 4294901760
        %v4251 = vsub.f32 %v3425, %v4250
        %v4252 = vand.u32 %v4251, 4294901760
        %4253 = vmatpush1.xpose.msra.mxu0 %v4252
        %4254 = vmatprep.subr.mxu0 0.0
        %v4255 = vand.u32 %v3428, 4294901760
        %v4256 = vsub.f32 %v3428, %v4255
        %v4257 = vand.u32 %v4256, 4294901760
        %4258 = vmatpush1.xpose.msra.mxu0 %v4257
        %4259 = vmatprep.subr.mxu0 0.0
        %v4260 = vand.u32 %v3431, 4294901760
        %v4261 = vsub.f32 %v3431, %v4260
        %v4262 = vand.u32 %v4261, 4294901760
        %4263 = vmatpush1.xpose.msra.mxu0 %v4262
        %4264 = vmatprep.subr.mxu0 0.0
        %v4265 = vand.u32 %v3434, 4294901760
        %v4266 = vsub.f32 %v3434, %v4265
        %v4267 = vand.u32 %v4266, 4294901760
        %4268 = vmatpush1.xpose.msra.mxu0 %v4267
        %4269 = vmatprep.subr.mxu0 0.0
        %v4270 = vand.u32 %v3437, 4294901760
        %v4271 = vsub.f32 %v3437, %v4270
        %v4272 = vand.u32 %v4271, 4294901760
        %4273 = vmatpush1.xpose.msra.mxu0 %v4272
        %4274 = vmatprep.subr.mxu0 0.0
        %v4275 = vand.u32 %v3440, 4294901760
        %v4276 = vsub.f32 %v3440, %v4275
        %v4277 = vand.u32 %v4276, 4294901760
        %4278 = vmatpush1.xpose.msra.mxu0 %v4277
        %4279 = vmatprep.subr.mxu0 0.0
        %v4280 = vand.u32 %v3443, 4294901760
        %v4281 = vsub.f32 %v3443, %v4280
        %v4282 = vand.u32 %v4281, 4294901760
        %4283 = vmatpush1.xpose.msra.mxu0 %v4282
        %4284 = vmatprep.mubr.f32.mxu0 0.0
        %v4285 = vand.u32 %v3347, 4294901760
        %4286 = vmatmul.mubr.f32.gmra.mrb[0].mxu0 %v4285
        %v4287 = vpop.f32.mrb[0].mxu0
        %v4288 = vadd.f32 %v4120, %v4287
        %v4289 = vpop.f32.mrb[0].mxu0
        %v4290 = vadd.f32 %v4122, %v4289
        %4291 = vdwg.mxu0
        %4292 = vmatprep.subr.mxu0 0.0
        %v4293 = vand.u32 %v3350, 4294901760
        %4294 = vmatpush1.xpose.msra.mxu0 %v4293
        %4295 = vmatprep.subr.mxu0 0.0
        %v4296 = vand.u32 %v3353, 4294901760
        %4297 = vmatpush1.xpose.msra.mxu0 %v4296
        %4298 = vmatprep.subr.mxu0 0.0
        %v4299 = vand.u32 %v3356, 4294901760
        %4300 = vmatpush1.xpose.msra.mxu0 %v4299
        %4301 = vmatprep.subr.mxu0 0.0
        %v4302 = vand.u32 %v3359, 4294901760
        %4303 = vmatpush1.xpose.msra.mxu0 %v4302
        %4304 = vmatprep.subr.mxu0 0.0
        %v4305 = vand.u32 %v3362, 4294901760
        %4306 = vmatpush1.xpose.msra.mxu0 %v4305
        %4307 = vmatprep.subr.mxu0 0.0
        %v4308 = vand.u32 %v3365, 4294901760
        %4309 = vmatpush1.xpose.msra.mxu0 %v4308
        %4310 = vmatprep.subr.mxu0 0.0
        %v4311 = vand.u32 %v3368, 4294901760
        %4312 = vmatpush1.xpose.msra.mxu0 %v4311
        %4313 = vmatprep.subr.mxu0 0.0
        %v4314 = vand.u32 %v3371, 4294901760
        %4315 = vmatpush1.xpose.msra.mxu0 %v4314
        %4316 = vmatprep.subr.mxu0 0.0
        %v4317 = vand.u32 %v3374, 4294901760
        %4318 = vmatpush1.xpose.msra.mxu0 %v4317
        %4319 = vmatprep.subr.mxu0 0.0
        %v4320 = vand.u32 %v3377, 4294901760
        %4321 = vmatpush1.xpose.msra.mxu0 %v4320
        %4322 = vmatprep.subr.mxu0 0.0
        %v4323 = vand.u32 %v3380, 4294901760
        %4324 = vmatpush1.xpose.msra.mxu0 %v4323
        %4325 = vmatprep.subr.mxu0 0.0
        %v4326 = vand.u32 %v3383, 4294901760
        %4327 = vmatpush1.xpose.msra.mxu0 %v4326
        %4328 = vmatprep.subr.mxu0 0.0
        %v4329 = vand.u32 %v3386, 4294901760
        %4330 = vmatpush1.xpose.msra.mxu0 %v4329
        %4331 = vmatprep.subr.mxu0 0.0
        %v4332 = vand.u32 %v3389, 4294901760
        %4333 = vmatpush1.xpose.msra.mxu0 %v4332
        %4334 = vmatprep.subr.mxu0 0.0
        %v4335 = vand.u32 %v3392, 4294901760
        %4336 = vmatpush1.xpose.msra.mxu0 %v4335
        %4337 = vmatprep.subr.mxu0 0.0
        %v4338 = vand.u32 %v3395, 4294901760
        %4339 = vmatpush1.xpose.msra.mxu0 %v4338
        %4340 = vmatprep.subr.mxu0 0.0
        %v4341 = vand.u32 %v3398, 4294901760
        %4342 = vmatpush1.xpose.msra.mxu0 %v4341
        %4343 = vmatprep.subr.mxu0 0.0
        %v4344 = vand.u32 %v3401, 4294901760
        %4345 = vmatpush1.xpose.msra.mxu0 %v4344
        %4346 = vmatprep.subr.mxu0 0.0
        %v4347 = vand.u32 %v3404, 4294901760
        %4348 = vmatpush1.xpose.msra.mxu0 %v4347
        %4349 = vmatprep.subr.mxu0 0.0
        %v4350 = vand.u32 %v3407, 4294901760
        %4351 = vmatpush1.xpose.msra.mxu0 %v4350
        %4352 = vmatprep.subr.mxu0 0.0
        %v4353 = vand.u32 %v3410, 4294901760
        %4354 = vmatpush1.xpose.msra.mxu0 %v4353
        %4355 = vmatprep.subr.mxu0 0.0
        %v4356 = vand.u32 %v3413, 4294901760
        %4357 = vmatpush1.xpose.msra.mxu0 %v4356
        %4358 = vmatprep.subr.mxu0 0.0
        %v4359 = vand.u32 %v3416, 4294901760
        %4360 = vmatpush1.xpose.msra.mxu0 %v4359
        %4361 = vmatprep.subr.mxu0 0.0
        %v4362 = vand.u32 %v3419, 4294901760
        %4363 = vmatpush1.xpose.msra.mxu0 %v4362
        %4364 = vmatprep.subr.mxu0 0.0
        %v4365 = vand.u32 %v3422, 4294901760
        %4366 = vmatpush1.xpose.msra.mxu0 %v4365
        %4367 = vmatprep.subr.mxu0 0.0
        %v4368 = vand.u32 %v3425, 4294901760
        %4369 = vmatpush1.xpose.msra.mxu0 %v4368
        %4370 = vmatprep.subr.mxu0 0.0
        %v4371 = vand.u32 %v3428, 4294901760
        %4372 = vmatpush1.xpose.msra.mxu0 %v4371
        %4373 = vmatprep.subr.mxu0 0.0
        %v4374 = vand.u32 %v3431, 4294901760
        %4375 = vmatpush1.xpose.msra.mxu0 %v4374
        %4376 = vmatprep.subr.mxu0 0.0
        %v4377 = vand.u32 %v3434, 4294901760
        %4378 = vmatpush1.xpose.msra.mxu0 %v4377
        %4379 = vmatprep.subr.mxu0 0.0
        %v4380 = vand.u32 %v3437, 4294901760
        %4381 = vmatpush1.xpose.msra.mxu0 %v4380
        %4382 = vmatprep.subr.mxu0 0.0
        %v4383 = vand.u32 %v3440, 4294901760
        %4384 = vmatpush1.xpose.msra.mxu0 %v4383
        %4385 = vmatprep.subr.mxu0 0.0
        %v4386 = vand.u32 %v3443, 4294901760
        %4387 = vmatpush1.xpose.msra.mxu0 %v4386
        %4388 = vmatprep.mubr.f32.mxu0 0.0
        %v4389 = vand.u32 %v3347, 4294901760
        %4390 = vmatmul.mubr.f32.gmra.mrb[0].mxu0 %v4389
        %v4391 = vpop.f32.mrb[0].mxu0
        %v4392 = vadd.f32 %v4288, %v4391
        %v4393 = vpop.f32.mrb[0].mxu0
        %v4394 = vadd.f32 %v4290, %v4393
        %4395 = vdwg.mxu0
        %4396 = vmatprep.subr.mxu0 0.0
        %v4397 = vand.u32 %v3446, 4294901760
        %4398 = vmatpush1.xpose.msra.mxu0 %v4397
        %4399 = vmatprep.subr.mxu0 0.0
        %v4400 = vand.u32 %v3449, 4294901760
        %4401 = vmatpush1.xpose.msra.mxu0 %v4400
        %4402 = vmatprep.subr.mxu0 0.0
        %v4403 = vand.u32 %v3452, 4294901760
        %4404 = vmatpush1.xpose.msra.mxu0 %v4403
        %4405 = vmatprep.subr.mxu0 0.0
        %v4406 = vand.u32 %v3455, 4294901760
        %4407 = vmatpush1.xpose.msra.mxu0 %v4406
        %4408 = vmatprep.subr.mxu0 0.0
        %v4409 = vand.u32 %v3458, 4294901760
        %4410 = vmatpush1.xpose.msra.mxu0 %v4409
        %4411 = vmatprep.subr.mxu0 0.0
        %v4412 = vand.u32 %v3461, 4294901760
        %4413 = vmatpush1.xpose.msra.mxu0 %v4412
        %4414 = vmatprep.subr.mxu0 0.0
        %v4415 = vand.u32 %v3464, 4294901760
        %4416 = vmatpush1.xpose.msra.mxu0 %v4415
        %4417 = vmatprep.subr.mxu0 0.0
        %v4418 = vand.u32 %v3467, 4294901760
        %4419 = vmatpush1.xpose.msra.mxu0 %v4418
        %4420 = vmatprep.subr.mxu0 0.0
        %v4421 = vand.u32 %v3470, 4294901760
        %4422 = vmatpush1.xpose.msra.mxu0 %v4421
        %4423 = vmatprep.subr.mxu0 0.0
        %v4424 = vand.u32 %v3473, 4294901760
        %4425 = vmatpush1.xpose.msra.mxu0 %v4424
        %4426 = vmatprep.subr.mxu0 0.0
        %v4427 = vand.u32 %v3476, 4294901760
        %4428 = vmatpush1.xpose.msra.mxu0 %v4427
        %4429 = vmatprep.subr.mxu0 0.0
        %v4430 = vand.u32 %v3479, 4294901760
        %4431 = vmatpush1.xpose.msra.mxu0 %v4430
        %4432 = vmatprep.subr.mxu0 0.0
        %v4433 = vand.u32 %v3482, 4294901760
        %4434 = vmatpush1.xpose.msra.mxu0 %v4433
        %4435 = vmatprep.subr.mxu0 0.0
        %v4436 = vand.u32 %v3485, 4294901760
        %4437 = vmatpush1.xpose.msra.mxu0 %v4436
        %4438 = vmatprep.subr.mxu0 0.0
        %v4439 = vand.u32 %v3488, 4294901760
        %4440 = vmatpush1.xpose.msra.mxu0 %v4439
        %4441 = vmatprep.subr.mxu0 0.0
        %v4442 = vand.u32 %v3491, 4294901760
        %4443 = vmatpush1.xpose.msra.mxu0 %v4442
        %4444 = vmatprep.subr.mxu0 0.0
        %v4445 = vand.u32 %v3494, 4294901760
        %4446 = vmatpush1.xpose.msra.mxu0 %v4445
        %4447 = vmatprep.subr.mxu0 0.0
        %v4448 = vand.u32 %v3497, 4294901760
        %4449 = vmatpush1.xpose.msra.mxu0 %v4448
        %4450 = vmatprep.subr.mxu0 0.0
        %v4451 = vand.u32 %v3500, 4294901760
        %4452 = vmatpush1.xpose.msra.mxu0 %v4451
        %4453 = vmatprep.subr.mxu0 0.0
        %v4454 = vand.u32 %v3503, 4294901760
        %4455 = vmatpush1.xpose.msra.mxu0 %v4454
        %4456 = vmatprep.subr.mxu0 0.0
        %v4457 = vand.u32 %v3506, 4294901760
        %4458 = vmatpush1.xpose.msra.mxu0 %v4457
        %4459 = vmatprep.subr.mxu0 0.0
        %v4460 = vand.u32 %v3509, 4294901760
        %4461 = vmatpush1.xpose.msra.mxu0 %v4460
        %4462 = vmatprep.subr.mxu0 0.0
        %v4463 = vand.u32 %v3512, 4294901760
        %4464 = vmatpush1.xpose.msra.mxu0 %v4463
        %4465 = vmatprep.subr.mxu0 0.0
        %v4466 = vand.u32 %v3515, 4294901760
        %4467 = vmatpush1.xpose.msra.mxu0 %v4466
        %4468 = vmatprep.subr.mxu0 0.0
        %v4469 = vand.u32 %v3518, 4294901760
        %4470 = vmatpush1.xpose.msra.mxu0 %v4469
        %4471 = vmatprep.subr.mxu0 0.0
        %v4472 = vand.u32 %v3521, 4294901760
        %4473 = vmatpush1.xpose.msra.mxu0 %v4472
        %4474 = vmatprep.subr.mxu0 0.0
        %v4475 = vand.u32 %v3524, 4294901760
        %4476 = vmatpush1.xpose.msra.mxu0 %v4475
        %4477 = vmatprep.subr.mxu0 0.0
        %v4478 = vand.u32 %v3527, 4294901760
        %4479 = vmatpush1.xpose.msra.mxu0 %v4478
        %4480 = vmatprep.subr.mxu0 0.0
        %v4481 = vand.u32 %v3530, 4294901760
        %4482 = vmatpush1.xpose.msra.mxu0 %v4481
        %4483 = vmatprep.subr.mxu0 0.0
        %v4484 = vand.u32 %v3533, 4294901760
        %4485 = vmatpush1.xpose.msra.mxu0 %v4484
        %4486 = vmatprep.subr.mxu0 0.0
        %v4487 = vand.u32 %v3536, 4294901760
        %4488 = vmatpush1.xpose.msra.mxu0 %v4487
        %4489 = vmatprep.subr.mxu0 0.0
        %v4490 = vand.u32 %v3539, 4294901760
        %4491 = vmatpush1.xpose.msra.mxu0 %v4490
        %4492 = vmatprep.mubr.f32.mxu0 0.0
        %v4493 = vand.u32 %v3347, 4294901760
        %v4494 = vsub.f32 %v3347, %v4493
        %v4495 = vand.u32 %v4494, 4294901760
        %v4496 = vsub.f32 %v4494, %v4495
        %v4497 = vand.u32 %v4496, 4294901760
        %4498 = vmatmul.mubr.f32.gmra.mrb[0].mxu0 %v4497
        %v4499 = vpop.f32.mrb[0].mxu0
        %v4500 = vadd.f32 0.0, %v4499
        %v4501 = vpop.f32.mrb[0].mxu0
        %v4502 = vadd.f32 0.0, %v4501
        %4503 = vdwg.mxu0
        %4504 = vmatprep.subr.mxu0 0.0
        %v4505 = vand.u32 %v3446, 4294901760
        %v4506 = vsub.f32 %v3446, %v4505
        %v4507 = vand.u32 %v4506, 4294901760
        %v4508 = vsub.f32 %v4506, %v4507
        %v4509 = vand.u32 %v4508, 4294901760
        %4510 = vmatpush1.xpose.msra.mxu0 %v4509
        %4511 = vmatprep.subr.mxu0 0.0
        %v4512 = vand.u32 %v3449, 4294901760
        %v4513 = vsub.f32 %v3449, %v4512
        %v4514 = vand.u32 %v4513, 4294901760
        %v4515 = vsub.f32 %v4513, %v4514
        %v4516 = vand.u32 %v4515, 4294901760
        %4517 = vmatpush1.xpose.msra.mxu0 %v4516
        %4518 = vmatprep.subr.mxu0 0.0
        %v4519 = vand.u32 %v3452, 4294901760
        %v4520 = vsub.f32 %v3452, %v4519
        %v4521 = vand.u32 %v4520, 4294901760
        %v4522 = vsub.f32 %v4520, %v4521
        %v4523 = vand.u32 %v4522, 4294901760
        %4524 = vmatpush1.xpose.msra.mxu0 %v4523
        %4525 = vmatprep.subr.mxu0 0.0
        %v4526 = vand.u32 %v3455, 4294901760
        %v4527 = vsub.f32 %v3455, %v4526
        %v4528 = vand.u32 %v4527, 4294901760
        %v4529 = vsub.f32 %v4527, %v4528
        %v4530 = vand.u32 %v4529, 4294901760
        %4531 = vmatpush1.xpose.msra.mxu0 %v4530
        %4532 = vmatprep.subr.mxu0 0.0
        %v4533 = vand.u32 %v3458, 4294901760
        %v4534 = vsub.f32 %v3458, %v4533
        %v4535 = vand.u32 %v4534, 4294901760
        %v4536 = vsub.f32 %v4534, %v4535
        %v4537 = vand.u32 %v4536, 4294901760
        %4538 = vmatpush1.xpose.msra.mxu0 %v4537
        %4539 = vmatprep.subr.mxu0 0.0
        %v4540 = vand.u32 %v3461, 4294901760
        %v4541 = vsub.f32 %v3461, %v4540
        %v4542 = vand.u32 %v4541, 4294901760
        %v4543 = vsub.f32 %v4541, %v4542
        %v4544 = vand.u32 %v4543, 4294901760
        %4545 = vmatpush1.xpose.msra.mxu0 %v4544
        %4546 = vmatprep.subr.mxu0 0.0
        %v4547 = vand.u32 %v3464, 4294901760
        %v4548 = vsub.f32 %v3464, %v4547
        %v4549 = vand.u32 %v4548, 4294901760
        %v4550 = vsub.f32 %v4548, %v4549
        %v4551 = vand.u32 %v4550, 4294901760
        %4552 = vmatpush1.xpose.msra.mxu0 %v4551
        %4553 = vmatprep.subr.mxu0 0.0
        %v4554 = vand.u32 %v3467, 4294901760
        %v4555 = vsub.f32 %v3467, %v4554
        %v4556 = vand.u32 %v4555, 4294901760
        %v4557 = vsub.f32 %v4555, %v4556
        %v4558 = vand.u32 %v4557, 4294901760
        %4559 = vmatpush1.xpose.msra.mxu0 %v4558
        %4560 = vmatprep.subr.mxu0 0.0
        %v4561 = vand.u32 %v3470, 4294901760
        %v4562 = vsub.f32 %v3470, %v4561
        %v4563 = vand.u32 %v4562, 4294901760
        %v4564 = vsub.f32 %v4562, %v4563
        %v4565 = vand.u32 %v4564, 4294901760
        %4566 = vmatpush1.xpose.msra.mxu0 %v4565
        %4567 = vmatprep.subr.mxu0 0.0
        %v4568 = vand.u32 %v3473, 4294901760
        %v4569 = vsub.f32 %v3473, %v4568
        %v4570 = vand.u32 %v4569, 4294901760
        %v4571 = vsub.f32 %v4569, %v4570
        %v4572 = vand.u32 %v4571, 4294901760
        %4573 = vmatpush1.xpose.msra.mxu0 %v4572
        %4574 = vmatprep.subr.mxu0 0.0
        %v4575 = vand.u32 %v3476, 4294901760
        %v4576 = vsub.f32 %v3476, %v4575
        %v4577 = vand.u32 %v4576, 4294901760
        %v4578 = vsub.f32 %v4576, %v4577
        %v4579 = vand.u32 %v4578, 4294901760
        %4580 = vmatpush1.xpose.msra.mxu0 %v4579
        %4581 = vmatprep.subr.mxu0 0.0
        %v4582 = vand.u32 %v3479, 4294901760
        %v4583 = vsub.f32 %v3479, %v4582
        %v4584 = vand.u32 %v4583, 4294901760
        %v4585 = vsub.f32 %v4583, %v4584
        %v4586 = vand.u32 %v4585, 4294901760
        %4587 = vmatpush1.xpose.msra.mxu0 %v4586
        %4588 = vmatprep.subr.mxu0 0.0
        %v4589 = vand.u32 %v3482, 4294901760
        %v4590 = vsub.f32 %v3482, %v4589
        %v4591 = vand.u32 %v4590, 4294901760
        %v4592 = vsub.f32 %v4590, %v4591
        %v4593 = vand.u32 %v4592, 4294901760
        %4594 = vmatpush1.xpose.msra.mxu0 %v4593
        %4595 = vmatprep.subr.mxu0 0.0
        %v4596 = vand.u32 %v3485, 4294901760
        %v4597 = vsub.f32 %v3485, %v4596
        %v4598 = vand.u32 %v4597, 4294901760
        %v4599 = vsub.f32 %v4597, %v4598
        %v4600 = vand.u32 %v4599, 4294901760
        %4601 = vmatpush1.xpose.msra.mxu0 %v4600
        %4602 = vmatprep.subr.mxu0 0.0
        %v4603 = vand.u32 %v3488, 4294901760
        %v4604 = vsub.f32 %v3488, %v4603
        %v4605 = vand.u32 %v4604, 4294901760
        %v4606 = vsub.f32 %v4604, %v4605
        %v4607 = vand.u32 %v4606, 4294901760
        %4608 = vmatpush1.xpose.msra.mxu0 %v4607
        %4609 = vmatprep.subr.mxu0 0.0
        %v4610 = vand.u32 %v3491, 4294901760
        %v4611 = vsub.f32 %v3491, %v4610
        %v4612 = vand.u32 %v4611, 4294901760
        %v4613 = vsub.f32 %v4611, %v4612
        %v4614 = vand.u32 %v4613, 4294901760
        %4615 = vmatpush1.xpose.msra.mxu0 %v4614
        %4616 = vmatprep.subr.mxu0 0.0
        %v4617 = vand.u32 %v3494, 4294901760
        %v4618 = vsub.f32 %v3494, %v4617
        %v4619 = vand.u32 %v4618, 4294901760
        %v4620 = vsub.f32 %v4618, %v4619
        %v4621 = vand.u32 %v4620, 4294901760
        %4622 = vmatpush1.xpose.msra.mxu0 %v4621
        %4623 = vmatprep.subr.mxu0 0.0
        %v4624 = vand.u32 %v3497, 4294901760
        %v4625 = vsub.f32 %v3497, %v4624
        %v4626 = vand.u32 %v4625, 4294901760
        %v4627 = vsub.f32 %v4625, %v4626
        %v4628 = vand.u32 %v4627, 4294901760
        %4629 = vmatpush1.xpose.msra.mxu0 %v4628
        %4630 = vmatprep.subr.mxu0 0.0
        %v4631 = vand.u32 %v3500, 4294901760
        %v4632 = vsub.f32 %v3500, %v4631
        %v4633 = vand.u32 %v4632, 4294901760
        %v4634 = vsub.f32 %v4632, %v4633
        %v4635 = vand.u32 %v4634, 4294901760
        %4636 = vmatpush1.xpose.msra.mxu0 %v4635
        %4637 = vmatprep.subr.mxu0 0.0
        %v4638 = vand.u32 %v3503, 4294901760
        %v4639 = vsub.f32 %v3503, %v4638
        %v4640 = vand.u32 %v4639, 4294901760
        %v4641 = vsub.f32 %v4639, %v4640
        %v4642 = vand.u32 %v4641, 4294901760
        %4643 = vmatpush1.xpose.msra.mxu0 %v4642
        %4644 = vmatprep.subr.mxu0 0.0
        %v4645 = vand.u32 %v3506, 4294901760
        %v4646 = vsub.f32 %v3506, %v4645
        %v4647 = vand.u32 %v4646, 4294901760
        %v4648 = vsub.f32 %v4646, %v4647
        %v4649 = vand.u32 %v4648, 4294901760
        %4650 = vmatpush1.xpose.msra.mxu0 %v4649
        %4651 = vmatprep.subr.mxu0 0.0
        %v4652 = vand.u32 %v3509, 4294901760
        %v4653 = vsub.f32 %v3509, %v4652
        %v4654 = vand.u32 %v4653, 4294901760
        %v4655 = vsub.f32 %v4653, %v4654
        %v4656 = vand.u32 %v4655, 4294901760
        %4657 = vmatpush1.xpose.msra.mxu0 %v4656
        %4658 = vmatprep.subr.mxu0 0.0
        %v4659 = vand.u32 %v3512, 4294901760
        %v4660 = vsub.f32 %v3512, %v4659
        %v4661 = vand.u32 %v4660, 4294901760
        %v4662 = vsub.f32 %v4660, %v4661
        %v4663 = vand.u32 %v4662, 4294901760
        %4664 = vmatpush1.xpose.msra.mxu0 %v4663
        %4665 = vmatprep.subr.mxu0 0.0
        %v4666 = vand.u32 %v3515, 4294901760
        %v4667 = vsub.f32 %v3515, %v4666
        %v4668 = vand.u32 %v4667, 4294901760
        %v4669 = vsub.f32 %v4667, %v4668
        %v4670 = vand.u32 %v4669, 4294901760
        %4671 = vmatpush1.xpose.msra.mxu0 %v4670
        %4672 = vmatprep.subr.mxu0 0.0
        %v4673 = vand.u32 %v3518, 4294901760
        %v4674 = vsub.f32 %v3518, %v4673
        %v4675 = vand.u32 %v4674, 4294901760
        %v4676 = vsub.f32 %v4674, %v4675
        %v4677 = vand.u32 %v4676, 4294901760
        %4678 = vmatpush1.xpose.msra.mxu0 %v4677
        %4679 = vmatprep.subr.mxu0 0.0
        %v4680 = vand.u32 %v3521, 4294901760
        %v4681 = vsub.f32 %v3521, %v4680
        %v4682 = vand.u32 %v4681, 4294901760
        %v4683 = vsub.f32 %v4681, %v4682
        %v4684 = vand.u32 %v4683, 4294901760
        %4685 = vmatpush1.xpose.msra.mxu0 %v4684
        %4686 = vmatprep.subr.mxu0 0.0
        %v4687 = vand.u32 %v3524, 4294901760
        %v4688 = vsub.f32 %v3524, %v4687
        %v4689 = vand.u32 %v4688, 4294901760
        %v4690 = vsub.f32 %v4688, %v4689
        %v4691 = vand.u32 %v4690, 4294901760
        %4692 = vmatpush1.xpose.msra.mxu0 %v4691
        %4693 = vmatprep.subr.mxu0 0.0
        %v4694 = vand.u32 %v3527, 4294901760
        %v4695 = vsub.f32 %v3527, %v4694
        %v4696 = vand.u32 %v4695, 4294901760
        %v4697 = vsub.f32 %v4695, %v4696
        %v4698 = vand.u32 %v4697, 4294901760
        %4699 = vmatpush1.xpose.msra.mxu0 %v4698
        %4700 = vmatprep.subr.mxu0 0.0
        %v4701 = vand.u32 %v3530, 4294901760
        %v4702 = vsub.f32 %v3530, %v4701
        %v4703 = vand.u32 %v4702, 4294901760
        %v4704 = vsub.f32 %v4702, %v4703
        %v4705 = vand.u32 %v4704, 4294901760
        %4706 = vmatpush1.xpose.msra.mxu0 %v4705
        %4707 = vmatprep.subr.mxu0 0.0
        %v4708 = vand.u32 %v3533, 4294901760
        %v4709 = vsub.f32 %v3533, %v4708
        %v4710 = vand.u32 %v4709, 4294901760
        %v4711 = vsub.f32 %v4709, %v4710
        %v4712 = vand.u32 %v4711, 4294901760
        %4713 = vmatpush1.xpose.msra.mxu0 %v4712
        %4714 = vmatprep.subr.mxu0 0.0
        %v4715 = vand.u32 %v3536, 4294901760
        %v4716 = vsub.f32 %v3536, %v4715
        %v4717 = vand.u32 %v4716, 4294901760
        %v4718 = vsub.f32 %v4716, %v4717
        %v4719 = vand.u32 %v4718, 4294901760
        %4720 = vmatpush1.xpose.msra.mxu0 %v4719
        %4721 = vmatprep.subr.mxu0 0.0
        %v4722 = vand.u32 %v3539, 4294901760
        %v4723 = vsub.f32 %v3539, %v4722
        %v4724 = vand.u32 %v4723, 4294901760
        %v4725 = vsub.f32 %v4723, %v4724
        %v4726 = vand.u32 %v4725, 4294901760
        %4727 = vmatpush1.xpose.msra.mxu0 %v4726
        %4728 = vmatprep.mubr.f32.mxu0 0.0
        %v4729 = vand.u32 %v3347, 4294901760
        %4730 = vmatmul.mubr.f32.gmra.mrb[0].mxu0 %v4729
        %v4731 = vpop.f32.mrb[0].mxu0
        %v4732 = vadd.f32 %v4500, %v4731
        %v4733 = vpop.f32.mrb[0].mxu0
        %v4734 = vadd.f32 %v4502, %v4733
        %4735 = vdwg.mxu0
        %4736 = vmatprep.subr.mxu0 0.0
        %v4737 = vand.u32 %v3446, 4294901760
        %v4738 = vsub.f32 %v3446, %v4737
        %4739 = vmatpush1.xpose.msra.mxu0 %v4738
        %4740 = vmatprep.subr.mxu0 0.0
        %v4741 = vand.u32 %v3449, 4294901760
        %v4742 = vsub.f32 %v3449, %v4741
        %4743 = vmatpush1.xpose.msra.mxu0 %v4742
        %4744 = vmatprep.subr.mxu0 0.0
        %v4745 = vand.u32 %v3452, 4294901760
        %v4746 = vsub.f32 %v3452, %v4745
        %4747 = vmatpush1.xpose.msra.mxu0 %v4746
        %4748 = vmatprep.subr.mxu0 0.0
        %v4749 = vand.u32 %v3455, 4294901760
        %v4750 = vsub.f32 %v3455, %v4749
        %4751 = vmatpush1.xpose.msra.mxu0 %v4750
        %4752 = vmatprep.subr.mxu0 0.0
        %v4753 = vand.u32 %v3458, 4294901760
        %v4754 = vsub.f32 %v3458, %v4753
        %4755 = vmatpush1.xpose.msra.mxu0 %v4754
        %4756 = vmatprep.subr.mxu0 0.0
        %v4757 = vand.u32 %v3461, 4294901760
        %v4758 = vsub.f32 %v3461, %v4757
        %4759 = vmatpush1.xpose.msra.mxu0 %v4758
        %4760 = vmatprep.subr.mxu0 0.0
        %v4761 = vand.u32 %v3464, 4294901760
        %v4762 = vsub.f32 %v3464, %v4761
        %4763 = vmatpush1.xpose.msra.mxu0 %v4762
        %4764 = vmatprep.subr.mxu0 0.0
        %v4765 = vand.u32 %v3467, 4294901760
        %v4766 = vsub.f32 %v3467, %v4765
        %4767 = vmatpush1.xpose.msra.mxu0 %v4766
        %4768 = vmatprep.subr.mxu0 0.0
        %v4769 = vand.u32 %v3470, 4294901760
        %v4770 = vsub.f32 %v3470, %v4769
        %4771 = vmatpush1.xpose.msra.mxu0 %v4770
        %4772 = vmatprep.subr.mxu0 0.0
        %v4773 = vand.u32 %v3473, 4294901760
        %v4774 = vsub.f32 %v3473, %v4773
        %4775 = vmatpush1.xpose.msra.mxu0 %v4774
        %4776 = vmatprep.subr.mxu0 0.0
        %v4777 = vand.u32 %v3476, 4294901760
        %v4778 = vsub.f32 %v3476, %v4777
        %4779 = vmatpush1.xpose.msra.mxu0 %v4778
        %4780 = vmatprep.subr.mxu0 0.0
        %v4781 = vand.u32 %v3479, 4294901760
        %v4782 = vsub.f32 %v3479, %v4781
        %4783 = vmatpush1.xpose.msra.mxu0 %v4782
        %4784 = vmatprep.subr.mxu0 0.0
        %v4785 = vand.u32 %v3482, 4294901760
        %v4786 = vsub.f32 %v3482, %v4785
        %4787 = vmatpush1.xpose.msra.mxu0 %v4786
        %4788 = vmatprep.subr.mxu0 0.0
        %v4789 = vand.u32 %v3485, 4294901760
        %v4790 = vsub.f32 %v3485, %v4789
        %4791 = vmatpush1.xpose.msra.mxu0 %v4790
        %4792 = vmatprep.subr.mxu0 0.0
        %v4793 = vand.u32 %v3488, 4294901760
        %v4794 = vsub.f32 %v3488, %v4793
        %4795 = vmatpush1.xpose.msra.mxu0 %v4794
        %4796 = vmatprep.subr.mxu0 0.0
        %v4797 = vand.u32 %v3491, 4294901760
        %v4798 = vsub.f32 %v3491, %v4797
        %4799 = vmatpush1.xpose.msra.mxu0 %v4798
        %4800 = vmatprep.subr.mxu0 0.0
        %v4801 = vand.u32 %v3494, 4294901760
        %v4802 = vsub.f32 %v3494, %v4801
        %4803 = vmatpush1.xpose.msra.mxu0 %v4802
        %4804 = vmatprep.subr.mxu0 0.0
        %v4805 = vand.u32 %v3497, 4294901760
        %v4806 = vsub.f32 %v3497, %v4805
        %4807 = vmatpush1.xpose.msra.mxu0 %v4806
        %4808 = vmatprep.subr.mxu0 0.0
        %v4809 = vand.u32 %v3500, 4294901760
        %v4810 = vsub.f32 %v3500, %v4809
        %4811 = vmatpush1.xpose.msra.mxu0 %v4810
        %4812 = vmatprep.subr.mxu0 0.0
        %v4813 = vand.u32 %v3503, 4294901760
        %v4814 = vsub.f32 %v3503, %v4813
        %4815 = vmatpush1.xpose.msra.mxu0 %v4814
        %4816 = vmatprep.subr.mxu0 0.0
        %v4817 = vand.u32 %v3506, 4294901760
        %v4818 = vsub.f32 %v3506, %v4817
        %4819 = vmatpush1.xpose.msra.mxu0 %v4818
        %4820 = vmatprep.subr.mxu0 0.0
        %v4821 = vand.u32 %v3509, 4294901760
        %v4822 = vsub.f32 %v3509, %v4821
        %4823 = vmatpush1.xpose.msra.mxu0 %v4822
        %4824 = vmatprep.subr.mxu0 0.0
        %v4825 = vand.u32 %v3512, 4294901760
        %v4826 = vsub.f32 %v3512, %v4825
        %4827 = vmatpush1.xpose.msra.mxu0 %v4826
        %4828 = vmatprep.subr.mxu0 0.0
        %v4829 = vand.u32 %v3515, 4294901760
        %v4830 = vsub.f32 %v3515, %v4829
        %4831 = vmatpush1.xpose.msra.mxu0 %v4830
        %4832 = vmatprep.subr.mxu0 0.0
        %v4833 = vand.u32 %v3518, 4294901760
        %v4834 = vsub.f32 %v3518, %v4833
        %4835 = vmatpush1.xpose.msra.mxu0 %v4834
        %4836 = vmatprep.subr.mxu0 0.0
        %v4837 = vand.u32 %v3521, 4294901760
        %v4838 = vsub.f32 %v3521, %v4837
        %4839 = vmatpush1.xpose.msra.mxu0 %v4838
        %4840 = vmatprep.subr.mxu0 0.0
        %v4841 = vand.u32 %v3524, 4294901760
        %v4842 = vsub.f32 %v3524, %v4841
        %4843 = vmatpush1.xpose.msra.mxu0 %v4842
        %4844 = vmatprep.subr.mxu0 0.0
        %v4845 = vand.u32 %v3527, 4294901760
        %v4846 = vsub.f32 %v3527, %v4845
        %4847 = vmatpush1.xpose.msra.mxu0 %v4846
        %4848 = vmatprep.subr.mxu0 0.0
        %v4849 = vand.u32 %v3530, 4294901760
        %v4850 = vsub.f32 %v3530, %v4849
        %4851 = vmatpush1.xpose.msra.mxu0 %v4850
        %4852 = vmatprep.subr.mxu0 0.0
        %v4853 = vand.u32 %v3533, 4294901760
        %v4854 = vsub.f32 %v3533, %v4853
        %4855 = vmatpush1.xpose.msra.mxu0 %v4854
        %4856 = vmatprep.subr.mxu0 0.0
        %v4857 = vand.u32 %v3536, 4294901760
        %v4858 = vsub.f32 %v3536, %v4857
        %4859 = vmatpush1.xpose.msra.mxu0 %v4858
        %4860 = vmatprep.subr.mxu0 0.0
        %v4861 = vand.u32 %v3539, 4294901760
        %v4862 = vsub.f32 %v3539, %v4861
        %4863 = vmatpush1.xpose.msra.mxu0 %v4862
        %4864 = vmatprep.mubr.f32.mxu0 0.0
        %v4865 = vand.u32 %v3347, 4294901760
        %v4866 = vsub.f32 %v3347, %v4865
        %4867 = vmatmul.mubr.f32.gmra.mrb[0].mxu0 %v4866
        %v4868 = vpop.f32.mrb[0].mxu0
        %v4869 = vadd.f32 %v4732, %v4868
        %v4870 = vpop.f32.mrb[0].mxu0
        %v4871 = vadd.f32 %v4734, %v4870
        %4872 = vdwg.mxu0
        %4873 = vmatprep.subr.mxu0 0.0
        %v4874 = vand.u32 %v3446, 4294901760
        %4875 = vmatpush1.xpose.msra.mxu0 %v4874
        %4876 = vmatprep.subr.mxu0 0.0
        %v4877 = vand.u32 %v3449, 4294901760
        %4878 = vmatpush1.xpose.msra.mxu0 %v4877
        %4879 = vmatprep.subr.mxu0 0.0
        %v4880 = vand.u32 %v3452, 4294901760
        %4881 = vmatpush1.xpose.msra.mxu0 %v4880
        %4882 = vmatprep.subr.mxu0 0.0
        %v4883 = vand.u32 %v3455, 4294901760
        %4884 = vmatpush1.xpose.msra.mxu0 %v4883
        %4885 = vmatprep.subr.mxu0 0.0
        %v4886 = vand.u32 %v3458, 4294901760
        %4887 = vmatpush1.xpose.msra.mxu0 %v4886
        %4888 = vmatprep.subr.mxu0 0.0
        %v4889 = vand.u32 %v3461, 4294901760
        %4890 = vmatpush1.xpose.msra.mxu0 %v4889
        %4891 = vmatprep.subr.mxu0 0.0
        %v4892 = vand.u32 %v3464, 4294901760
        %4893 = vmatpush1.xpose.msra.mxu0 %v4892
        %4894 = vmatprep.subr.mxu0 0.0
        %v4895 = vand.u32 %v3467, 4294901760
        %4896 = vmatpush1.xpose.msra.mxu0 %v4895
        %4897 = vmatprep.subr.mxu0 0.0
        %v4898 = vand.u32 %v3470, 4294901760
        %4899 = vmatpush1.xpose.msra.mxu0 %v4898
        %4900 = vmatprep.subr.mxu0 0.0
        %v4901 = vand.u32 %v3473, 4294901760
        %4902 = vmatpush1.xpose.msra.mxu0 %v4901
        %4903 = vmatprep.subr.mxu0 0.0
        %v4904 = vand.u32 %v3476, 4294901760
        %4905 = vmatpush1.xpose.msra.mxu0 %v4904
        %4906 = vmatprep.subr.mxu0 0.0
        %v4907 = vand.u32 %v3479, 4294901760
        %4908 = vmatpush1.xpose.msra.mxu0 %v4907
        %4909 = vmatprep.subr.mxu0 0.0
        %v4910 = vand.u32 %v3482, 4294901760
        %4911 = vmatpush1.xpose.msra.mxu0 %v4910
        %4912 = vmatprep.subr.mxu0 0.0
        %v4913 = vand.u32 %v3485, 4294901760
        %4914 = vmatpush1.xpose.msra.mxu0 %v4913
        %4915 = vmatprep.subr.mxu0 0.0
        %v4916 = vand.u32 %v3488, 4294901760
        %4917 = vmatpush1.xpose.msra.mxu0 %v4916
        %4918 = vmatprep.subr.mxu0 0.0
        %v4919 = vand.u32 %v3491, 4294901760
        %4920 = vmatpush1.xpose.msra.mxu0 %v4919
        %4921 = vmatprep.subr.mxu0 0.0
        %v4922 = vand.u32 %v3494, 4294901760
        %4923 = vmatpush1.xpose.msra.mxu0 %v4922
        %4924 = vmatprep.subr.mxu0 0.0
        %v4925 = vand.u32 %v3497, 4294901760
        %4926 = vmatpush1.xpose.msra.mxu0 %v4925
        %4927 = vmatprep.subr.mxu0 0.0
        %v4928 = vand.u32 %v3500, 4294901760
        %4929 = vmatpush1.xpose.msra.mxu0 %v4928
        %4930 = vmatprep.subr.mxu0 0.0
        %v4931 = vand.u32 %v3503, 4294901760
        %4932 = vmatpush1.xpose.msra.mxu0 %v4931
        %4933 = vmatprep.subr.mxu0 0.0
        %v4934 = vand.u32 %v3506, 4294901760
        %4935 = vmatpush1.xpose.msra.mxu0 %v4934
        %4936 = vmatprep.subr.mxu0 0.0
        %v4937 = vand.u32 %v3509, 4294901760
        %4938 = vmatpush1.xpose.msra.mxu0 %v4937
        %4939 = vmatprep.subr.mxu0 0.0
        %v4940 = vand.u32 %v3512, 4294901760
        %4941 = vmatpush1.xpose.msra.mxu0 %v4940
        %4942 = vmatprep.subr.mxu0 0.0
        %v4943 = vand.u32 %v3515, 4294901760
        %4944 = vmatpush1.xpose.msra.mxu0 %v4943
        %4945 = vmatprep.subr.mxu0 0.0
        %v4946 = vand.u32 %v3518, 4294901760
        %4947 = vmatpush1.xpose.msra.mxu0 %v4946
        %4948 = vmatprep.subr.mxu0 0.0
        %v4949 = vand.u32 %v3521, 4294901760
        %4950 = vmatpush1.xpose.msra.mxu0 %v4949
        %4951 = vmatprep.subr.mxu0 0.0
        %v4952 = vand.u32 %v3524, 4294901760
        %4953 = vmatpush1.xpose.msra.mxu0 %v4952
        %4954 = vmatprep.subr.mxu0 0.0
        %v4955 = vand.u32 %v3527, 4294901760
        %4956 = vmatpush1.xpose.msra.mxu0 %v4955
        %4957 = vmatprep.subr.mxu0 0.0
        %v4958 = vand.u32 %v3530, 4294901760
        %4959 = vmatpush1.xpose.msra.mxu0 %v4958
        %4960 = vmatprep.subr.mxu0 0.0
        %v4961 = vand.u32 %v3533, 4294901760
        %4962 = vmatpush1.xpose.msra.mxu0 %v4961
        %4963 = vmatprep.subr.mxu0 0.0
        %v4964 = vand.u32 %v3536, 4294901760
        %4965 = vmatpush1.xpose.msra.mxu0 %v4964
        %4966 = vmatprep.subr.mxu0 0.0
        %v4967 = vand.u32 %v3539, 4294901760
        %4968 = vmatpush1.xpose.msra.mxu0 %v4967
        %4969 = vmatprep.mubr.f32.mxu0 0.0
        %v4970 = vand.u32 %v3347, 4294901760
        %v4971 = vsub.f32 %v3347, %v4970
        %v4972 = vand.u32 %v4971, 4294901760
        %4973 = vmatmul.mubr.f32.gmra.mrb[0].mxu0 %v4972
        %v4974 = vpop.f32.mrb[0].mxu0
        %v4975 = vadd.f32 %v4869, %v4974
        %v4976 = vpop.f32.mrb[0].mxu0
        %v4977 = vadd.f32 %v4871, %v4976
        %4978 = vdwg.mxu0
        %4979 = vmatprep.subr.mxu0 0.0
        %v4980 = vand.u32 %v3446, 4294901760
        %v4981 = vsub.f32 %v3446, %v4980
        %v4982 = vand.u32 %v4981, 4294901760
        %4983 = vmatpush1.xpose.msra.mxu0 %v4982
        %4984 = vmatprep.subr.mxu0 0.0
        %v4985 = vand.u32 %v3449, 4294901760
        %v4986 = vsub.f32 %v3449, %v4985
        %v4987 = vand.u32 %v4986, 4294901760
        %4988 = vmatpush1.xpose.msra.mxu0 %v4987
        %4989 = vmatprep.subr.mxu0 0.0
        %v4990 = vand.u32 %v3452, 4294901760
        %v4991 = vsub.f32 %v3452, %v4990
        %v4992 = vand.u32 %v4991, 4294901760
        %4993 = vmatpush1.xpose.msra.mxu0 %v4992
        %4994 = vmatprep.subr.mxu0 0.0
        %v4995 = vand.u32 %v3455, 4294901760
        %v4996 = vsub.f32 %v3455, %v4995
        %v4997 = vand.u32 %v4996, 4294901760
        %4998 = vmatpush1.xpose.msra.mxu0 %v4997
        %4999 = vmatprep.subr.mxu0 0.0
        %v5000 = vand.u32 %v3458, 4294901760
        %v5001 = vsub.f32 %v3458, %v5000
        %v5002 = vand.u32 %v5001, 4294901760
        %5003 = vmatpush1.xpose.msra.mxu0 %v5002
        %5004 = vmatprep.subr.mxu0 0.0
        %v5005 = vand.u32 %v3461, 4294901760
        %v5006 = vsub.f32 %v3461, %v5005
        %v5007 = vand.u32 %v5006, 4294901760
        %5008 = vmatpush1.xpose.msra.mxu0 %v5007
        %5009 = vmatprep.subr.mxu0 0.0
        %v5010 = vand.u32 %v3464, 4294901760
        %v5011 = vsub.f32 %v3464, %v5010
        %v5012 = vand.u32 %v5011, 4294901760
        %5013 = vmatpush1.xpose.msra.mxu0 %v5012
        %5014 = vmatprep.subr.mxu0 0.0
        %v5015 = vand.u32 %v3467, 4294901760
        %v5016 = vsub.f32 %v3467, %v5015
        %v5017 = vand.u32 %v5016, 4294901760
        %5018 = vmatpush1.xpose.msra.mxu0 %v5017
        %5019 = vmatprep.subr.mxu0 0.0
        %v5020 = vand.u32 %v3470, 4294901760
        %v5021 = vsub.f32 %v3470, %v5020
        %v5022 = vand.u32 %v5021, 4294901760
        %5023 = vmatpush1.xpose.msra.mxu0 %v5022
        %5024 = vmatprep.subr.mxu0 0.0
        %v5025 = vand.u32 %v3473, 4294901760
        %v5026 = vsub.f32 %v3473, %v5025
        %v5027 = vand.u32 %v5026, 4294901760
        %5028 = vmatpush1.xpose.msra.mxu0 %v5027
        %5029 = vmatprep.subr.mxu0 0.0
        %v5030 = vand.u32 %v3476, 4294901760
        %v5031 = vsub.f32 %v3476, %v5030
        %v5032 = vand.u32 %v5031, 4294901760
        %5033 = vmatpush1.xpose.msra.mxu0 %v5032
        %5034 = vmatprep.subr.mxu0 0.0
        %v5035 = vand.u32 %v3479, 4294901760
        %v5036 = vsub.f32 %v3479, %v5035
        %v5037 = vand.u32 %v5036, 4294901760
        %5038 = vmatpush1.xpose.msra.mxu0 %v5037
        %5039 = vmatprep.subr.mxu0 0.0
        %v5040 = vand.u32 %v3482, 4294901760
        %v5041 = vsub.f32 %v3482, %v5040
        %v5042 = vand.u32 %v5041, 4294901760
        %5043 = vmatpush1.xpose.msra.mxu0 %v5042
        %5044 = vmatprep.subr.mxu0 0.0
        %v5045 = vand.u32 %v3485, 4294901760
        %v5046 = vsub.f32 %v3485, %v5045
        %v5047 = vand.u32 %v5046, 4294901760
        %5048 = vmatpush1.xpose.msra.mxu0 %v5047
        %5049 = vmatprep.subr.mxu0 0.0
        %v5050 = vand.u32 %v3488, 4294901760
        %v5051 = vsub.f32 %v3488, %v5050
        %v5052 = vand.u32 %v5051, 4294901760
        %5053 = vmatpush1.xpose.msra.mxu0 %v5052
        %5054 = vmatprep.subr.mxu0 0.0
        %v5055 = vand.u32 %v3491, 4294901760
        %v5056 = vsub.f32 %v3491, %v5055
        %v5057 = vand.u32 %v5056, 4294901760
        %5058 = vmatpush1.xpose.msra.mxu0 %v5057
        %5059 = vmatprep.subr.mxu0 0.0
        %v5060 = vand.u32 %v3494, 4294901760
        %v5061 = vsub.f32 %v3494, %v5060
        %v5062 = vand.u32 %v5061, 4294901760
        %5063 = vmatpush1.xpose.msra.mxu0 %v5062
        %5064 = vmatprep.subr.mxu0 0.0
        %v5065 = vand.u32 %v3497, 4294901760
        %v5066 = vsub.f32 %v3497, %v5065
        %v5067 = vand.u32 %v5066, 4294901760
        %5068 = vmatpush1.xpose.msra.mxu0 %v5067
        %5069 = vmatprep.subr.mxu0 0.0
        %v5070 = vand.u32 %v3500, 4294901760
        %v5071 = vsub.f32 %v3500, %v5070
        %v5072 = vand.u32 %v5071, 4294901760
        %5073 = vmatpush1.xpose.msra.mxu0 %v5072
        %5074 = vmatprep.subr.mxu0 0.0
        %v5075 = vand.u32 %v3503, 4294901760
        %v5076 = vsub.f32 %v3503, %v5075
        %v5077 = vand.u32 %v5076, 4294901760
        %5078 = vmatpush1.xpose.msra.mxu0 %v5077
        %5079 = vmatprep.subr.mxu0 0.0
        %v5080 = vand.u32 %v3506, 4294901760
        %v5081 = vsub.f32 %v3506, %v5080
        %v5082 = vand.u32 %v5081, 4294901760
        %5083 = vmatpush1.xpose.msra.mxu0 %v5082
        %5084 = vmatprep.subr.mxu0 0.0
        %v5085 = vand.u32 %v3509, 4294901760
        %v5086 = vsub.f32 %v3509, %v5085
        %v5087 = vand.u32 %v5086, 4294901760
        %5088 = vmatpush1.xpose.msra.mxu0 %v5087
        %5089 = vmatprep.subr.mxu0 0.0
        %v5090 = vand.u32 %v3512, 4294901760
        %v5091 = vsub.f32 %v3512, %v5090
        %v5092 = vand.u32 %v5091, 4294901760
        %5093 = vmatpush1.xpose.msra.mxu0 %v5092
        %5094 = vmatprep.subr.mxu0 0.0
        %v5095 = vand.u32 %v3515, 4294901760
        %v5096 = vsub.f32 %v3515, %v5095
        %v5097 = vand.u32 %v5096, 4294901760
        %5098 = vmatpush1.xpose.msra.mxu0 %v5097
        %5099 = vmatprep.subr.mxu0 0.0
        %v5100 = vand.u32 %v3518, 4294901760
        %v5101 = vsub.f32 %v3518, %v5100
        %v5102 = vand.u32 %v5101, 4294901760
        %5103 = vmatpush1.xpose.msra.mxu0 %v5102
        %5104 = vmatprep.subr.mxu0 0.0
        %v5105 = vand.u32 %v3521, 4294901760
        %v5106 = vsub.f32 %v3521, %v5105
        %v5107 = vand.u32 %v5106, 4294901760
        %5108 = vmatpush1.xpose.msra.mxu0 %v5107
        %5109 = vmatprep.subr.mxu0 0.0
        %v5110 = vand.u32 %v3524, 4294901760
        %v5111 = vsub.f32 %v3524, %v5110
        %v5112 = vand.u32 %v5111, 4294901760
        %5113 = vmatpush1.xpose.msra.mxu0 %v5112
        %5114 = vmatprep.subr.mxu0 0.0
        %v5115 = vand.u32 %v3527, 4294901760
        %v5116 = vsub.f32 %v3527, %v5115
        %v5117 = vand.u32 %v5116, 4294901760
        %5118 = vmatpush1.xpose.msra.mxu0 %v5117
        %5119 = vmatprep.subr.mxu0 0.0
        %v5120 = vand.u32 %v3530, 4294901760
        %v5121 = vsub.f32 %v3530, %v5120
        %v5122 = vand.u32 %v5121, 4294901760
        %5123 = vmatpush1.xpose.msra.mxu0 %v5122
        %5124 = vmatprep.subr.mxu0 0.0
        %v5125 = vand.u32 %v3533, 4294901760
        %v5126 = vsub.f32 %v3533, %v5125
        %v5127 = vand.u32 %v5126, 4294901760
        %5128 = vmatpush1.xpose.msra.mxu0 %v5127
        %5129 = vmatprep.subr.mxu0 0.0
        %v5130 = vand.u32 %v3536, 4294901760
        %v5131 = vsub.f32 %v3536, %v5130
        %v5132 = vand.u32 %v5131, 4294901760
        %5133 = vmatpush1.xpose.msra.mxu0 %v5132
        %5134 = vmatprep.subr.mxu0 0.0
        %v5135 = vand.u32 %v3539, 4294901760
        %v5136 = vsub.f32 %v3539, %v5135
        %v5137 = vand.u32 %v5136, 4294901760
        %5138 = vmatpush1.xpose.msra.mxu0 %v5137
        %5139 = vmatprep.mubr.f32.mxu0 0.0
        %v5140 = vand.u32 %v3347, 4294901760
        %5141 = vmatmul.mubr.f32.gmra.mrb[0].mxu0 %v5140
        %v5142 = vpop.f32.mrb[0].mxu0
        %v5143 = vadd.f32 %v4975, %v5142
        %v5144 = vpop.f32.mrb[0].mxu0
        %v5145 = vadd.f32 %v4977, %v5144
        %5146 = vdwg.mxu0
        %5147 = vmatprep.subr.mxu0 0.0
        %v5148 = vand.u32 %v3446, 4294901760
        %5149 = vmatpush1.xpose.msra.mxu0 %v5148
        %5150 = vmatprep.subr.mxu0 0.0
        %v5151 = vand.u32 %v3449, 4294901760
        %5152 = vmatpush1.xpose.msra.mxu0 %v5151
        %5153 = vmatprep.subr.mxu0 0.0
        %v5154 = vand.u32 %v3452, 4294901760
        %5155 = vmatpush1.xpose.msra.mxu0 %v5154
        %5156 = vmatprep.subr.mxu0 0.0
        %v5157 = vand.u32 %v3455, 4294901760
        %5158 = vmatpush1.xpose.msra.mxu0 %v5157
        %5159 = vmatprep.subr.mxu0 0.0
        %v5160 = vand.u32 %v3458, 4294901760
        %5161 = vmatpush1.xpose.msra.mxu0 %v5160
        %5162 = vmatprep.subr.mxu0 0.0
        %v5163 = vand.u32 %v3461, 4294901760
        %5164 = vmatpush1.xpose.msra.mxu0 %v5163
        %5165 = vmatprep.subr.mxu0 0.0
        %v5166 = vand.u32 %v3464, 4294901760
        %5167 = vmatpush1.xpose.msra.mxu0 %v5166
        %5168 = vmatprep.subr.mxu0 0.0
        %v5169 = vand.u32 %v3467, 4294901760
        %5170 = vmatpush1.xpose.msra.mxu0 %v5169
        %5171 = vmatprep.subr.mxu0 0.0
        %v5172 = vand.u32 %v3470, 4294901760
        %5173 = vmatpush1.xpose.msra.mxu0 %v5172
        %5174 = vmatprep.subr.mxu0 0.0
        %v5175 = vand.u32 %v3473, 4294901760
        %5176 = vmatpush1.xpose.msra.mxu0 %v5175
        %5177 = vmatprep.subr.mxu0 0.0
        %v5178 = vand.u32 %v3476, 4294901760
        %5179 = vmatpush1.xpose.msra.mxu0 %v5178
        %5180 = vmatprep.subr.mxu0 0.0
        %v5181 = vand.u32 %v3479, 4294901760
        %5182 = vmatpush1.xpose.msra.mxu0 %v5181
        %5183 = vmatprep.subr.mxu0 0.0
        %v5184 = vand.u32 %v3482, 4294901760
        %5185 = vmatpush1.xpose.msra.mxu0 %v5184
        %5186 = vmatprep.subr.mxu0 0.0
        %v5187 = vand.u32 %v3485, 4294901760
        %5188 = vmatpush1.xpose.msra.mxu0 %v5187
        %5189 = vmatprep.subr.mxu0 0.0
        %v5190 = vand.u32 %v3488, 4294901760
        %5191 = vmatpush1.xpose.msra.mxu0 %v5190
        %5192 = vmatprep.subr.mxu0 0.0
        %v5193 = vand.u32 %v3491, 4294901760
        %5194 = vmatpush1.xpose.msra.mxu0 %v5193
        %5195 = vmatprep.subr.mxu0 0.0
        %v5196 = vand.u32 %v3494, 4294901760
        %5197 = vmatpush1.xpose.msra.mxu0 %v5196
        %5198 = vmatprep.subr.mxu0 0.0
        %v5199 = vand.u32 %v3497, 4294901760
        %5200 = vmatpush1.xpose.msra.mxu0 %v5199
        %5201 = vmatprep.subr.mxu0 0.0
        %v5202 = vand.u32 %v3500, 4294901760
        %5203 = vmatpush1.xpose.msra.mxu0 %v5202
        %5204 = vmatprep.subr.mxu0 0.0
        %v5205 = vand.u32 %v3503, 4294901760
        %5206 = vmatpush1.xpose.msra.mxu0 %v5205
        %5207 = vmatprep.subr.mxu0 0.0
        %v5208 = vand.u32 %v3506, 4294901760
        %5209 = vmatpush1.xpose.msra.mxu0 %v5208
        %5210 = vmatprep.subr.mxu0 0.0
        %v5211 = vand.u32 %v3509, 4294901760
        %5212 = vmatpush1.xpose.msra.mxu0 %v5211
        %5213 = vmatprep.subr.mxu0 0.0
        %v5214 = vand.u32 %v3512, 4294901760
        %5215 = vmatpush1.xpose.msra.mxu0 %v5214
        %5216 = vmatprep.subr.mxu0 0.0
        %v5217 = vand.u32 %v3515, 4294901760
        %5218 = vmatpush1.xpose.msra.mxu0 %v5217
        %5219 = vmatprep.subr.mxu0 0.0
        %v5220 = vand.u32 %v3518, 4294901760
        %5221 = vmatpush1.xpose.msra.mxu0 %v5220
        %5222 = vmatprep.subr.mxu0 0.0
        %v5223 = vand.u32 %v3521, 4294901760
        %5224 = vmatpush1.xpose.msra.mxu0 %v5223
        %5225 = vmatprep.subr.mxu0 0.0
        %v5226 = vand.u32 %v3524, 4294901760
        %5227 = vmatpush1.xpose.msra.mxu0 %v5226
        %5228 = vmatprep.subr.mxu0 0.0
        %v5229 = vand.u32 %v3527, 4294901760
        %5230 = vmatpush1.xpose.msra.mxu0 %v5229
        %5231 = vmatprep.subr.mxu0 0.0
        %v5232 = vand.u32 %v3530, 4294901760
        %5233 = vmatpush1.xpose.msra.mxu0 %v5232
        %5234 = vmatprep.subr.mxu0 0.0
        %v5235 = vand.u32 %v3533, 4294901760
        %5236 = vmatpush1.xpose.msra.mxu0 %v5235
        %5237 = vmatprep.subr.mxu0 0.0
        %v5238 = vand.u32 %v3536, 4294901760
        %5239 = vmatpush1.xpose.msra.mxu0 %v5238
        %5240 = vmatprep.subr.mxu0 0.0
        %v5241 = vand.u32 %v3539, 4294901760
        %5242 = vmatpush1.xpose.msra.mxu0 %v5241
        %5243 = vmatprep.mubr.f32.mxu0 0.0
        %v5244 = vand.u32 %v3347, 4294901760
        %5245 = vmatmul.mubr.f32.gmra.mrb[0].mxu0 %v5244
        %v5246 = vpop.f32.mrb[0].mxu0
        %v5247 = vadd.f32 %v5143, %v5246
        %v5248 = vpop.f32.mrb[0].mxu0
        %v5249 = vadd.f32 %v5145, %v5248
        %5250 = vdwg.mxu0
        %v5251 = vmul.f32 %v3341, %v4392
        %v5252 = vmul.f32 %v3342, %v4394
        %v5253 = vmul.f32 %v3343, %v5247
        %v5254 = vmul.f32 %v3344, %v5249
        %vm5255 = vcmask 1043456
        %v5256 = vsel %vm5255, %v5251, 0.0
        %v5257 = vrot.slane %v5256, 4
        %v5258 = vadd.f32 %v5256, %v5257
        %v5259 = vrot.slane %v5258, 2
        %v5260 = vadd.f32 %v5258, %v5259
        %v5261 = vrot.slane %v5260, 1
        %v5262 = vadd.f32 %v5260, %v5261
        %v5263 = vsel %vm5255, %v5252, 0.0
        %v5264 = vrot.slane %v5263, 4
        %v5265 = vadd.f32 %v5263, %v5264
        %v5266 = vrot.slane %v5265, 2
        %v5267 = vadd.f32 %v5265, %v5266
        %v5268 = vrot.slane %v5267, 1
        %v5269 = vadd.f32 %v5267, %v5268
        %v5270 = vsel %vm5255, %v5253, 0.0
        %v5271 = vrot.slane %v5270, 4
        %v5272 = vadd.f32 %v5270, %v5271
        %v5273 = vrot.slane %v5272, 2
        %v5274 = vadd.f32 %v5272, %v5273
        %v5275 = vrot.slane %v5274, 1
        %v5276 = vadd.f32 %v5274, %v5275
        %v5277 = vsel %vm5255, %v5254, 0.0
        %v5278 = vrot.slane %v5277, 4
        %v5279 = vadd.f32 %v5277, %v5278
        %v5280 = vrot.slane %v5279, 2
        %v5281 = vadd.f32 %v5279, %v5280
        %v5282 = vrot.slane %v5281, 1
        %v5283 = vadd.f32 %v5281, %v5282
        %v5288 = vcombine.low %v5262, %v5269
        %v5289 = vcombine.low %v5276, %v5283
        %v5291 = vunpack.c.l.s4 1966171168
        %v5292 = vunpack.c.0.s8 %v5291
        %v5293 = vlaneseq
        %v5294 = vshrl.u32 %v5293, 7
        %v5295 = vsub.s32 %v5292, %v5294
        %v5296 = vrot.slane %v5288, %v5295
        %v5298 = vunpack.c.l.s4 1966171168
        %v5299 = vunpack.c.0.s8 %v5298
        %v5300 = vlaneseq
        %v5301 = vshrl.u32 %v5300, 7
        %v5302 = vsub.s32 %v5299, %v5301
        %v5303 = vrot.slane %v5289, %v5302
        %v5304 = vcombine.low %v5296, %v5303
        %v5306 = vunpack.c.l.s4 1966171168
        %v5307 = vunpack.c.0.s8 %v5306
        %v5308 = vlaneseq
        %v5309 = vshrl.u32 %v5308, 7
        %v5310 = vsub.s32 %v5307, %v5309
        %v5311 = vrot.slane %v5304, %v5310
        %v5313 = vlaneseq
        %vm5314 = vcmp.ge.s32.totalorder %v5313, 0
        %vm5315 = vcmp.lt.s32.totalorder %v5313, 512
        %vm5316 = vmand %vm5314, %vm5315
        %5317 = vst.msk [vmem:[%s180] sm:$0xf] %vm5316, %v5311
        %s5318 = sand.u32 %s98, 1
        %s5319 = scalar_lea.sflag [#allocation3], %s5318
        %s5320 = sand.u32 %s98, 1
        %s5321 = smul.addr %s5320, 4
        %s5322 = scalar_lea.vmem [#allocation2], %s5321
        // Predicated region
        $region33: #{tpu_custom_call.1} parent=31 // pred_check
          %p5323 = pneg %p108
        $region34: #{tpu_custom_call.1} parent=31 // pred_check_branch
          %5325 = sbr.rel (%p5323) target = $region36
        $region35: #{tpu_custom_call.1} parent=31 // pred_region
          %s5326 = smul.u32 4, %s17
          %s5328 = ssub.s32 64, 64
          %5329 = vsyncadd %s5319, %s5328
          %s5330 = smul.addr %s5326, 16
          %s5331 = scalar_lea.hbm %s3, %s5330
          %s5333 = sshll.u32 %s5322, 4
          %s5334 = int_to_ptr.vmem [resolvable:$true] %s5333
          %5336 = dma.vmem_to_hbm [thread:$0]  %s5334, 64, %s5331, %s5319
        $region36: #{tpu_custom_call.1} parent=31 // pred_fallthru
          _
      $region32: #{tpu_custom_call.1} parent=5 // pred_fallthru
        _
      %p5337 = scmp.le.s32.totalorder 2, %s12
      // Predicated region
      $region37: #{tpu_custom_call.1} parent=5 // pred_check
        %p5338 = pneg %p5337
      $region38: #{tpu_custom_call.1} parent=5 // pred_check_branch
        %5340 = sbr.rel (%p5338) target = $region40
      $region39: #{tpu_custom_call.1} parent=5 // pred_region
        %s5341 = ssub.s32 %s12, 2
        // Predicated region
        $region41: #{tpu_custom_call.1} parent=39 // pred_check
          %p5342 = pneg %p114
        $region42: #{tpu_custom_call.1} parent=39 // pred_check_branch
          %5344 = sbr.rel (%p5342) target = $region44
        $region43: #{tpu_custom_call.1} parent=39 // pred_region
          %s5345 = sand.u32 %s99, 1
          %s5346 = scalar_lea.sflag [#allocation3], %s5345
          %s5347 = sand.u32 %s99, 1
          %s5348 = smul.addr %s5347, 4
          %s5349 = scalar_lea.vmem [#allocation2], %s5348
          %5350 = dma.done %s5346, 64
        $region44: #{tpu_custom_call.1} parent=39 // pred_fallthru
          _
      $region40: #{tpu_custom_call.1} parent=5 // pred_fallthru
        _
    $region6: #{tpu_custom_call.1} parent=1 // loop_footer
      %s16 = sadd.s32 1, %s12
    $region7: #{tpu_custom_call.1} parent=1 // loop_footer_branch
      %11 = sbr.rel target = $region3
    $region8: #{tpu_custom_call.1} parent=1 // loop_exit
      _
    %5351 = vsyncpa [#allocation3], 1
    %s5352 = scalar_lea.sflag [#allocation3], 1
    %5353 = vsyncpa %s5352, 1

</llo_original>
